<compile_context>
chip_gen: v6e
topology: v6e:2x2x1
jax: 0.10.0
libtpu: 0.0.40
codegen_flags: <defaults>
</compile_context>

<pallas_src>
import functools

import jax
import jax.numpy as jnp
from jax.experimental import pallas as pl
from jax.experimental.pallas import tpu as pltpu


def _nlpl_kernel(s_ref, h_ref, jhi_ref, jlo_ref, o_ref, *,
                 steps_per_slice, valid_rows, mm_dtype):
    """Accumulate per-slice partial sums of logsigmoid(delta_h) into o_ref."""
    k = pl.program_id(1)  # reduction ("arbitrary") axis, innermost

    @pl.when(k == 0)
    def _():
        o_ref[...] = jnp.zeros_like(o_ref)

    s = s_ref[...]                                            # (tm, N), storage dtype
    s_mm = s if s.dtype == jnp.dtype(mm_dtype) else s.astype(mm_dtype)

    # s @ J' on the MXU in bf16 (full rate), two passes (hi + lo residual of
    # the f32 J') into an f32 accumulator -> near-f32 accuracy.
    sj = jnp.dot(s_mm, jhi_ref[...], preferred_element_type=jnp.float32)
    sj = sj + jnp.dot(s_mm, jlo_ref[...], preferred_element_type=jnp.float32)

    # delta_h = s * (h' + s@J'); 2*beta and the diagonal removal are already
    # folded into h' and J' in the wrapper, so this is exact for any state.
    delta_h = s.astype(jnp.float32) * (h_ref[...] + sj)

    # Numerically stable logsigmoid(x) = min(x, 0) - log1p(exp(-|x|)).
    # TODO(synk): optional bf16 EUP path on v6e/v7x if exp/log1p ever binds.
    log_sig = jnp.minimum(delta_h, 0.0) - jnp.log1p(jnp.exp(-jnp.abs(delta_h)))

    if valid_rows is not None:
        # Static flag: only emitted when T was padded up to a multiple of tm.
        tm = log_sig.shape[0]
        row0 = (pl.program_id(0) * steps_per_slice + k) * tm
        rows = row0 + jax.lax.broadcasted_iota(jnp.int32, log_sig.shape, 0)
        log_sig = jnp.where(rows < valid_rows, log_sig, 0.0)

    # Fold the (tm, N) tile into the resident lane-dense (8, N) accumulator
    # with pure VPU adds; the cross-lane reduce happens once, in XLA.
    o_ref[...] += jnp.sum(log_sig.reshape(-1, 8, log_sig.shape[-1]), axis=0)


def ising_negative_log_pseudo_likelihood(data_ts, h, J, beta, *,
                                         tm=None, mm_dtype=jnp.bfloat16):
    """data_ts: (T, N) spins in {-1,+1} (bf16 recommended; +/-1 is exact);
    h: (1, N); J: (N, N).  Returns scalar f32 loss.

    Note: mm_dtype=bf16 feeds the state to the MXU in bf16, exact for spin
    data; pass mm_dtype=jnp.float32 for non-spin f32 inputs."""
    T, N = data_ts.shape
    assert J.shape == (N, N) and h.shape[-1] == N

    # ---- chip-aware VMEM budget -------------------------------------------
    try:
        vmem_capacity = int(pltpu.get_tpu_info().vmem_capacity_bytes)
    except Exception:
        vmem_capacity = 128 << 20          # v5e / v6e per-core capacity
    # Leave compiler-scratch headroom: ~54 MiB usable on v7x, ~109 MiB on v5e/v6e.
    usable_vmem = int(0.85 * vmem_capacity)

    state_itemsize = data_ts.dtype.itemsize

    def _vmem_needed(row_tile):
        streamed = 2 * row_tile * N * state_itemsize   # double-buffered state tiles
        constants = 2 * N * N * 2 + N * 4              # J hi/lo (bf16, single-buffered) + h'
        out_acc = 2 * 2 * 8 * N * 4                    # per-slice accumulator blocks
        temps = 6 * row_tile * N * 4                   # f32 elementwise temporaries
        return streamed + constants + out_acc + temps

    # ---- row-tile selection -------------------------------------------------
    candidates = (4096, 2048, 1024, 512, 256, 128, 64, 32, 16)
    if tm is None:
        fitting = [c for c in candidates if _vmem_needed(c) <= usable_vmem]
        if not fitting:
            # TODO(synk): for very large N (~>2-3K, esp. v7x's 64 MiB VMEM) tile J
            # over an output-N grid axis instead of keeping (N, N) resident.
            fitting = [candidates[-1]]
        tm = next((c for c in fitting if T % c == 0), None)   # prefer no padding
        if tm is None:
            tm = next((c for c in fitting if c <= T), fitting[-1])
    assert tm % 16 == 0, "row tile must be a multiple of 16 (bf16 sublane packing)"

    # Pad T up to a multiple of tm; padded rows are masked inside the kernel.
    T_pad = ((T + tm - 1) // tm) * tm
    if T_pad != T:
        data_ts = jnp.pad(data_ts, ((0, T_pad - T), (0, 0)), constant_values=1)

    num_row_blocks = T_pad // tm
    # Megacore split: a parallel leading axis of 2 lets v7x use both
    # TensorCores; harmless (size-1 loop) on single-TC v5e/v6e.
    n_slices = 2 if (num_row_blocks % 2 == 0 and num_row_blocks >= 2) else 1
    steps_per_slice = num_row_blocks // n_slices

    # ---- prepare constants once (O(N^2) XLA work) ---------------------------
    two_beta = jnp.float32(2.0 * beta)
    j_nd = (J.astype(jnp.float32) - jnp.diag(jnp.diag(J)).astype(jnp.float32)) * two_beta
    j_hi = j_nd.astype(jnp.bfloat16)
    j_lo = (j_nd - j_hi.astype(jnp.float32)).astype(jnp.bfloat16)
    h_scaled = (h.astype(jnp.float32) * two_beta).reshape(1, N)

    vmem_limit = int(min(max(_vmem_needed(tm) + (8 << 20), 32 << 20), usable_vmem))

    kernel = functools.partial(
        _nlpl_kernel,
        steps_per_slice=steps_per_slice,
        valid_rows=(T if T_pad != T else None),
        mm_dtype=mm_dtype,
    )

    partials = pl.pallas_call(
        kernel,
        out_shape=jax.ShapeDtypeStruct((n_slices * 8, N), jnp.float32),
        grid_spec=pltpu.PrefetchScalarGridSpec(
            num_scalar_prefetch=0,
            grid=(n_slices, steps_per_slice),
            in_specs=[
                # streamed state tile for (slice i, step k); default double-buffered
                pl.BlockSpec((tm, N), lambda i, k: (i * steps_per_slice + k, 0)),
                # constants: single-buffered (index map is constant)
                pl.BlockSpec((1, N), lambda i, k: (0, 0),
                             pipeline_mode=pl.Buffered(1)),      # h' = 2*beta*h
                pl.BlockSpec((N, N), lambda i, k: (0, 0),
                             pipeline_mode=pl.Buffered(1)),      # J' hi (bf16)
                pl.BlockSpec((N, N), lambda i, k: (0, 0),
                             pipeline_mode=pl.Buffered(1)),      # J' lo (bf16)
            ],
            # Per-slice lane-dense (8, N) partial sums; block index depends only
            # on the parallel axis -> resident across the reduction axis.
            out_specs=pl.BlockSpec((8, N), lambda i, k: (i, 0)),
        ),
        compiler_params=pltpu.CompilerParams(
            dimension_semantics=("parallel", "arbitrary"),
            vmem_limit_bytes=vmem_limit,
        ),
    )(data_ts, h_scaled, j_hi, j_lo)

    # Tiny epilogue in XLA: reduce the partials, negate, average over the
    # ORIGINAL T*N (padded rows were masked out of the sum).
    return -jnp.sum(partials) / jnp.float32(T * N)


def _reference(data_ts, h, J, beta):
    s = data_ts.astype(jnp.float32)
    J_no_diag = J - jnp.diag(jnp.diag(J))
    sj = jnp.dot(s, J_no_diag, precision=jax.lax.Precision.HIGHEST)
    delta_h = beta * 2.0 * s * (h + sj)
    return -jnp.mean(jax.nn.log_sigmoid(delta_h))


if __name__ == "__main__":
    num_nodes = 128
    beta = 0.5

    key = jax.random.PRNGKey(0)
    k_h, k_j, k_s = jax.random.split(key, 3)

    # Deterministic synthetic parameters (shapes match the module's __init__).
    h = jax.random.normal(k_h, (1, num_nodes), dtype=jnp.float32)
    J = jax.random.normal(k_j, (num_nodes, num_nodes), dtype=jnp.float32)

    def make_spins(k, T):
        # Ising spin time series in {-1,+1}, stored bf16 (exact for +/-1) to
        # halve the dominant HBM stream of the state.
        u = jax.random.uniform(k, (T, num_nodes))
        return jnp.where(u > 0.5, 1.0, -1.0).astype(jnp.bfloat16)

    # Exercise: (a) the auto big-tile path, (b) the multi-step accumulation /
    # megacore-split path, (c) the padded + masked-tail path.
    cases = [("auto", 1024, None), ("tiled", 1024, 128), ("padded", 1000, None)]
    for name, T, tile in cases:
        data_ts = make_spins(jax.random.fold_in(k_s, T), T)
        loss = ising_negative_log_pseudo_likelihood(data_ts, h, J, beta, tm=tile)
        loss = jax.block_until_ready(loss)
        ref = _reference(data_ts, h, J, beta)
        assert jnp.allclose(loss, ref, rtol=1e-5, atol=1e-4), (name, loss, ref)

    print("KERNEL_OK")
</pallas_src>

<mosaic_0001>
module attributes {stable_mosaic.version = 11 : i64} {
  func.func @_nlpl_kernel(%arg0: i32, %arg1: i32, %arg2: memref<1024x128xbf16, #tpu.memory_space<vmem>>, %arg3: memref<1x128xf32, #tpu.memory_space<vmem>>, %arg4: memref<128x128xbf16, #tpu.memory_space<vmem>>, %arg5: memref<128x128xbf16, #tpu.memory_space<vmem>>, %arg6: memref<8x128xf32, #tpu.memory_space<vmem>>) attributes {dimension_semantics = [#tpu.dimension_semantics<parallel>, #tpu.dimension_semantics<arbitrary>], iteration_bounds = array<i64: 1, 1>, scalar_prefetch = 0 : i64, scratch_operands = 0 : i64, tpu.core_type = #tpu.core_type<tc>, window_params = [{transform_indices = @transform_0, window_bounds = array<i64: 1024, 128>}, {pipeline_mode = #tpu.pipeline_mode<synchronous>, transform_indices = @transform_1, window_bounds = array<i64: 1, 128>}, {pipeline_mode = #tpu.pipeline_mode<synchronous>, transform_indices = @transform_2, window_bounds = array<i64: 128, 128>}, {pipeline_mode = #tpu.pipeline_mode<synchronous>, transform_indices = @transform_3, window_bounds = array<i64: 128, 128>}, {transform_indices = @transform_4, window_bounds = array<i64: 8, 128>}]} {
    %c0_i32 = arith.constant 0 : i32
    %0 = arith.cmpi eq, %arg1, %c0_i32 : i32
    %1 = arith.extui %0 : i1 to i32
    %c0_i32_0 = arith.constant 0 : i32
    %2 = arith.cmpi ne, %1, %c0_i32_0 : i32
    scf.if %2 {
      %cst_16 = arith.constant 0.000000e+00 : f32
      %27 = vector.broadcast %cst_16 : f32 to vector<8x128xf32>
      %c0_17 = arith.constant 0 : index
      %c0_18 = arith.constant 0 : index
      %28 = vector.load %arg6[%c0_17, %c0_18] : memref<8x128xf32, #tpu.memory_space<vmem>>, vector<8x128xf32>
      tpu.vector_store %arg6[%c0_17, %c0_18], %27 {strides = array<i32>} : memref<8x128xf32, #tpu.memory_space<vmem>>, vector<8x128xf32>,
    } else {
    }
    %c0 = arith.constant 0 : index
    %c0_1 = arith.constant 0 : index
    %3 = vector.load %arg2[%c0, %c0_1] : memref<1024x128xbf16, #tpu.memory_space<vmem>>, vector<1024x128xbf16>
    %c0_2 = arith.constant 0 : index
    %c0_3 = arith.constant 0 : index
    %4 = vector.load %arg4[%c0_2, %c0_3] : memref<128x128xbf16, #tpu.memory_space<vmem>>, vector<128x128xbf16>
    %cst = arith.constant dense<0.000000e+00> : vector<1024x128xf32>
    %5 = tpu.matmul %3, %4, %cst {dimension_numbers = #tpu.dot_dimension_numbers<[1], [0], [0], [1], [0, 0, 1, 1], [], []>} : vector<1024x128xbf16>, vector<128x128xbf16>, vector<1024x128xf32> -> vector<1024x128xf32>
    %c0_4 = arith.constant 0 : index
    %c0_5 = arith.constant 0 : index
    %6 = vector.load %arg5[%c0_4, %c0_5] : memref<128x128xbf16, #tpu.memory_space<vmem>>, vector<128x128xbf16>
    %cst_6 = arith.constant dense<0.000000e+00> : vector<1024x128xf32>
    %7 = tpu.matmul %3, %6, %cst_6 {dimension_numbers = #tpu.dot_dimension_numbers<[1], [0], [0], [1], [0, 0, 1, 1], [], []>} : vector<1024x128xbf16>, vector<128x128xbf16>, vector<1024x128xf32> -> vector<1024x128xf32>
    %8 = arith.addf %5, %7 : vector<1024x128xf32>
    %9 = arith.extf %3 : vector<1024x128xbf16> to vector<1024x128xf32>
    %c0_7 = arith.constant 0 : index
    %c0_8 = arith.constant 0 : index
    %10 = vector.load %arg3[%c0_7, %c0_8] : memref<1x128xf32, #tpu.memory_space<vmem>>, vector<1x128xf32>
    %11 = vector.broadcast %10 : vector<1x128xf32> to vector<1024x128xf32>
    %12 = arith.addf %11, %8 : vector<1024x128xf32>
    %13 = arith.mulf %9, %12 : vector<1024x128xf32>
    %cst_9 = arith.constant 0.000000e+00 : f32
    %14 = vector.broadcast %cst_9 : f32 to vector<1024x128xf32>
    %15 = arith.minimumf %13, %14 : vector<1024x128xf32>
    %16 = math.absf %13 : vector<1024x128xf32>
    %cst_10 = arith.constant 0.000000e+00 : f32
    %17 = vector.broadcast %cst_10 : f32 to vector<1024x128xf32>
    %18 = arith.subf %17, %16 : vector<1024x128xf32>
    %19 = math.exp %18 : vector<1024x128xf32>
    %20 = math.log1p %19 : vector<1024x128xf32>
    %21 = arith.subf %15, %20 : vector<1024x128xf32>
    %c0_11 = arith.constant 0 : index
    %c0_12 = arith.constant 0 : index
    %22 = vector.load %arg6[%c0_11, %c0_12] : memref<8x128xf32, #tpu.memory_space<vmem>>, vector<8x128xf32>
    %23 = vector.shape_cast %21 : vector<1024x128xf32> to vector<128x8x128xf32>
    %cst_13 = arith.constant dense<0.000000e+00> : vector<8x128xf32>
    %24 = vector.multi_reduction <add>, %23, %cst_13 [0] : vector<128x8x128xf32> to vector<8x128xf32>
    %25 = arith.addf %22, %24 : vector<8x128xf32>
    %c0_14 = arith.constant 0 : index
    %c0_15 = arith.constant 0 : index
    %26 = vector.load %arg6[%c0_14, %c0_15] : memref<8x128xf32, #tpu.memory_space<vmem>>, vector<8x128xf32>
    tpu.vector_store %arg6[%c0_14, %c0_15], %25 {strides = array<i32>} : memref<8x128xf32, #tpu.memory_space<vmem>>, vector<8x128xf32>,
    return
  }
  func.func @transform_0(%arg0: i32, %arg1: i32) -> (i32, i32) {
    %c1_i32 = arith.constant 1 : i32
    %0 = arith.muli %arg0, %c1_i32 : i32
    %1 = arith.addi %0, %arg1 : i32
    %c0_i32 = arith.constant 0 : i32
    %c0_i32_0 = arith.constant 0 : i32
    return %1, %c0_i32 : i32, i32
  }
  func.func @transform_1(%arg0: i32, %arg1: i32) -> (i32, i32) {
    %c0_i32 = arith.constant 0 : i32
    %c0_i32_0 = arith.constant 0 : i32
    %c0_i32_1 = arith.constant 0 : i32
    return %c0_i32, %c0_i32_0 : i32, i32
  }
  func.func @transform_2(%arg0: i32, %arg1: i32) -> (i32, i32) {
    %c0_i32 = arith.constant 0 : i32
    %c0_i32_0 = arith.constant 0 : i32
    %c0_i32_1 = arith.constant 0 : i32
    return %c0_i32, %c0_i32_0 : i32, i32
  }
  func.func @transform_3(%arg0: i32, %arg1: i32) -> (i32, i32) {
    %c0_i32 = arith.constant 0 : i32
    %c0_i32_0 = arith.constant 0 : i32
    %c0_i32_1 = arith.constant 0 : i32
    return %c0_i32, %c0_i32_0 : i32, i32
  }
  func.func @transform_4(%arg0: i32, %arg1: i32) -> (i32, i32) {
    %c0_i32 = arith.constant 0 : i32
    %c0_i32_0 = arith.constant 0 : i32
    return %arg0, %c0_i32 : i32, i32
  }
}

</mosaic_0001>

<llo_original>
// kernel: tpu_custom_call.1
$region0: #{tpu_custom_call.1}
  #allocation0 [shape = 'u32[]', space=smem, size = 0x4, offset = 0x4, fixed_abs, tag = 'smem constant byte address 0x4 - core index']
  #allocation1 [shape = 'u32[144,128]{1,0:T(1,128)}', space=vmem, size = 0x12000, scoped, tag = 'internal scratch']
  %s0 = inlined_call_operand.hbm [shape: bf16[1024,128], index: 0, kind: input, shape index: {}]
  %s1 = inlined_call_operand.vmem [shape: f32[1,128], index: 1, kind: input, shape index: {}]
  %s2 = inlined_call_operand.hbm [shape: bf16[128,128], index: 2, kind: input, shape index: {}]
  %s3 = inlined_call_operand.hbm [shape: bf16[128,128], index: 3, kind: input, shape index: {}]
  %s4 = inlined_call_operand.hbm [shape: f32[8,128], index: 4, kind: output, shape index: {}]
  %s5 = sld [smem:[#allocation0]]
  $region42: #{tpu_custom_call.1} parent=0
    _
  %s7 = ssub.s32 1, %s5
  %s8 = scalar_select 0, %s7, %s5
  $region1: #{tpu_custom_call.1} parent=0
    #allocation2 [shape = 'u8[262144]{0}', space=vmem, size = 0x40000, scoped, tag = 'input window, operand 0, single buffered']
    #allocation3 [shape = 's32[1]{0}', space=sflag, size = 0x4, scoped, tag = 'scoped memory for tpu_custom_call.1']
    #allocation4 [shape = 's32[1]{0}', space=sflag, size = 0x4, scoped, tag = 'scoped memory for tpu_custom_call.1']
    #allocation5 [shape = 'u8[32768]{0}', space=vmem, size = 0x8000, scoped, tag = 'input window, operand 2, single buffered']
    #allocation6 [shape = 's32[1]{0}', space=sflag, size = 0x4, scoped, tag = 'scoped memory for tpu_custom_call.1']
    #allocation7 [shape = 'u8[32768]{0}', space=vmem, size = 0x8000, scoped, tag = 'input window, operand 3, single buffered']
    #allocation8 [shape = 'u8[4096]{0}', space=vmem, size = 0x1000, scoped, tag = 'output window, operand 0, single buffered']
    %9 = vsyncpa [#allocation3], 0
    %10 = vsyncpa [#allocation6], 0
    %11 = vsyncpa [#allocation4], 0
    // Predicated region
    $region2: #{tpu_custom_call.1} parent=1 // pred_check
      _
    $region3: #{tpu_custom_call.1} parent=1 // pred_check_branch
      %13 = sbr.rel (0) target = $region5
    $region4: #{tpu_custom_call.1} parent=1 // pred_region
      %s14 = sadd.s32 0, 0
      %s15 = smul.u32 128, %s14
      %s17 = ssub.s32 8192, 8192
      %18 = vsyncadd [#allocation3], %s17
      %s19 = smul.addr %s15, 64
      %s20 = scalar_lea.hbm %s0, %s19
      %s21 = sshll.u32 [#allocation2], 4
      %s22 = int_to_ptr.vmem [resolvable:$true] %s21
      %27 = dma.hbm_to_vmem [thread:$0]  %s20, 8192, %s22, [#allocation3], 64, 64, 4
    $region5: #{tpu_custom_call.1} parent=1 // pred_fallthru
      _
    // Predicated region
    $region6: #{tpu_custom_call.1} parent=1 // pred_check
      _
    $region7: #{tpu_custom_call.1} parent=1 // pred_check_branch
      %29 = sbr.rel (0) target = $region9
    $region8: #{tpu_custom_call.1} parent=1 // pred_region
      _
    $region9: #{tpu_custom_call.1} parent=1 // pred_fallthru
      _
    // Predicated region
    $region10: #{tpu_custom_call.1} parent=1 // pred_check
      _
    $region11: #{tpu_custom_call.1} parent=1 // pred_check_branch
      %31 = sbr.rel (0) target = $region13
    $region12: #{tpu_custom_call.1} parent=1 // pred_region
      %s33 = ssub.s32 1024, 1024
      %34 = vsyncadd [#allocation6], %s33
      %s35 = sshll.u32 [#allocation5], 4
      %s36 = int_to_ptr.vmem [resolvable:$true] %s35
      %41 = dma.hbm_to_vmem [thread:$0]  %s2, 1024, %s36, [#allocation6], 64, 64, 4
    $region13: #{tpu_custom_call.1} parent=1 // pred_fallthru
      _
    // Predicated region
    $region14: #{tpu_custom_call.1} parent=1 // pred_check
      _
    $region15: #{tpu_custom_call.1} parent=1 // pred_check_branch
      %43 = sbr.rel (0) target = $region17
    $region16: #{tpu_custom_call.1} parent=1 // pred_region
      %s45 = ssub.s32 1024, 1024
      %46 = vsyncadd [#allocation6], %s45
      %s47 = sshll.u32 [#allocation7], 4
      %s48 = int_to_ptr.vmem [resolvable:$true] %s47
      %53 = dma.hbm_to_vmem [thread:$0]  %s3, 1024, %s48, [#allocation6], 64, 64, 4
    $region17: #{tpu_custom_call.1} parent=1 // pred_fallthru
      _
    // Predicated region
    $region18: #{tpu_custom_call.1} parent=1 // pred_check
      _
    $region19: #{tpu_custom_call.1} parent=1 // pred_check_branch
      %55 = sbr.rel (0) target = $region21
    $region20: #{tpu_custom_call.1} parent=1 // pred_region
      %56 = dma.done [#allocation3], 8192
    $region21: #{tpu_custom_call.1} parent=1 // pred_fallthru
      _
    // Predicated region
    $region22: #{tpu_custom_call.1} parent=1 // pred_check
      _
    $region23: #{tpu_custom_call.1} parent=1 // pred_check_branch
      %58 = sbr.rel (0) target = $region25
    $region24: #{tpu_custom_call.1} parent=1 // pred_region
      %59 = dma.done [#allocation6], 1024
    $region25: #{tpu_custom_call.1} parent=1 // pred_fallthru
      _
    // Predicated region
    $region26: #{tpu_custom_call.1} parent=1 // pred_check
      _
    $region27: #{tpu_custom_call.1} parent=1 // pred_check_branch
      %61 = sbr.rel (0) target = $region29
    $region28: #{tpu_custom_call.1} parent=1 // pred_region
      %62 = dma.done [#allocation6], 1024
    $region29: #{tpu_custom_call.1} parent=1 // pred_fallthru
      _
    %s63 = sadd.s32 0, 0
    %s64 = smul.u32 128, %s63
    %p66 = scmp.eq.s32.totalorder 0, 0
    // Predicated region
    $region30: #{tpu_custom_call.1} parent=1 // pred_check
      %p67 = pneg %p66
    $region31: #{tpu_custom_call.1} parent=1 // pred_check_branch
      %69 = sbr.rel (%p67) target = $region33
    $region32: #{tpu_custom_call.1} parent=1 // pred_region
      %70 = vst [vmem:[#allocation8] sm:$0xff] 0.0
    $region33: #{tpu_custom_call.1} parent=1 // pred_fallthru
      _
    %v71 = vld [vmem:[#allocation2] sm:$0xf]
    %v72 = vld [vmem:[#allocation2 + $0x4] sm:$0xf]
    %v73 = vld [vmem:[#allocation2 + $0x8] sm:$0xf]
    %v74 = vld [vmem:[#allocation2 + $0xc] sm:$0xf]
    %v75 = vld [vmem:[#allocation2 + $0x10] sm:$0xf]
    %v76 = vld [vmem:[#allocation2 + $0x14] sm:$0xf]
    %v77 = vld [vmem:[#allocation2 + $0x18] sm:$0xf]
    %v78 = vld [vmem:[#allocation2 + $0x1c] sm:$0xf]
    %v79 = vld [vmem:[#allocation2 + $0x20] sm:$0xf]
    %v80 = vld [vmem:[#allocation2 + $0x24] sm:$0xf]
    %v81 = vld [vmem:[#allocation2 + $0x28] sm:$0xf]
    %v82 = vld [vmem:[#allocation2 + $0x2c] sm:$0xf]
    %v83 = vld [vmem:[#allocation2 + $0x30] sm:$0xf]
    %v84 = vld [vmem:[#allocation2 + $0x34] sm:$0xf]
    %v85 = vld [vmem:[#allocation2 + $0x38] sm:$0xf]
    %v86 = vld [vmem:[#allocation2 + $0x3c] sm:$0xf]
    %v87 = vld [vmem:[#allocation2 + $0x40] sm:$0xf]
    %v88 = vld [vmem:[#allocation2 + $0x44] sm:$0xf]
    %v89 = vld [vmem:[#allocation2 + $0x48] sm:$0xf]
    %v90 = vld [vmem:[#allocation2 + $0x4c] sm:$0xf]
    %v91 = vld [vmem:[#allocation2 + $0x50] sm:$0xf]
    %v92 = vld [vmem:[#allocation2 + $0x54] sm:$0xf]
    %v93 = vld [vmem:[#allocation2 + $0x58] sm:$0xf]
    %v94 = vld [vmem:[#allocation2 + $0x5c] sm:$0xf]
    %v95 = vld [vmem:[#allocation2 + $0x60] sm:$0xf]
    %v96 = vld [vmem:[#allocation2 + $0x64] sm:$0xf]
    %v97 = vld [vmem:[#allocation2 + $0x68] sm:$0xf]
    %v98 = vld [vmem:[#allocation2 + $0x6c] sm:$0xf]
    %v99 = vld [vmem:[#allocation2 + $0x70] sm:$0xf]
    %v100 = vld [vmem:[#allocation2 + $0x74] sm:$0xf]
    %v101 = vld [vmem:[#allocation2 + $0x78] sm:$0xf]
    %v102 = vld [vmem:[#allocation2 + $0x7c] sm:$0xf]
    %v103 = vld [vmem:[#allocation2 + $0x80] sm:$0xf]
    %v104 = vld [vmem:[#allocation2 + $0x84] sm:$0xf]
    %v105 = vld [vmem:[#allocation2 + $0x88] sm:$0xf]
    %v106 = vld [vmem:[#allocation2 + $0x8c] sm:$0xf]
    %v107 = vld [vmem:[#allocation2 + $0x90] sm:$0xf]
    %v108 = vld [vmem:[#allocation2 + $0x94] sm:$0xf]
    %v109 = vld [vmem:[#allocation2 + $0x98] sm:$0xf]
    %v110 = vld [vmem:[#allocation2 + $0x9c] sm:$0xf]
    %v111 = vld [vmem:[#allocation2 + $0xa0] sm:$0xf]
    %v112 = vld [vmem:[#allocation2 + $0xa4] sm:$0xf]
    %v113 = vld [vmem:[#allocation2 + $0xa8] sm:$0xf]
    %v114 = vld [vmem:[#allocation2 + $0xac] sm:$0xf]
    %v115 = vld [vmem:[#allocation2 + $0xb0] sm:$0xf]
    %v116 = vld [vmem:[#allocation2 + $0xb4] sm:$0xf]
    %v117 = vld [vmem:[#allocation2 + $0xb8] sm:$0xf]
    %v118 = vld [vmem:[#allocation2 + $0xbc] sm:$0xf]
    %v119 = vld [vmem:[#allocation2 + $0xc0] sm:$0xf]
    %v120 = vld [vmem:[#allocation2 + $0xc4] sm:$0xf]
    %v121 = vld [vmem:[#allocation2 + $0xc8] sm:$0xf]
    %v122 = vld [vmem:[#allocation2 + $0xcc] sm:$0xf]
    %v123 = vld [vmem:[#allocation2 + $0xd0] sm:$0xf]
    %v124 = vld [vmem:[#allocation2 + $0xd4] sm:$0xf]
    %v125 = vld [vmem:[#allocation2 + $0xd8] sm:$0xf]
    %v126 = vld [vmem:[#allocation2 + $0xdc] sm:$0xf]
    %v127 = vld [vmem:[#allocation2 + $0xe0] sm:$0xf]
    %v128 = vld [vmem:[#allocation2 + $0xe4] sm:$0xf]
    %v129 = vld [vmem:[#allocation2 + $0xe8] sm:$0xf]
    %v130 = vld [vmem:[#allocation2 + $0xec] sm:$0xf]
    %v131 = vld [vmem:[#allocation2 + $0xf0] sm:$0xf]
    %v132 = vld [vmem:[#allocation2 + $0xf4] sm:$0xf]
    %v133 = vld [vmem:[#allocation2 + $0xf8] sm:$0xf]
    %v134 = vld [vmem:[#allocation2 + $0xfc] sm:$0xf]
    %v135 = vld [vmem:[#allocation2 + $0x100] sm:$0xf]
    %v136 = vld [vmem:[#allocation2 + $0x104] sm:$0xf]
    %v137 = vld [vmem:[#allocation2 + $0x108] sm:$0xf]
    %v138 = vld [vmem:[#allocation2 + $0x10c] sm:$0xf]
    %v139 = vld [vmem:[#allocation2 + $0x110] sm:$0xf]
    %v140 = vld [vmem:[#allocation2 + $0x114] sm:$0xf]
    %v141 = vld [vmem:[#allocation2 + $0x118] sm:$0xf]
    %v142 = vld [vmem:[#allocation2 + $0x11c] sm:$0xf]
    %v143 = vld [vmem:[#allocation2 + $0x120] sm:$0xf]
    %v144 = vld [vmem:[#allocation2 + $0x124] sm:$0xf]
    %v145 = vld [vmem:[#allocation2 + $0x128] sm:$0xf]
    %v146 = vld [vmem:[#allocation2 + $0x12c] sm:$0xf]
    %v147 = vld [vmem:[#allocation2 + $0x130] sm:$0xf]
    %v148 = vld [vmem:[#allocation2 + $0x134] sm:$0xf]
    %v149 = vld [vmem:[#allocation2 + $0x138] sm:$0xf]
    %v150 = vld [vmem:[#allocation2 + $0x13c] sm:$0xf]
    %v151 = vld [vmem:[#allocation2 + $0x140] sm:$0xf]
    %v152 = vld [vmem:[#allocation2 + $0x144] sm:$0xf]
    %v153 = vld [vmem:[#allocation2 + $0x148] sm:$0xf]
    %v154 = vld [vmem:[#allocation2 + $0x14c] sm:$0xf]
    %v155 = vld [vmem:[#allocation2 + $0x150] sm:$0xf]
    %v156 = vld [vmem:[#allocation2 + $0x154] sm:$0xf]
    %v157 = vld [vmem:[#allocation2 + $0x158] sm:$0xf]
    %v158 = vld [vmem:[#allocation2 + $0x15c] sm:$0xf]
    %v159 = vld [vmem:[#allocation2 + $0x160] sm:$0xf]
    %v160 = vld [vmem:[#allocation2 + $0x164] sm:$0xf]
    %v161 = vld [vmem:[#allocation2 + $0x168] sm:$0xf]
    %v162 = vld [vmem:[#allocation2 + $0x16c] sm:$0xf]
    %v163 = vld [vmem:[#allocation2 + $0x170] sm:$0xf]
    %v164 = vld [vmem:[#allocation2 + $0x174] sm:$0xf]
    %v165 = vld [vmem:[#allocation2 + $0x178] sm:$0xf]
    %v166 = vld [vmem:[#allocation2 + $0x17c] sm:$0xf]
    %v167 = vld [vmem:[#allocation2 + $0x180] sm:$0xf]
    %v168 = vld [vmem:[#allocation2 + $0x184] sm:$0xf]
    %v169 = vld [vmem:[#allocation2 + $0x188] sm:$0xf]
    %v170 = vld [vmem:[#allocation2 + $0x18c] sm:$0xf]
    %v171 = vld [vmem:[#allocation2 + $0x190] sm:$0xf]
    %v172 = vld [vmem:[#allocation2 + $0x194] sm:$0xf]
    %v173 = vld [vmem:[#allocation2 + $0x198] sm:$0xf]
    %v174 = vld [vmem:[#allocation2 + $0x19c] sm:$0xf]
    %v175 = vld [vmem:[#allocation2 + $0x1a0] sm:$0xf]
    %v176 = vld [vmem:[#allocation2 + $0x1a4] sm:$0xf]
    %v177 = vld [vmem:[#allocation2 + $0x1a8] sm:$0xf]
    %v178 = vld [vmem:[#allocation2 + $0x1ac] sm:$0xf]
    %v179 = vld [vmem:[#allocation2 + $0x1b0] sm:$0xf]
    %v180 = vld [vmem:[#allocation2 + $0x1b4] sm:$0xf]
    %v181 = vld [vmem:[#allocation2 + $0x1b8] sm:$0xf]
    %v182 = vld [vmem:[#allocation2 + $0x1bc] sm:$0xf]
    %v183 = vld [vmem:[#allocation2 + $0x1c0] sm:$0xf]
    %v184 = vld [vmem:[#allocation2 + $0x1c4] sm:$0xf]
    %v185 = vld [vmem:[#allocation2 + $0x1c8] sm:$0xf]
    %v186 = vld [vmem:[#allocation2 + $0x1cc] sm:$0xf]
    %v187 = vld [vmem:[#allocation2 + $0x1d0] sm:$0xf]
    %v188 = vld [vmem:[#allocation2 + $0x1d4] sm:$0xf]
    %v189 = vld [vmem:[#allocation2 + $0x1d8] sm:$0xf]
    %v190 = vld [vmem:[#allocation2 + $0x1dc] sm:$0xf]
    %v191 = vld [vmem:[#allocation2 + $0x1e0] sm:$0xf]
    %v192 = vld [vmem:[#allocation2 + $0x1e4] sm:$0xf]
    %v193 = vld [vmem:[#allocation2 + $0x1e8] sm:$0xf]
    %v194 = vld [vmem:[#allocation2 + $0x1ec] sm:$0xf]
    %v195 = vld [vmem:[#allocation2 + $0x1f0] sm:$0xf]
    %v196 = vld [vmem:[#allocation2 + $0x1f4] sm:$0xf]
    %v197 = vld [vmem:[#allocation2 + $0x1f8] sm:$0xf]
    %v198 = vld [vmem:[#allocation2 + $0x1fc] sm:$0xf]
    %v199 = vld [vmem:[#allocation5] sm:$0xf]
    %v200 = vld [vmem:[#allocation5 + $0x4] sm:$0xf]
    %v201 = vld [vmem:[#allocation5 + $0x8] sm:$0xf]
    %v202 = vld [vmem:[#allocation5 + $0xc] sm:$0xf]
    %v203 = vld [vmem:[#allocation5 + $0x10] sm:$0xf]
    %v204 = vld [vmem:[#allocation5 + $0x14] sm:$0xf]
    %v205 = vld [vmem:[#allocation5 + $0x18] sm:$0xf]
    %v206 = vld [vmem:[#allocation5 + $0x1c] sm:$0xf]
    %v207 = vld [vmem:[#allocation5 + $0x20] sm:$0xf]
    %v208 = vld [vmem:[#allocation5 + $0x24] sm:$0xf]
    %v209 = vld [vmem:[#allocation5 + $0x28] sm:$0xf]
    %v210 = vld [vmem:[#allocation5 + $0x2c] sm:$0xf]
    %v211 = vld [vmem:[#allocation5 + $0x30] sm:$0xf]
    %v212 = vld [vmem:[#allocation5 + $0x34] sm:$0xf]
    %v213 = vld [vmem:[#allocation5 + $0x38] sm:$0xf]
    %v214 = vld [vmem:[#allocation5 + $0x3c] sm:$0xf]
    %v215 = vld [vmem:[#allocation7] sm:$0xf]
    %v216 = vld [vmem:[#allocation7 + $0x4] sm:$0xf]
    %v217 = vld [vmem:[#allocation7 + $0x8] sm:$0xf]
    %v218 = vld [vmem:[#allocation7 + $0xc] sm:$0xf]
    %v219 = vld [vmem:[#allocation7 + $0x10] sm:$0xf]
    %v220 = vld [vmem:[#allocation7 + $0x14] sm:$0xf]
    %v221 = vld [vmem:[#allocation7 + $0x18] sm:$0xf]
    %v222 = vld [vmem:[#allocation7 + $0x1c] sm:$0xf]
    %v223 = vld [vmem:[#allocation7 + $0x20] sm:$0xf]
    %v224 = vld [vmem:[#allocation7 + $0x24] sm:$0xf]
    %v225 = vld [vmem:[#allocation7 + $0x28] sm:$0xf]
    %v226 = vld [vmem:[#allocation7 + $0x2c] sm:$0xf]
    %v227 = vld [vmem:[#allocation7 + $0x30] sm:$0xf]
    %v228 = vld [vmem:[#allocation7 + $0x34] sm:$0xf]
    %v229 = vld [vmem:[#allocation7 + $0x38] sm:$0xf]
    %v230 = vld [vmem:[#allocation7 + $0x3c] sm:$0xf]
    %v359 = vunpack.c.l.b16 %v71
    %v360 = vunpack.c.l.b16 %v72
    %v361 = vunpack.c.l.b16 %v73
    %v362 = vunpack.c.l.b16 %v74
    %v363 = vunpack.c.l.b16 %v75
    %v364 = vunpack.c.l.b16 %v76
    %v365 = vunpack.c.l.b16 %v77
    %v366 = vunpack.c.l.b16 %v78
    %v367 = vunpack.c.l.b16 %v79
    %v368 = vunpack.c.l.b16 %v80
    %v369 = vunpack.c.l.b16 %v81
    %v370 = vunpack.c.l.b16 %v82
    %v371 = vunpack.c.l.b16 %v83
    %v372 = vunpack.c.l.b16 %v84
    %v373 = vunpack.c.l.b16 %v85
    %v374 = vunpack.c.l.b16 %v86
    %v375 = vunpack.c.l.b16 %v87
    %v376 = vunpack.c.l.b16 %v88
    %v377 = vunpack.c.l.b16 %v89
    %v378 = vunpack.c.l.b16 %v90
    %v379 = vunpack.c.l.b16 %v91
    %v380 = vunpack.c.l.b16 %v92
    %v381 = vunpack.c.l.b16 %v93
    %v382 = vunpack.c.l.b16 %v94
    %v383 = vunpack.c.l.b16 %v95
    %v384 = vunpack.c.l.b16 %v96
    %v385 = vunpack.c.l.b16 %v97
    %v386 = vunpack.c.l.b16 %v98
    %v387 = vunpack.c.l.b16 %v99
    %v388 = vunpack.c.l.b16 %v100
    %v389 = vunpack.c.l.b16 %v101
    %v390 = vunpack.c.l.b16 %v102
    %v391 = vunpack.c.l.b16 %v103
    %v392 = vunpack.c.l.b16 %v104
    %v393 = vunpack.c.l.b16 %v105
    %v394 = vunpack.c.l.b16 %v106
    %v395 = vunpack.c.l.b16 %v107
    %v396 = vunpack.c.l.b16 %v108
    %v397 = vunpack.c.l.b16 %v109
    %v398 = vunpack.c.l.b16 %v110
    %v399 = vunpack.c.l.b16 %v111
    %v400 = vunpack.c.l.b16 %v112
    %v401 = vunpack.c.l.b16 %v113
    %v402 = vunpack.c.l.b16 %v114
    %v403 = vunpack.c.l.b16 %v115
    %v404 = vunpack.c.l.b16 %v116
    %v405 = vunpack.c.l.b16 %v117
    %v406 = vunpack.c.l.b16 %v118
    %v407 = vunpack.c.l.b16 %v119
    %v408 = vunpack.c.l.b16 %v120
    %v409 = vunpack.c.l.b16 %v121
    %v410 = vunpack.c.l.b16 %v122
    %v411 = vunpack.c.l.b16 %v123
    %v412 = vunpack.c.l.b16 %v124
    %v413 = vunpack.c.l.b16 %v125
    %v414 = vunpack.c.l.b16 %v126
    %v415 = vunpack.c.l.b16 %v127
    %v416 = vunpack.c.l.b16 %v128
    %v417 = vunpack.c.l.b16 %v129
    %v418 = vunpack.c.l.b16 %v130
    %v419 = vunpack.c.l.b16 %v131
    %v420 = vunpack.c.l.b16 %v132
    %v421 = vunpack.c.l.b16 %v133
    %v422 = vunpack.c.l.b16 %v134
    %v423 = vunpack.c.l.b16 %v135
    %v424 = vunpack.c.l.b16 %v136
    %v425 = vunpack.c.l.b16 %v137
    %v426 = vunpack.c.l.b16 %v138
    %v427 = vunpack.c.l.b16 %v139
    %v428 = vunpack.c.l.b16 %v140
    %v429 = vunpack.c.l.b16 %v141
    %v430 = vunpack.c.l.b16 %v142
    %v431 = vunpack.c.l.b16 %v143
    %v432 = vunpack.c.l.b16 %v144
    %v433 = vunpack.c.l.b16 %v145
    %v434 = vunpack.c.l.b16 %v146
    %v435 = vunpack.c.l.b16 %v147
    %v436 = vunpack.c.l.b16 %v148
    %v437 = vunpack.c.l.b16 %v149
    %v438 = vunpack.c.l.b16 %v150
    %v439 = vunpack.c.l.b16 %v151
    %v440 = vunpack.c.l.b16 %v152
    %v441 = vunpack.c.l.b16 %v153
    %v442 = vunpack.c.l.b16 %v154
    %v443 = vunpack.c.l.b16 %v155
    %v444 = vunpack.c.l.b16 %v156
    %v445 = vunpack.c.l.b16 %v157
    %v446 = vunpack.c.l.b16 %v158
    %v447 = vunpack.c.l.b16 %v159
    %v448 = vunpack.c.l.b16 %v160
    %v449 = vunpack.c.l.b16 %v161
    %v450 = vunpack.c.l.b16 %v162
    %v451 = vunpack.c.l.b16 %v163
    %v452 = vunpack.c.l.b16 %v164
    %v453 = vunpack.c.l.b16 %v165
    %v454 = vunpack.c.l.b16 %v166
    %v455 = vunpack.c.l.b16 %v167
    %v456 = vunpack.c.l.b16 %v168
    %v457 = vunpack.c.l.b16 %v169
    %v458 = vunpack.c.l.b16 %v170
    %v459 = vunpack.c.l.b16 %v171
    %v460 = vunpack.c.l.b16 %v172
    %v461 = vunpack.c.l.b16 %v173
    %v462 = vunpack.c.l.b16 %v174
    %v463 = vunpack.c.l.b16 %v175
    %v464 = vunpack.c.l.b16 %v176
    %v465 = vunpack.c.l.b16 %v177
    %v466 = vunpack.c.l.b16 %v178
    %v467 = vunpack.c.l.b16 %v179
    %v468 = vunpack.c.l.b16 %v180
    %v469 = vunpack.c.l.b16 %v181
    %v470 = vunpack.c.l.b16 %v182
    %v471 = vunpack.c.l.b16 %v183
    %v472 = vunpack.c.l.b16 %v184
    %v473 = vunpack.c.l.b16 %v185
    %v474 = vunpack.c.l.b16 %v186
    %v475 = vunpack.c.l.b16 %v187
    %v476 = vunpack.c.l.b16 %v188
    %v477 = vunpack.c.l.b16 %v189
    %v478 = vunpack.c.l.b16 %v190
    %v479 = vunpack.c.l.b16 %v191
    %v480 = vunpack.c.l.b16 %v192
    %v481 = vunpack.c.l.b16 %v193
    %v482 = vunpack.c.l.b16 %v194
    %v483 = vunpack.c.l.b16 %v195
    %v484 = vunpack.c.l.b16 %v196
    %v485 = vunpack.c.l.b16 %v197
    %v486 = vunpack.c.l.b16 %v198
    %v487 = vpack.c.b16 %v360, %v359
    %v488 = vpack.c.b16 %v362, %v361
    %v489 = vpack.c.b16 %v364, %v363
    %v490 = vpack.c.b16 %v366, %v365
    %v491 = vpack.c.b16 %v368, %v367
    %v492 = vpack.c.b16 %v370, %v369
    %v493 = vpack.c.b16 %v372, %v371
    %v494 = vpack.c.b16 %v374, %v373
    %v495 = vpack.c.b16 %v376, %v375
    %v496 = vpack.c.b16 %v378, %v377
    %v497 = vpack.c.b16 %v380, %v379
    %v498 = vpack.c.b16 %v382, %v381
    %v499 = vpack.c.b16 %v384, %v383
    %v500 = vpack.c.b16 %v386, %v385
    %v501 = vpack.c.b16 %v388, %v387
    %v502 = vpack.c.b16 %v390, %v389
    %v503 = vpack.c.b16 %v392, %v391
    %v504 = vpack.c.b16 %v394, %v393
    %v505 = vpack.c.b16 %v396, %v395
    %v506 = vpack.c.b16 %v398, %v397
    %v507 = vpack.c.b16 %v400, %v399
    %v508 = vpack.c.b16 %v402, %v401
    %v509 = vpack.c.b16 %v404, %v403
    %v510 = vpack.c.b16 %v406, %v405
    %v511 = vpack.c.b16 %v408, %v407
    %v512 = vpack.c.b16 %v410, %v409
    %v513 = vpack.c.b16 %v412, %v411
    %v514 = vpack.c.b16 %v414, %v413
    %v515 = vpack.c.b16 %v416, %v415
    %v516 = vpack.c.b16 %v418, %v417
    %v517 = vpack.c.b16 %v420, %v419
    %v518 = vpack.c.b16 %v422, %v421
    %v519 = vpack.c.b16 %v424, %v423
    %v520 = vpack.c.b16 %v426, %v425
    %v521 = vpack.c.b16 %v428, %v427
    %v522 = vpack.c.b16 %v430, %v429
    %v523 = vpack.c.b16 %v432, %v431
    %v524 = vpack.c.b16 %v434, %v433
    %v525 = vpack.c.b16 %v436, %v435
    %v526 = vpack.c.b16 %v438, %v437
    %v527 = vpack.c.b16 %v440, %v439
    %v528 = vpack.c.b16 %v442, %v441
    %v529 = vpack.c.b16 %v444, %v443
    %v530 = vpack.c.b16 %v446, %v445
    %v531 = vpack.c.b16 %v448, %v447
    %v532 = vpack.c.b16 %v450, %v449
    %v533 = vpack.c.b16 %v452, %v451
    %v534 = vpack.c.b16 %v454, %v453
    %v535 = vpack.c.b16 %v456, %v455
    %v536 = vpack.c.b16 %v458, %v457
    %v537 = vpack.c.b16 %v460, %v459
    %v538 = vpack.c.b16 %v462, %v461
    %v539 = vpack.c.b16 %v464, %v463
    %v540 = vpack.c.b16 %v466, %v465
    %v541 = vpack.c.b16 %v468, %v467
    %v542 = vpack.c.b16 %v470, %v469
    %v543 = vpack.c.b16 %v472, %v471
    %v544 = vpack.c.b16 %v474, %v473
    %v545 = vpack.c.b16 %v476, %v475
    %v546 = vpack.c.b16 %v478, %v477
    %v547 = vpack.c.b16 %v480, %v479
    %v548 = vpack.c.b16 %v482, %v481
    %v549 = vpack.c.b16 %v484, %v483
    %v550 = vpack.c.b16 %v486, %v485
    %v631 = vunpack.c.l.b16 %v215
    %v632 = vunpack.c.l.b16 %v216
    %v633 = vunpack.c.l.b16 %v217
    %v634 = vunpack.c.l.b16 %v218
    %v635 = vunpack.c.l.b16 %v219
    %v636 = vunpack.c.l.b16 %v220
    %v637 = vunpack.c.l.b16 %v221
    %v638 = vunpack.c.l.b16 %v222
    %v639 = vunpack.c.l.b16 %v223
    %v640 = vunpack.c.l.b16 %v224
    %v641 = vunpack.c.l.b16 %v225
    %v642 = vunpack.c.l.b16 %v226
    %v643 = vunpack.c.l.b16 %v227
    %v644 = vunpack.c.l.b16 %v228
    %v645 = vunpack.c.l.b16 %v229
    %v646 = vunpack.c.l.b16 %v230
    %v647 = vpack.c.b16 %v632, %v631
    %v648 = vpack.c.b16 %v634, %v633
    %v649 = vpack.c.b16 %v636, %v635
    %v650 = vpack.c.b16 %v638, %v637
    %v651 = vpack.c.b16 %v640, %v639
    %v652 = vpack.c.b16 %v642, %v641
    %v653 = vpack.c.b16 %v644, %v643
    %v654 = vpack.c.b16 %v646, %v645
    %663 = vmatprep.subr.bf16.mxu0 0
    %664 = vmatpush1.bf16.msra.mxu0 %v654
    %665 = vmatprep.subr.bf16.mxu0 0
    %666 = vmatpush1.bf16.msra.mxu0 %v653
    %667 = vmatprep.subr.bf16.mxu0 0
    %668 = vmatpush1.bf16.msra.mxu0 %v652
    %669 = vmatprep.subr.bf16.mxu0 0
    %670 = vmatpush1.bf16.msra.mxu0 %v651
    %671 = vmatprep.subr.bf16.mxu0 0
    %672 = vmatpush1.bf16.msra.mxu0 %v650
    %673 = vmatprep.subr.bf16.mxu0 0
    %674 = vmatpush1.bf16.msra.mxu0 %v649
    %675 = vmatprep.subr.bf16.mxu0 0
    %676 = vmatpush1.bf16.msra.mxu0 %v648
    %677 = vmatprep.subr.bf16.mxu0 0
    %678 = vmatpush1.bf16.msra.mxu0 %v647
    %679 = vmatprep.subr.bf16.mxu0 0
    %680 = vmatpush2.bf16.msra.mxu0 0
    %681 = vmatprep.subr.bf16.mxu0 0
    %682 = vmatpush2.bf16.msra.mxu0 0
    %683 = vmatprep.subr.bf16.mxu0 0
    %684 = vmatpush2.bf16.msra.mxu0 0
    %685 = vmatprep.subr.bf16.mxu0 0
    %686 = vmatpush2.bf16.msra.mxu0 0
    %687 = vmatprep.subr.bf16.mxu0 0
    %688 = vmatpush2.bf16.msra.mxu0 0
    %689 = vmatprep.subr.bf16.mxu0 0
    %690 = vmatpush2.bf16.msra.mxu0 0
    %691 = vmatprep.subr.bf16.mxu0 0
    %692 = vmatpush2.bf16.msra.mxu0 0
    %693 = vmatprep.subr.bf16.mxu0 0
    %694 = vmatpush2.bf16.msra.mxu0 0
    %695 = vmatprep.mubr.bf16.mxu0 0
    %696 = vmatmul.mubr.bf16.gmra.mxu0 %v487
    %v697 = vpop.f32.mrf.mxu0
    %v698 = vadd.f32 0.0, %v697
    %v699 = vpop.f32.mrf.mxu0
    %v700 = vpop.f32.mrf.mxu0
    %v701 = vadd.f32 0.0, %v700
    %v702 = vpop.f32.mrf.mxu0
    %703 = vmatprep.mubr.bf16.mxu0 0
    %704 = vmatmul.mubr.bf16.gmra.mxu0 %v488
    %v705 = vpop.f32.mrf.mxu0
    %v706 = vadd.f32 0.0, %v705
    %v707 = vpop.f32.mrf.mxu0
    %v708 = vpop.f32.mrf.mxu0
    %v709 = vadd.f32 0.0, %v708
    %v710 = vpop.f32.mrf.mxu0
    %711 = vmatprep.mubr.bf16.mxu0 0
    %712 = vmatmul.mubr.bf16.gmra.mxu0 %v489
    %v713 = vpop.f32.mrf.mxu0
    %v714 = vadd.f32 0.0, %v713
    %v715 = vpop.f32.mrf.mxu0
    %v716 = vpop.f32.mrf.mxu0
    %v717 = vadd.f32 0.0, %v716
    %v718 = vpop.f32.mrf.mxu0
    %719 = vmatprep.mubr.bf16.mxu0 0
    %720 = vmatmul.mubr.bf16.gmra.mxu0 %v490
    %v721 = vpop.f32.mrf.mxu0
    %v722 = vadd.f32 0.0, %v721
    %v723 = vpop.f32.mrf.mxu0
    %v724 = vpop.f32.mrf.mxu0
    %v725 = vadd.f32 0.0, %v724
    %v726 = vpop.f32.mrf.mxu0
    %727 = vmatprep.mubr.bf16.mxu0 0
    %728 = vmatmul.mubr.bf16.gmra.mxu0 %v491
    %v729 = vpop.f32.mrf.mxu0
    %v730 = vadd.f32 0.0, %v729
    %v731 = vpop.f32.mrf.mxu0
    %v732 = vpop.f32.mrf.mxu0
    %v733 = vadd.f32 0.0, %v732
    %v734 = vpop.f32.mrf.mxu0
    %735 = vmatprep.mubr.bf16.mxu0 0
    %736 = vmatmul.mubr.bf16.gmra.mxu0 %v492
    %v737 = vpop.f32.mrf.mxu0
    %v738 = vadd.f32 0.0, %v737
    %v739 = vpop.f32.mrf.mxu0
    %v740 = vpop.f32.mrf.mxu0
    %v741 = vadd.f32 0.0, %v740
    %v742 = vpop.f32.mrf.mxu0
    %743 = vmatprep.mubr.bf16.mxu0 0
    %744 = vmatmul.mubr.bf16.gmra.mxu0 %v493
    %v745 = vpop.f32.mrf.mxu0
    %v746 = vadd.f32 0.0, %v745
    %v747 = vpop.f32.mrf.mxu0
    %v748 = vpop.f32.mrf.mxu0
    %v749 = vadd.f32 0.0, %v748
    %v750 = vpop.f32.mrf.mxu0
    %751 = vmatprep.mubr.bf16.mxu0 0
    %752 = vmatmul.mubr.bf16.gmra.mxu0 %v494
    %v753 = vpop.f32.mrf.mxu0
    %v754 = vadd.f32 0.0, %v753
    %v755 = vpop.f32.mrf.mxu0
    %v756 = vpop.f32.mrf.mxu0
    %v757 = vadd.f32 0.0, %v756
    %v758 = vpop.f32.mrf.mxu0
    %759 = vmatprep.mubr.bf16.mxu0 0
    %760 = vmatmul.mubr.bf16.gmra.mxu0 %v495
    %v761 = vpop.f32.mrf.mxu0
    %v762 = vadd.f32 0.0, %v761
    %v763 = vpop.f32.mrf.mxu0
    %v764 = vpop.f32.mrf.mxu0
    %v765 = vadd.f32 0.0, %v764
    %v766 = vpop.f32.mrf.mxu0
    %767 = vmatprep.mubr.bf16.mxu0 0
    %768 = vmatmul.mubr.bf16.gmra.mxu0 %v496
    %v769 = vpop.f32.mrf.mxu0
    %v770 = vadd.f32 0.0, %v769
    %v771 = vpop.f32.mrf.mxu0
    %v772 = vpop.f32.mrf.mxu0
    %v773 = vadd.f32 0.0, %v772
    %v774 = vpop.f32.mrf.mxu0
    %775 = vmatprep.mubr.bf16.mxu0 0
    %776 = vmatmul.mubr.bf16.gmra.mxu0 %v497
    %v777 = vpop.f32.mrf.mxu0
    %v778 = vadd.f32 0.0, %v777
    %v779 = vpop.f32.mrf.mxu0
    %v780 = vpop.f32.mrf.mxu0
    %v781 = vadd.f32 0.0, %v780
    %v782 = vpop.f32.mrf.mxu0
    %783 = vmatprep.mubr.bf16.mxu0 0
    %784 = vmatmul.mubr.bf16.gmra.mxu0 %v498
    %v785 = vpop.f32.mrf.mxu0
    %v786 = vadd.f32 0.0, %v785
    %v787 = vpop.f32.mrf.mxu0
    %v788 = vpop.f32.mrf.mxu0
    %v789 = vadd.f32 0.0, %v788
    %v790 = vpop.f32.mrf.mxu0
    %791 = vmatprep.mubr.bf16.mxu0 0
    %792 = vmatmul.mubr.bf16.gmra.mxu0 %v499
    %v793 = vpop.f32.mrf.mxu0
    %v794 = vadd.f32 0.0, %v793
    %v795 = vpop.f32.mrf.mxu0
    %v796 = vpop.f32.mrf.mxu0
    %v797 = vadd.f32 0.0, %v796
    %v798 = vpop.f32.mrf.mxu0
    %799 = vmatprep.mubr.bf16.mxu0 0
    %800 = vmatmul.mubr.bf16.gmra.mxu0 %v500
    %v801 = vpop.f32.mrf.mxu0
    %v802 = vadd.f32 0.0, %v801
    %v803 = vpop.f32.mrf.mxu0
    %v804 = vpop.f32.mrf.mxu0
    %v805 = vadd.f32 0.0, %v804
    %v806 = vpop.f32.mrf.mxu0
    %807 = vmatprep.mubr.bf16.mxu0 0
    %808 = vmatmul.mubr.bf16.gmra.mxu0 %v501
    %v809 = vpop.f32.mrf.mxu0
    %v810 = vadd.f32 0.0, %v809
    %v811 = vpop.f32.mrf.mxu0
    %v812 = vpop.f32.mrf.mxu0
    %v813 = vadd.f32 0.0, %v812
    %v814 = vpop.f32.mrf.mxu0
    %815 = vmatprep.mubr.bf16.mxu0 0
    %816 = vmatmul.mubr.bf16.gmra.mxu0 %v502
    %v817 = vpop.f32.mrf.mxu0
    %v818 = vadd.f32 0.0, %v817
    %v819 = vpop.f32.mrf.mxu0
    %v820 = vpop.f32.mrf.mxu0
    %v821 = vadd.f32 0.0, %v820
    %v822 = vpop.f32.mrf.mxu0
    %823 = vmatprep.mubr.bf16.mxu0 0
    %824 = vmatmul.mubr.bf16.gmra.mxu0 %v503
    %v825 = vpop.f32.mrf.mxu0
    %v826 = vadd.f32 0.0, %v825
    %v827 = vpop.f32.mrf.mxu0
    %v828 = vpop.f32.mrf.mxu0
    %v829 = vadd.f32 0.0, %v828
    %v830 = vpop.f32.mrf.mxu0
    %831 = vmatprep.mubr.bf16.mxu0 0
    %832 = vmatmul.mubr.bf16.gmra.mxu0 %v504
    %v833 = vpop.f32.mrf.mxu0
    %v834 = vadd.f32 0.0, %v833
    %v835 = vpop.f32.mrf.mxu0
    %v836 = vpop.f32.mrf.mxu0
    %v837 = vadd.f32 0.0, %v836
    %v838 = vpop.f32.mrf.mxu0
    %839 = vmatprep.mubr.bf16.mxu0 0
    %840 = vmatmul.mubr.bf16.gmra.mxu0 %v505
    %v841 = vpop.f32.mrf.mxu0
    %v842 = vadd.f32 0.0, %v841
    %v843 = vpop.f32.mrf.mxu0
    %v844 = vpop.f32.mrf.mxu0
    %v845 = vadd.f32 0.0, %v844
    %v846 = vpop.f32.mrf.mxu0
    %847 = vmatprep.mubr.bf16.mxu0 0
    %848 = vmatmul.mubr.bf16.gmra.mxu0 %v506
    %v849 = vpop.f32.mrf.mxu0
    %v850 = vadd.f32 0.0, %v849
    %v851 = vpop.f32.mrf.mxu0
    %v852 = vpop.f32.mrf.mxu0
    %v853 = vadd.f32 0.0, %v852
    %v854 = vpop.f32.mrf.mxu0
    %855 = vmatprep.mubr.bf16.mxu0 0
    %856 = vmatmul.mubr.bf16.gmra.mxu0 %v507
    %v857 = vpop.f32.mrf.mxu0
    %v858 = vadd.f32 0.0, %v857
    %v859 = vpop.f32.mrf.mxu0
    %v860 = vpop.f32.mrf.mxu0
    %v861 = vadd.f32 0.0, %v860
    %v862 = vpop.f32.mrf.mxu0
    %863 = vmatprep.mubr.bf16.mxu0 0
    %864 = vmatmul.mubr.bf16.gmra.mxu0 %v508
    %v865 = vpop.f32.mrf.mxu0
    %v866 = vadd.f32 0.0, %v865
    %v867 = vpop.f32.mrf.mxu0
    %v868 = vpop.f32.mrf.mxu0
    %v869 = vadd.f32 0.0, %v868
    %v870 = vpop.f32.mrf.mxu0
    %871 = vmatprep.mubr.bf16.mxu0 0
    %872 = vmatmul.mubr.bf16.gmra.mxu0 %v509
    %v873 = vpop.f32.mrf.mxu0
    %v874 = vadd.f32 0.0, %v873
    %v875 = vpop.f32.mrf.mxu0
    %v876 = vpop.f32.mrf.mxu0
    %v877 = vadd.f32 0.0, %v876
    %v878 = vpop.f32.mrf.mxu0
    %879 = vmatprep.mubr.bf16.mxu0 0
    %880 = vmatmul.mubr.bf16.gmra.mxu0 %v510
    %v881 = vpop.f32.mrf.mxu0
    %v882 = vadd.f32 0.0, %v881
    %v883 = vpop.f32.mrf.mxu0
    %v884 = vpop.f32.mrf.mxu0
    %v885 = vadd.f32 0.0, %v884
    %v886 = vpop.f32.mrf.mxu0
    %887 = vmatprep.mubr.bf16.mxu0 0
    %888 = vmatmul.mubr.bf16.gmra.mxu0 %v511
    %v889 = vpop.f32.mrf.mxu0
    %v890 = vadd.f32 0.0, %v889
    %v891 = vpop.f32.mrf.mxu0
    %v892 = vpop.f32.mrf.mxu0
    %v893 = vadd.f32 0.0, %v892
    %v894 = vpop.f32.mrf.mxu0
    %895 = vmatprep.mubr.bf16.mxu0 0
    %896 = vmatmul.mubr.bf16.gmra.mxu0 %v512
    %v897 = vpop.f32.mrf.mxu0
    %v898 = vadd.f32 0.0, %v897
    %v899 = vpop.f32.mrf.mxu0
    %v900 = vpop.f32.mrf.mxu0
    %v901 = vadd.f32 0.0, %v900
    %v902 = vpop.f32.mrf.mxu0
    %903 = vmatprep.mubr.bf16.mxu0 0
    %904 = vmatmul.mubr.bf16.gmra.mxu0 %v513
    %v905 = vpop.f32.mrf.mxu0
    %v906 = vadd.f32 0.0, %v905
    %v907 = vpop.f32.mrf.mxu0
    %v908 = vpop.f32.mrf.mxu0
    %v909 = vadd.f32 0.0, %v908
    %v910 = vpop.f32.mrf.mxu0
    %911 = vmatprep.mubr.bf16.mxu0 0
    %912 = vmatmul.mubr.bf16.gmra.mxu0 %v514
    %v913 = vpop.f32.mrf.mxu0
    %v914 = vadd.f32 0.0, %v913
    %v915 = vpop.f32.mrf.mxu0
    %v916 = vpop.f32.mrf.mxu0
    %v917 = vadd.f32 0.0, %v916
    %v918 = vpop.f32.mrf.mxu0
    %919 = vmatprep.mubr.bf16.mxu0 0
    %920 = vmatmul.mubr.bf16.gmra.mxu0 %v515
    %v921 = vpop.f32.mrf.mxu0
    %v922 = vadd.f32 0.0, %v921
    %v923 = vpop.f32.mrf.mxu0
    %v924 = vpop.f32.mrf.mxu0
    %v925 = vadd.f32 0.0, %v924
    %v926 = vpop.f32.mrf.mxu0
    %927 = vmatprep.mubr.bf16.mxu0 0
    %928 = vmatmul.mubr.bf16.gmra.mxu0 %v516
    %v929 = vpop.f32.mrf.mxu0
    %v930 = vadd.f32 0.0, %v929
    %v931 = vpop.f32.mrf.mxu0
    %v932 = vpop.f32.mrf.mxu0
    %v933 = vadd.f32 0.0, %v932
    %v934 = vpop.f32.mrf.mxu0
    %935 = vmatprep.mubr.bf16.mxu0 0
    %936 = vmatmul.mubr.bf16.gmra.mxu0 %v517
    %v937 = vpop.f32.mrf.mxu0
    %v938 = vadd.f32 0.0, %v937
    %v939 = vpop.f32.mrf.mxu0
    %v940 = vpop.f32.mrf.mxu0
    %v941 = vadd.f32 0.0, %v940
    %v942 = vpop.f32.mrf.mxu0
    %943 = vmatprep.mubr.bf16.mxu0 0
    %944 = vmatmul.mubr.bf16.gmra.mxu0 %v518
    %v945 = vpop.f32.mrf.mxu0
    %v946 = vadd.f32 0.0, %v945
    %v947 = vpop.f32.mrf.mxu0
    %v948 = vpop.f32.mrf.mxu0
    %v949 = vadd.f32 0.0, %v948
    %v950 = vpop.f32.mrf.mxu0
    %951 = vmatprep.mubr.bf16.mxu0 0
    %952 = vmatmul.mubr.bf16.gmra.mxu0 %v519
    %v953 = vpop.f32.mrf.mxu0
    %v954 = vadd.f32 0.0, %v953
    %v955 = vpop.f32.mrf.mxu0
    %v956 = vpop.f32.mrf.mxu0
    %v957 = vadd.f32 0.0, %v956
    %v958 = vpop.f32.mrf.mxu0
    %959 = vmatprep.mubr.bf16.mxu0 0
    %960 = vmatmul.mubr.bf16.gmra.mxu0 %v520
    %v961 = vpop.f32.mrf.mxu0
    %v962 = vadd.f32 0.0, %v961
    %v963 = vpop.f32.mrf.mxu0
    %v964 = vpop.f32.mrf.mxu0
    %v965 = vadd.f32 0.0, %v964
    %v966 = vpop.f32.mrf.mxu0
    %967 = vmatprep.mubr.bf16.mxu0 0
    %968 = vmatmul.mubr.bf16.gmra.mxu0 %v521
    %v969 = vpop.f32.mrf.mxu0
    %v970 = vadd.f32 0.0, %v969
    %v971 = vpop.f32.mrf.mxu0
    %v972 = vpop.f32.mrf.mxu0
    %v973 = vadd.f32 0.0, %v972
    %v974 = vpop.f32.mrf.mxu0
    %975 = vmatprep.mubr.bf16.mxu0 0
    %976 = vmatmul.mubr.bf16.gmra.mxu0 %v522
    %v977 = vpop.f32.mrf.mxu0
    %v978 = vadd.f32 0.0, %v977
    %v979 = vpop.f32.mrf.mxu0
    %v980 = vpop.f32.mrf.mxu0
    %v981 = vadd.f32 0.0, %v980
    %v982 = vpop.f32.mrf.mxu0
    %983 = vmatprep.mubr.bf16.mxu0 0
    %984 = vmatmul.mubr.bf16.gmra.mxu0 %v523
    %v985 = vpop.f32.mrf.mxu0
    %v986 = vadd.f32 0.0, %v985
    %v987 = vpop.f32.mrf.mxu0
    %v988 = vpop.f32.mrf.mxu0
    %v989 = vadd.f32 0.0, %v988
    %v990 = vpop.f32.mrf.mxu0
    %991 = vmatprep.mubr.bf16.mxu0 0
    %992 = vmatmul.mubr.bf16.gmra.mxu0 %v524
    %v993 = vpop.f32.mrf.mxu0
    %v994 = vadd.f32 0.0, %v993
    %v995 = vpop.f32.mrf.mxu0
    %v996 = vpop.f32.mrf.mxu0
    %v997 = vadd.f32 0.0, %v996
    %v998 = vpop.f32.mrf.mxu0
    %999 = vmatprep.mubr.bf16.mxu0 0
    %1000 = vmatmul.mubr.bf16.gmra.mxu0 %v525
    %v1001 = vpop.f32.mrf.mxu0
    %v1002 = vadd.f32 0.0, %v1001
    %v1003 = vpop.f32.mrf.mxu0
    %v1004 = vpop.f32.mrf.mxu0
    %v1005 = vadd.f32 0.0, %v1004
    %v1006 = vpop.f32.mrf.mxu0
    %1007 = vmatprep.mubr.bf16.mxu0 0
    %1008 = vmatmul.mubr.bf16.gmra.mxu0 %v526
    %v1009 = vpop.f32.mrf.mxu0
    %v1010 = vadd.f32 0.0, %v1009
    %v1011 = vpop.f32.mrf.mxu0
    %v1012 = vpop.f32.mrf.mxu0
    %v1013 = vadd.f32 0.0, %v1012
    %v1014 = vpop.f32.mrf.mxu0
    %1015 = vmatprep.mubr.bf16.mxu0 0
    %1016 = vmatmul.mubr.bf16.gmra.mxu0 %v527
    %v1017 = vpop.f32.mrf.mxu0
    %v1018 = vadd.f32 0.0, %v1017
    %v1019 = vpop.f32.mrf.mxu0
    %v1020 = vpop.f32.mrf.mxu0
    %v1021 = vadd.f32 0.0, %v1020
    %v1022 = vpop.f32.mrf.mxu0
    %1023 = vmatprep.mubr.bf16.mxu0 0
    %1024 = vmatmul.mubr.bf16.gmra.mxu0 %v528
    %v1025 = vpop.f32.mrf.mxu0
    %v1026 = vadd.f32 0.0, %v1025
    %v1027 = vpop.f32.mrf.mxu0
    %v1028 = vpop.f32.mrf.mxu0
    %v1029 = vadd.f32 0.0, %v1028
    %v1030 = vpop.f32.mrf.mxu0
    %1031 = vmatprep.mubr.bf16.mxu0 0
    %1032 = vmatmul.mubr.bf16.gmra.mxu0 %v529
    %v1033 = vpop.f32.mrf.mxu0
    %v1034 = vadd.f32 0.0, %v1033
    %v1035 = vpop.f32.mrf.mxu0
    %v1036 = vpop.f32.mrf.mxu0
    %v1037 = vadd.f32 0.0, %v1036
    %v1038 = vpop.f32.mrf.mxu0
    %1039 = vmatprep.mubr.bf16.mxu0 0
    %1040 = vmatmul.mubr.bf16.gmra.mxu0 %v530
    %v1041 = vpop.f32.mrf.mxu0
    %v1042 = vadd.f32 0.0, %v1041
    %v1043 = vpop.f32.mrf.mxu0
    %v1044 = vpop.f32.mrf.mxu0
    %v1045 = vadd.f32 0.0, %v1044
    %v1046 = vpop.f32.mrf.mxu0
    %1047 = vmatprep.mubr.bf16.mxu0 0
    %1048 = vmatmul.mubr.bf16.gmra.mxu0 %v531
    %v1049 = vpop.f32.mrf.mxu0
    %v1050 = vadd.f32 0.0, %v1049
    %v1051 = vpop.f32.mrf.mxu0
    %v1052 = vpop.f32.mrf.mxu0
    %v1053 = vadd.f32 0.0, %v1052
    %v1054 = vpop.f32.mrf.mxu0
    %1055 = vmatprep.mubr.bf16.mxu0 0
    %1056 = vmatmul.mubr.bf16.gmra.mxu0 %v532
    %v1057 = vpop.f32.mrf.mxu0
    %v1058 = vadd.f32 0.0, %v1057
    %v1059 = vpop.f32.mrf.mxu0
    %v1060 = vpop.f32.mrf.mxu0
    %v1061 = vadd.f32 0.0, %v1060
    %v1062 = vpop.f32.mrf.mxu0
    %1063 = vmatprep.mubr.bf16.mxu0 0
    %1064 = vmatmul.mubr.bf16.gmra.mxu0 %v533
    %v1065 = vpop.f32.mrf.mxu0
    %v1066 = vadd.f32 0.0, %v1065
    %v1067 = vpop.f32.mrf.mxu0
    %v1068 = vpop.f32.mrf.mxu0
    %v1069 = vadd.f32 0.0, %v1068
    %v1070 = vpop.f32.mrf.mxu0
    %1071 = vmatprep.mubr.bf16.mxu0 0
    %1072 = vmatmul.mubr.bf16.gmra.mxu0 %v534
    %v1073 = vpop.f32.mrf.mxu0
    %v1074 = vadd.f32 0.0, %v1073
    %v1075 = vpop.f32.mrf.mxu0
    %v1076 = vpop.f32.mrf.mxu0
    %v1077 = vadd.f32 0.0, %v1076
    %v1078 = vpop.f32.mrf.mxu0
    %1079 = vmatprep.mubr.bf16.mxu0 0
    %1080 = vmatmul.mubr.bf16.gmra.mxu0 %v535
    %v1081 = vpop.f32.mrf.mxu0
    %v1082 = vadd.f32 0.0, %v1081
    %v1083 = vpop.f32.mrf.mxu0
    %v1084 = vpop.f32.mrf.mxu0
    %v1085 = vadd.f32 0.0, %v1084
    %v1086 = vpop.f32.mrf.mxu0
    %1087 = vmatprep.mubr.bf16.mxu0 0
    %1088 = vmatmul.mubr.bf16.gmra.mxu0 %v536
    %v1089 = vpop.f32.mrf.mxu0
    %v1090 = vadd.f32 0.0, %v1089
    %v1091 = vpop.f32.mrf.mxu0
    %v1092 = vpop.f32.mrf.mxu0
    %v1093 = vadd.f32 0.0, %v1092
    %v1094 = vpop.f32.mrf.mxu0
    %1095 = vmatprep.mubr.bf16.mxu0 0
    %1096 = vmatmul.mubr.bf16.gmra.mxu0 %v537
    %v1097 = vpop.f32.mrf.mxu0
    %v1098 = vadd.f32 0.0, %v1097
    %v1099 = vpop.f32.mrf.mxu0
    %v1100 = vpop.f32.mrf.mxu0
    %v1101 = vadd.f32 0.0, %v1100
    %v1102 = vpop.f32.mrf.mxu0
    %1103 = vmatprep.mubr.bf16.mxu0 0
    %1104 = vmatmul.mubr.bf16.gmra.mxu0 %v538
    %v1105 = vpop.f32.mrf.mxu0
    %v1106 = vadd.f32 0.0, %v1105
    %v1107 = vpop.f32.mrf.mxu0
    %v1108 = vpop.f32.mrf.mxu0
    %v1109 = vadd.f32 0.0, %v1108
    %v1110 = vpop.f32.mrf.mxu0
    %1111 = vmatprep.mubr.bf16.mxu0 0
    %1112 = vmatmul.mubr.bf16.gmra.mxu0 %v539
    %v1113 = vpop.f32.mrf.mxu0
    %v1114 = vadd.f32 0.0, %v1113
    %v1115 = vpop.f32.mrf.mxu0
    %v1116 = vpop.f32.mrf.mxu0
    %v1117 = vadd.f32 0.0, %v1116
    %v1118 = vpop.f32.mrf.mxu0
    %1119 = vmatprep.mubr.bf16.mxu0 0
    %1120 = vmatmul.mubr.bf16.gmra.mxu0 %v540
    %v1121 = vpop.f32.mrf.mxu0
    %v1122 = vadd.f32 0.0, %v1121
    %v1123 = vpop.f32.mrf.mxu0
    %v1124 = vpop.f32.mrf.mxu0
    %v1125 = vadd.f32 0.0, %v1124
    %v1126 = vpop.f32.mrf.mxu0
    %1127 = vmatprep.mubr.bf16.mxu0 0
    %1128 = vmatmul.mubr.bf16.gmra.mxu0 %v541
    %v1129 = vpop.f32.mrf.mxu0
    %v1130 = vadd.f32 0.0, %v1129
    %v1131 = vpop.f32.mrf.mxu0
    %v1132 = vpop.f32.mrf.mxu0
    %v1133 = vadd.f32 0.0, %v1132
    %v1134 = vpop.f32.mrf.mxu0
    %1135 = vmatprep.mubr.bf16.mxu0 0
    %1136 = vmatmul.mubr.bf16.gmra.mxu0 %v542
    %v1137 = vpop.f32.mrf.mxu0
    %v1138 = vadd.f32 0.0, %v1137
    %v1139 = vpop.f32.mrf.mxu0
    %v1140 = vpop.f32.mrf.mxu0
    %v1141 = vadd.f32 0.0, %v1140
    %v1142 = vpop.f32.mrf.mxu0
    %1143 = vmatprep.mubr.bf16.mxu0 0
    %1144 = vmatmul.mubr.bf16.gmra.mxu0 %v543
    %v1145 = vpop.f32.mrf.mxu0
    %v1146 = vadd.f32 0.0, %v1145
    %v1147 = vpop.f32.mrf.mxu0
    %v1148 = vpop.f32.mrf.mxu0
    %v1149 = vadd.f32 0.0, %v1148
    %v1150 = vpop.f32.mrf.mxu0
    %1151 = vmatprep.mubr.bf16.mxu0 0
    %1152 = vmatmul.mubr.bf16.gmra.mxu0 %v544
    %v1153 = vpop.f32.mrf.mxu0
    %v1154 = vadd.f32 0.0, %v1153
    %v1155 = vpop.f32.mrf.mxu0
    %v1156 = vpop.f32.mrf.mxu0
    %v1157 = vadd.f32 0.0, %v1156
    %v1158 = vpop.f32.mrf.mxu0
    %1159 = vmatprep.mubr.bf16.mxu0 0
    %1160 = vmatmul.mubr.bf16.gmra.mxu0 %v545
    %v1161 = vpop.f32.mrf.mxu0
    %v1162 = vadd.f32 0.0, %v1161
    %v1163 = vpop.f32.mrf.mxu0
    %v1164 = vpop.f32.mrf.mxu0
    %v1165 = vadd.f32 0.0, %v1164
    %v1166 = vpop.f32.mrf.mxu0
    %1167 = vmatprep.mubr.bf16.mxu0 0
    %1168 = vmatmul.mubr.bf16.gmra.mxu0 %v546
    %v1169 = vpop.f32.mrf.mxu0
    %v1170 = vadd.f32 0.0, %v1169
    %v1171 = vpop.f32.mrf.mxu0
    %v1172 = vpop.f32.mrf.mxu0
    %v1173 = vadd.f32 0.0, %v1172
    %v1174 = vpop.f32.mrf.mxu0
    %1175 = vmatprep.mubr.bf16.mxu0 0
    %1176 = vmatmul.mubr.bf16.gmra.mxu0 %v547
    %v1177 = vpop.f32.mrf.mxu0
    %v1178 = vadd.f32 0.0, %v1177
    %v1179 = vpop.f32.mrf.mxu0
    %v1180 = vpop.f32.mrf.mxu0
    %v1181 = vadd.f32 0.0, %v1180
    %v1182 = vpop.f32.mrf.mxu0
    %1183 = vmatprep.mubr.bf16.mxu0 0
    %1184 = vmatmul.mubr.bf16.gmra.mxu0 %v548
    %v1185 = vpop.f32.mrf.mxu0
    %v1186 = vadd.f32 0.0, %v1185
    %v1187 = vpop.f32.mrf.mxu0
    %v1188 = vpop.f32.mrf.mxu0
    %v1189 = vadd.f32 0.0, %v1188
    %v1190 = vpop.f32.mrf.mxu0
    %1191 = vmatprep.mubr.bf16.mxu0 0
    %1192 = vmatmul.mubr.bf16.gmra.mxu0 %v549
    %v1193 = vpop.f32.mrf.mxu0
    %v1194 = vadd.f32 0.0, %v1193
    %v1195 = vpop.f32.mrf.mxu0
    %v1196 = vpop.f32.mrf.mxu0
    %v1197 = vadd.f32 0.0, %v1196
    %v1198 = vpop.f32.mrf.mxu0
    %1199 = vmatprep.mubr.bf16.mxu0 0
    %1200 = vmatmul.mubr.bf16.gmra.mxu0 %v550
    %v1201 = vpop.f32.mrf.mxu0
    %v1202 = vadd.f32 0.0, %v1201
    %v1203 = vpop.f32.mrf.mxu0
    %v1204 = vpop.f32.mrf.mxu0
    %v1205 = vadd.f32 0.0, %v1204
    %v1206 = vpop.f32.mrf.mxu0
    %1207 = vdwg.mxu0
    %v1224 = vunpack.c.l.b16 %v199
    %v1225 = vunpack.c.l.b16 %v200
    %v1226 = vunpack.c.l.b16 %v201
    %v1227 = vunpack.c.l.b16 %v202
    %v1228 = vunpack.c.l.b16 %v203
    %v1229 = vunpack.c.l.b16 %v204
    %v1230 = vunpack.c.l.b16 %v205
    %v1231 = vunpack.c.l.b16 %v206
    %v1232 = vunpack.c.l.b16 %v207
    %v1233 = vunpack.c.l.b16 %v208
    %v1234 = vunpack.c.l.b16 %v209
    %v1235 = vunpack.c.l.b16 %v210
    %v1236 = vunpack.c.l.b16 %v211
    %v1237 = vunpack.c.l.b16 %v212
    %v1238 = vunpack.c.l.b16 %v213
    %v1239 = vunpack.c.l.b16 %v214
    %v1240 = vpack.c.b16 %v1225, %v1224
    %v1241 = vpack.c.b16 %v1227, %v1226
    %v1242 = vpack.c.b16 %v1229, %v1228
    %v1243 = vpack.c.b16 %v1231, %v1230
    %v1244 = vpack.c.b16 %v1233, %v1232
    %v1245 = vpack.c.b16 %v1235, %v1234
    %v1246 = vpack.c.b16 %v1237, %v1236
    %v1247 = vpack.c.b16 %v1239, %v1238
    %1256 = vmatprep.subr.bf16.mxu0 0
    %1257 = vmatpush1.bf16.msra.mxu0 %v1247
    %1258 = vmatprep.subr.bf16.mxu0 0
    %1259 = vmatpush1.bf16.msra.mxu0 %v1246
    %1260 = vmatprep.subr.bf16.mxu0 0
    %1261 = vmatpush1.bf16.msra.mxu0 %v1245
    %1262 = vmatprep.subr.bf16.mxu0 0
    %1263 = vmatpush1.bf16.msra.mxu0 %v1244
    %1264 = vmatprep.subr.bf16.mxu0 0
    %1265 = vmatpush1.bf16.msra.mxu0 %v1243
    %1266 = vmatprep.subr.bf16.mxu0 0
    %1267 = vmatpush1.bf16.msra.mxu0 %v1242
    %1268 = vmatprep.subr.bf16.mxu0 0
    %1269 = vmatpush1.bf16.msra.mxu0 %v1241
    %1270 = vmatprep.subr.bf16.mxu0 0
    %1271 = vmatpush1.bf16.msra.mxu0 %v1240
    %1272 = vmatprep.subr.bf16.mxu0 0
    %1273 = vmatpush2.bf16.msra.mxu0 0
    %1274 = vmatprep.subr.bf16.mxu0 0
    %1275 = vmatpush2.bf16.msra.mxu0 0
    %1276 = vmatprep.subr.bf16.mxu0 0
    %1277 = vmatpush2.bf16.msra.mxu0 0
    %1278 = vmatprep.subr.bf16.mxu0 0
    %1279 = vmatpush2.bf16.msra.mxu0 0
    %1280 = vmatprep.subr.bf16.mxu0 0
    %1281 = vmatpush2.bf16.msra.mxu0 0
    %1282 = vmatprep.subr.bf16.mxu0 0
    %1283 = vmatpush2.bf16.msra.mxu0 0
    %1284 = vmatprep.subr.bf16.mxu0 0
    %1285 = vmatpush2.bf16.msra.mxu0 0
    %1286 = vmatprep.subr.bf16.mxu0 0
    %1287 = vmatpush2.bf16.msra.mxu0 0
    %1288 = vmatprep.mubr.bf16.mxu0 0
    %1289 = vmatmul.mubr.bf16.gmra.mxu0 %v487
    %v1290 = vpop.f32.mrf.mxu0
    %v1291 = vadd.f32 %v698, %v1290
    %v1292 = vpop.f32.mrf.mxu0
    %v1293 = vpop.f32.mrf.mxu0
    %v1294 = vadd.f32 %v701, %v1293
    %v1295 = vpop.f32.mrf.mxu0
    %1296 = vmatprep.mubr.bf16.mxu0 0
    %1297 = vmatmul.mubr.bf16.gmra.mxu0 %v488
    %v1298 = vpop.f32.mrf.mxu0
    %v1299 = vadd.f32 %v706, %v1298
    %v1300 = vpop.f32.mrf.mxu0
    %v1301 = vpop.f32.mrf.mxu0
    %v1302 = vadd.f32 %v709, %v1301
    %v1303 = vpop.f32.mrf.mxu0
    %1304 = vmatprep.mubr.bf16.mxu0 0
    %1305 = vmatmul.mubr.bf16.gmra.mxu0 %v489
    %v1306 = vpop.f32.mrf.mxu0
    %v1307 = vadd.f32 %v714, %v1306
    %v1308 = vpop.f32.mrf.mxu0
    %v1309 = vpop.f32.mrf.mxu0
    %v1310 = vadd.f32 %v717, %v1309
    %v1311 = vpop.f32.mrf.mxu0
    %1312 = vmatprep.mubr.bf16.mxu0 0
    %1313 = vmatmul.mubr.bf16.gmra.mxu0 %v490
    %v1314 = vpop.f32.mrf.mxu0
    %v1315 = vadd.f32 %v722, %v1314
    %v1316 = vpop.f32.mrf.mxu0
    %v1317 = vpop.f32.mrf.mxu0
    %v1318 = vadd.f32 %v725, %v1317
    %v1319 = vpop.f32.mrf.mxu0
    %1320 = vmatprep.mubr.bf16.mxu0 0
    %1321 = vmatmul.mubr.bf16.gmra.mxu0 %v491
    %v1322 = vpop.f32.mrf.mxu0
    %v1323 = vadd.f32 %v730, %v1322
    %v1324 = vpop.f32.mrf.mxu0
    %v1325 = vpop.f32.mrf.mxu0
    %v1326 = vadd.f32 %v733, %v1325
    %v1327 = vpop.f32.mrf.mxu0
    %1328 = vmatprep.mubr.bf16.mxu0 0
    %1329 = vmatmul.mubr.bf16.gmra.mxu0 %v492
    %v1330 = vpop.f32.mrf.mxu0
    %v1331 = vadd.f32 %v738, %v1330
    %v1332 = vpop.f32.mrf.mxu0
    %v1333 = vpop.f32.mrf.mxu0
    %v1334 = vadd.f32 %v741, %v1333
    %v1335 = vpop.f32.mrf.mxu0
    %1336 = vmatprep.mubr.bf16.mxu0 0
    %1337 = vmatmul.mubr.bf16.gmra.mxu0 %v493
    %v1338 = vpop.f32.mrf.mxu0
    %v1339 = vadd.f32 %v746, %v1338
    %v1340 = vpop.f32.mrf.mxu0
    %v1341 = vpop.f32.mrf.mxu0
    %v1342 = vadd.f32 %v749, %v1341
    %v1343 = vpop.f32.mrf.mxu0
    %1344 = vmatprep.mubr.bf16.mxu0 0
    %1345 = vmatmul.mubr.bf16.gmra.mxu0 %v494
    %v1346 = vpop.f32.mrf.mxu0
    %v1347 = vadd.f32 %v754, %v1346
    %v1348 = vpop.f32.mrf.mxu0
    %v1349 = vpop.f32.mrf.mxu0
    %v1350 = vadd.f32 %v757, %v1349
    %v1351 = vpop.f32.mrf.mxu0
    %1352 = vmatprep.mubr.bf16.mxu0 0
    %1353 = vmatmul.mubr.bf16.gmra.mxu0 %v495
    %v1354 = vpop.f32.mrf.mxu0
    %v1355 = vadd.f32 %v762, %v1354
    %v1356 = vpop.f32.mrf.mxu0
    %v1357 = vpop.f32.mrf.mxu0
    %v1358 = vadd.f32 %v765, %v1357
    %v1359 = vpop.f32.mrf.mxu0
    %1360 = vmatprep.mubr.bf16.mxu0 0
    %1361 = vmatmul.mubr.bf16.gmra.mxu0 %v496
    %v1362 = vpop.f32.mrf.mxu0
    %v1363 = vadd.f32 %v770, %v1362
    %v1364 = vpop.f32.mrf.mxu0
    %v1365 = vpop.f32.mrf.mxu0
    %v1366 = vadd.f32 %v773, %v1365
    %v1367 = vpop.f32.mrf.mxu0
    %1368 = vmatprep.mubr.bf16.mxu0 0
    %1369 = vmatmul.mubr.bf16.gmra.mxu0 %v497
    %v1370 = vpop.f32.mrf.mxu0
    %v1371 = vadd.f32 %v778, %v1370
    %v1372 = vpop.f32.mrf.mxu0
    %v1373 = vpop.f32.mrf.mxu0
    %v1374 = vadd.f32 %v781, %v1373
    %v1375 = vpop.f32.mrf.mxu0
    %1376 = vmatprep.mubr.bf16.mxu0 0
    %1377 = vmatmul.mubr.bf16.gmra.mxu0 %v498
    %v1378 = vpop.f32.mrf.mxu0
    %v1379 = vadd.f32 %v786, %v1378
    %v1380 = vpop.f32.mrf.mxu0
    %v1381 = vpop.f32.mrf.mxu0
    %v1382 = vadd.f32 %v789, %v1381
    %v1383 = vpop.f32.mrf.mxu0
    %1384 = vmatprep.mubr.bf16.mxu0 0
    %1385 = vmatmul.mubr.bf16.gmra.mxu0 %v499
    %v1386 = vpop.f32.mrf.mxu0
    %v1387 = vadd.f32 %v794, %v1386
    %v1388 = vpop.f32.mrf.mxu0
    %v1389 = vpop.f32.mrf.mxu0
    %v1390 = vadd.f32 %v797, %v1389
    %v1391 = vpop.f32.mrf.mxu0
    %1392 = vmatprep.mubr.bf16.mxu0 0
    %1393 = vmatmul.mubr.bf16.gmra.mxu0 %v500
    %v1394 = vpop.f32.mrf.mxu0
    %v1395 = vadd.f32 %v802, %v1394
    %v1396 = vpop.f32.mrf.mxu0
    %v1397 = vpop.f32.mrf.mxu0
    %v1398 = vadd.f32 %v805, %v1397
    %v1399 = vpop.f32.mrf.mxu0
    %1400 = vmatprep.mubr.bf16.mxu0 0
    %1401 = vmatmul.mubr.bf16.gmra.mxu0 %v501
    %v1402 = vpop.f32.mrf.mxu0
    %v1403 = vadd.f32 %v810, %v1402
    %v1404 = vpop.f32.mrf.mxu0
    %v1405 = vpop.f32.mrf.mxu0
    %v1406 = vadd.f32 %v813, %v1405
    %v1407 = vpop.f32.mrf.mxu0
    %1408 = vmatprep.mubr.bf16.mxu0 0
    %1409 = vmatmul.mubr.bf16.gmra.mxu0 %v502
    %v1410 = vpop.f32.mrf.mxu0
    %v1411 = vadd.f32 %v818, %v1410
    %v1412 = vpop.f32.mrf.mxu0
    %v1413 = vpop.f32.mrf.mxu0
    %v1414 = vadd.f32 %v821, %v1413
    %v1415 = vpop.f32.mrf.mxu0
    %1416 = vmatprep.mubr.bf16.mxu0 0
    %1417 = vmatmul.mubr.bf16.gmra.mxu0 %v503
    %v1418 = vpop.f32.mrf.mxu0
    %v1419 = vadd.f32 %v826, %v1418
    %v1420 = vpop.f32.mrf.mxu0
    %v1421 = vpop.f32.mrf.mxu0
    %v1422 = vadd.f32 %v829, %v1421
    %v1423 = vpop.f32.mrf.mxu0
    %1424 = vmatprep.mubr.bf16.mxu0 0
    %1425 = vmatmul.mubr.bf16.gmra.mxu0 %v504
    %v1426 = vpop.f32.mrf.mxu0
    %v1427 = vadd.f32 %v834, %v1426
    %v1428 = vpop.f32.mrf.mxu0
    %v1429 = vpop.f32.mrf.mxu0
    %v1430 = vadd.f32 %v837, %v1429
    %v1431 = vpop.f32.mrf.mxu0
    %1432 = vmatprep.mubr.bf16.mxu0 0
    %1433 = vmatmul.mubr.bf16.gmra.mxu0 %v505
    %v1434 = vpop.f32.mrf.mxu0
    %v1435 = vadd.f32 %v842, %v1434
    %v1436 = vpop.f32.mrf.mxu0
    %v1437 = vpop.f32.mrf.mxu0
    %v1438 = vadd.f32 %v845, %v1437
    %v1439 = vpop.f32.mrf.mxu0
    %1440 = vmatprep.mubr.bf16.mxu0 0
    %1441 = vmatmul.mubr.bf16.gmra.mxu0 %v506
    %v1442 = vpop.f32.mrf.mxu0
    %v1443 = vadd.f32 %v850, %v1442
    %v1444 = vpop.f32.mrf.mxu0
    %v1445 = vpop.f32.mrf.mxu0
    %v1446 = vadd.f32 %v853, %v1445
    %v1447 = vpop.f32.mrf.mxu0
    %1448 = vmatprep.mubr.bf16.mxu0 0
    %1449 = vmatmul.mubr.bf16.gmra.mxu0 %v507
    %v1450 = vpop.f32.mrf.mxu0
    %v1451 = vadd.f32 %v858, %v1450
    %v1452 = vpop.f32.mrf.mxu0
    %v1453 = vpop.f32.mrf.mxu0
    %v1454 = vadd.f32 %v861, %v1453
    %v1455 = vpop.f32.mrf.mxu0
    %1456 = vmatprep.mubr.bf16.mxu0 0
    %1457 = vmatmul.mubr.bf16.gmra.mxu0 %v508
    %v1458 = vpop.f32.mrf.mxu0
    %v1459 = vadd.f32 %v866, %v1458
    %v1460 = vpop.f32.mrf.mxu0
    %v1461 = vpop.f32.mrf.mxu0
    %v1462 = vadd.f32 %v869, %v1461
    %v1463 = vpop.f32.mrf.mxu0
    %1464 = vmatprep.mubr.bf16.mxu0 0
    %1465 = vmatmul.mubr.bf16.gmra.mxu0 %v509
    %v1466 = vpop.f32.mrf.mxu0
    %v1467 = vadd.f32 %v874, %v1466
    %v1468 = vpop.f32.mrf.mxu0
    %v1469 = vpop.f32.mrf.mxu0
    %v1470 = vadd.f32 %v877, %v1469
    %v1471 = vpop.f32.mrf.mxu0
    %1472 = vmatprep.mubr.bf16.mxu0 0
    %1473 = vmatmul.mubr.bf16.gmra.mxu0 %v510
    %v1474 = vpop.f32.mrf.mxu0
    %v1475 = vadd.f32 %v882, %v1474
    %v1476 = vpop.f32.mrf.mxu0
    %v1477 = vpop.f32.mrf.mxu0
    %v1478 = vadd.f32 %v885, %v1477
    %v1479 = vpop.f32.mrf.mxu0
    %1480 = vmatprep.mubr.bf16.mxu0 0
    %1481 = vmatmul.mubr.bf16.gmra.mxu0 %v511
    %v1482 = vpop.f32.mrf.mxu0
    %v1483 = vadd.f32 %v890, %v1482
    %v1484 = vpop.f32.mrf.mxu0
    %v1485 = vpop.f32.mrf.mxu0
    %v1486 = vadd.f32 %v893, %v1485
    %v1487 = vpop.f32.mrf.mxu0
    %1488 = vmatprep.mubr.bf16.mxu0 0
    %1489 = vmatmul.mubr.bf16.gmra.mxu0 %v512
    %v1490 = vpop.f32.mrf.mxu0
    %v1491 = vadd.f32 %v898, %v1490
    %v1492 = vpop.f32.mrf.mxu0
    %v1493 = vpop.f32.mrf.mxu0
    %v1494 = vadd.f32 %v901, %v1493
    %v1495 = vpop.f32.mrf.mxu0
    %1496 = vmatprep.mubr.bf16.mxu0 0
    %1497 = vmatmul.mubr.bf16.gmra.mxu0 %v513
    %v1498 = vpop.f32.mrf.mxu0
    %v1499 = vadd.f32 %v906, %v1498
    %v1500 = vpop.f32.mrf.mxu0
    %v1501 = vpop.f32.mrf.mxu0
    %v1502 = vadd.f32 %v909, %v1501
    %v1503 = vpop.f32.mrf.mxu0
    %1504 = vmatprep.mubr.bf16.mxu0 0
    %1505 = vmatmul.mubr.bf16.gmra.mxu0 %v514
    %v1506 = vpop.f32.mrf.mxu0
    %v1507 = vadd.f32 %v914, %v1506
    %v1508 = vpop.f32.mrf.mxu0
    %v1509 = vpop.f32.mrf.mxu0
    %v1510 = vadd.f32 %v917, %v1509
    %v1511 = vpop.f32.mrf.mxu0
    %1512 = vmatprep.mubr.bf16.mxu0 0
    %1513 = vmatmul.mubr.bf16.gmra.mxu0 %v515
    %v1514 = vpop.f32.mrf.mxu0
    %v1515 = vadd.f32 %v922, %v1514
    %v1516 = vpop.f32.mrf.mxu0
    %v1517 = vpop.f32.mrf.mxu0
    %v1518 = vadd.f32 %v925, %v1517
    %v1519 = vpop.f32.mrf.mxu0
    %1520 = vmatprep.mubr.bf16.mxu0 0
    %1521 = vmatmul.mubr.bf16.gmra.mxu0 %v516
    %v1522 = vpop.f32.mrf.mxu0
    %v1523 = vadd.f32 %v930, %v1522
    %v1524 = vpop.f32.mrf.mxu0
    %v1525 = vpop.f32.mrf.mxu0
    %v1526 = vadd.f32 %v933, %v1525
    %v1527 = vpop.f32.mrf.mxu0
    %1528 = vmatprep.mubr.bf16.mxu0 0
    %1529 = vmatmul.mubr.bf16.gmra.mxu0 %v517
    %v1530 = vpop.f32.mrf.mxu0
    %v1531 = vadd.f32 %v938, %v1530
    %v1532 = vpop.f32.mrf.mxu0
    %v1533 = vpop.f32.mrf.mxu0
    %v1534 = vadd.f32 %v941, %v1533
    %v1535 = vpop.f32.mrf.mxu0
    %1536 = vmatprep.mubr.bf16.mxu0 0
    %1537 = vmatmul.mubr.bf16.gmra.mxu0 %v518
    %v1538 = vpop.f32.mrf.mxu0
    %v1539 = vadd.f32 %v946, %v1538
    %v1540 = vpop.f32.mrf.mxu0
    %v1541 = vpop.f32.mrf.mxu0
    %v1542 = vadd.f32 %v949, %v1541
    %v1543 = vpop.f32.mrf.mxu0
    %1544 = vmatprep.mubr.bf16.mxu0 0
    %1545 = vmatmul.mubr.bf16.gmra.mxu0 %v519
    %v1546 = vpop.f32.mrf.mxu0
    %v1547 = vadd.f32 %v954, %v1546
    %v1548 = vpop.f32.mrf.mxu0
    %v1549 = vpop.f32.mrf.mxu0
    %v1550 = vadd.f32 %v957, %v1549
    %v1551 = vpop.f32.mrf.mxu0
    %1552 = vmatprep.mubr.bf16.mxu0 0
    %1553 = vmatmul.mubr.bf16.gmra.mxu0 %v520
    %v1554 = vpop.f32.mrf.mxu0
    %v1555 = vadd.f32 %v962, %v1554
    %v1556 = vpop.f32.mrf.mxu0
    %v1557 = vpop.f32.mrf.mxu0
    %v1558 = vadd.f32 %v965, %v1557
    %v1559 = vpop.f32.mrf.mxu0
    %1560 = vmatprep.mubr.bf16.mxu0 0
    %1561 = vmatmul.mubr.bf16.gmra.mxu0 %v521
    %v1562 = vpop.f32.mrf.mxu0
    %v1563 = vadd.f32 %v970, %v1562
    %v1564 = vpop.f32.mrf.mxu0
    %v1565 = vpop.f32.mrf.mxu0
    %v1566 = vadd.f32 %v973, %v1565
    %v1567 = vpop.f32.mrf.mxu0
    %1568 = vmatprep.mubr.bf16.mxu0 0
    %1569 = vmatmul.mubr.bf16.gmra.mxu0 %v522
    %v1570 = vpop.f32.mrf.mxu0
    %v1571 = vadd.f32 %v978, %v1570
    %v1572 = vpop.f32.mrf.mxu0
    %v1573 = vpop.f32.mrf.mxu0
    %v1574 = vadd.f32 %v981, %v1573
    %v1575 = vpop.f32.mrf.mxu0
    %1576 = vmatprep.mubr.bf16.mxu0 0
    %1577 = vmatmul.mubr.bf16.gmra.mxu0 %v523
    %v1578 = vpop.f32.mrf.mxu0
    %v1579 = vadd.f32 %v986, %v1578
    %v1580 = vpop.f32.mrf.mxu0
    %v1581 = vpop.f32.mrf.mxu0
    %v1582 = vadd.f32 %v989, %v1581
    %v1583 = vpop.f32.mrf.mxu0
    %1584 = vmatprep.mubr.bf16.mxu0 0
    %1585 = vmatmul.mubr.bf16.gmra.mxu0 %v524
    %v1586 = vpop.f32.mrf.mxu0
    %v1587 = vadd.f32 %v994, %v1586
    %v1588 = vpop.f32.mrf.mxu0
    %v1589 = vpop.f32.mrf.mxu0
    %v1590 = vadd.f32 %v997, %v1589
    %v1591 = vpop.f32.mrf.mxu0
    %1592 = vmatprep.mubr.bf16.mxu0 0
    %1593 = vmatmul.mubr.bf16.gmra.mxu0 %v525
    %v1594 = vpop.f32.mrf.mxu0
    %v1595 = vadd.f32 %v1002, %v1594
    %v1596 = vpop.f32.mrf.mxu0
    %v1597 = vpop.f32.mrf.mxu0
    %v1598 = vadd.f32 %v1005, %v1597
    %v1599 = vpop.f32.mrf.mxu0
    %1600 = vmatprep.mubr.bf16.mxu0 0
    %1601 = vmatmul.mubr.bf16.gmra.mxu0 %v526
    %v1602 = vpop.f32.mrf.mxu0
    %v1603 = vadd.f32 %v1010, %v1602
    %v1604 = vpop.f32.mrf.mxu0
    %v1605 = vpop.f32.mrf.mxu0
    %v1606 = vadd.f32 %v1013, %v1605
    %v1607 = vpop.f32.mrf.mxu0
    %1608 = vmatprep.mubr.bf16.mxu0 0
    %1609 = vmatmul.mubr.bf16.gmra.mxu0 %v527
    %v1610 = vpop.f32.mrf.mxu0
    %v1611 = vadd.f32 %v1018, %v1610
    %v1612 = vpop.f32.mrf.mxu0
    %v1613 = vpop.f32.mrf.mxu0
    %v1614 = vadd.f32 %v1021, %v1613
    %v1615 = vpop.f32.mrf.mxu0
    %1616 = vmatprep.mubr.bf16.mxu0 0
    %1617 = vmatmul.mubr.bf16.gmra.mxu0 %v528
    %v1618 = vpop.f32.mrf.mxu0
    %v1619 = vadd.f32 %v1026, %v1618
    %v1620 = vpop.f32.mrf.mxu0
    %v1621 = vpop.f32.mrf.mxu0
    %v1622 = vadd.f32 %v1029, %v1621
    %v1623 = vpop.f32.mrf.mxu0
    %1624 = vmatprep.mubr.bf16.mxu0 0
    %1625 = vmatmul.mubr.bf16.gmra.mxu0 %v529
    %v1626 = vpop.f32.mrf.mxu0
    %v1627 = vadd.f32 %v1034, %v1626
    %v1628 = vpop.f32.mrf.mxu0
    %v1629 = vpop.f32.mrf.mxu0
    %v1630 = vadd.f32 %v1037, %v1629
    %v1631 = vpop.f32.mrf.mxu0
    %1632 = vmatprep.mubr.bf16.mxu0 0
    %1633 = vmatmul.mubr.bf16.gmra.mxu0 %v530
    %v1634 = vpop.f32.mrf.mxu0
    %v1635 = vadd.f32 %v1042, %v1634
    %v1636 = vpop.f32.mrf.mxu0
    %v1637 = vpop.f32.mrf.mxu0
    %v1638 = vadd.f32 %v1045, %v1637
    %v1639 = vpop.f32.mrf.mxu0
    %1640 = vmatprep.mubr.bf16.mxu0 0
    %1641 = vmatmul.mubr.bf16.gmra.mxu0 %v531
    %v1642 = vpop.f32.mrf.mxu0
    %v1643 = vadd.f32 %v1050, %v1642
    %v1644 = vpop.f32.mrf.mxu0
    %v1645 = vpop.f32.mrf.mxu0
    %v1646 = vadd.f32 %v1053, %v1645
    %v1647 = vpop.f32.mrf.mxu0
    %1648 = vmatprep.mubr.bf16.mxu0 0
    %1649 = vmatmul.mubr.bf16.gmra.mxu0 %v532
    %v1650 = vpop.f32.mrf.mxu0
    %v1651 = vadd.f32 %v1058, %v1650
    %v1652 = vpop.f32.mrf.mxu0
    %v1653 = vpop.f32.mrf.mxu0
    %v1654 = vadd.f32 %v1061, %v1653
    %v1655 = vpop.f32.mrf.mxu0
    %1656 = vmatprep.mubr.bf16.mxu0 0
    %1657 = vmatmul.mubr.bf16.gmra.mxu0 %v533
    %v1658 = vpop.f32.mrf.mxu0
    %v1659 = vadd.f32 %v1066, %v1658
    %v1660 = vpop.f32.mrf.mxu0
    %v1661 = vpop.f32.mrf.mxu0
    %v1662 = vadd.f32 %v1069, %v1661
    %v1663 = vpop.f32.mrf.mxu0
    %1664 = vmatprep.mubr.bf16.mxu0 0
    %1665 = vmatmul.mubr.bf16.gmra.mxu0 %v534
    %v1666 = vpop.f32.mrf.mxu0
    %v1667 = vadd.f32 %v1074, %v1666
    %v1668 = vpop.f32.mrf.mxu0
    %v1669 = vpop.f32.mrf.mxu0
    %v1670 = vadd.f32 %v1077, %v1669
    %v1671 = vpop.f32.mrf.mxu0
    %1672 = vmatprep.mubr.bf16.mxu0 0
    %1673 = vmatmul.mubr.bf16.gmra.mxu0 %v535
    %v1674 = vpop.f32.mrf.mxu0
    %v1675 = vadd.f32 %v1082, %v1674
    %v1676 = vpop.f32.mrf.mxu0
    %v1677 = vpop.f32.mrf.mxu0
    %v1678 = vadd.f32 %v1085, %v1677
    %v1679 = vpop.f32.mrf.mxu0
    %1680 = vmatprep.mubr.bf16.mxu0 0
    %1681 = vmatmul.mubr.bf16.gmra.mxu0 %v536
    %v1682 = vpop.f32.mrf.mxu0
    %v1683 = vadd.f32 %v1090, %v1682
    %v1684 = vpop.f32.mrf.mxu0
    %v1685 = vpop.f32.mrf.mxu0
    %v1686 = vadd.f32 %v1093, %v1685
    %v1687 = vpop.f32.mrf.mxu0
    %1688 = vmatprep.mubr.bf16.mxu0 0
    %1689 = vmatmul.mubr.bf16.gmra.mxu0 %v537
    %v1690 = vpop.f32.mrf.mxu0
    %v1691 = vadd.f32 %v1098, %v1690
    %v1692 = vpop.f32.mrf.mxu0
    %v1693 = vpop.f32.mrf.mxu0
    %v1694 = vadd.f32 %v1101, %v1693
    %v1695 = vpop.f32.mrf.mxu0
    %1696 = vmatprep.mubr.bf16.mxu0 0
    %1697 = vmatmul.mubr.bf16.gmra.mxu0 %v538
    %v1698 = vpop.f32.mrf.mxu0
    %v1699 = vadd.f32 %v1106, %v1698
    %v1700 = vpop.f32.mrf.mxu0
    %v1701 = vpop.f32.mrf.mxu0
    %v1702 = vadd.f32 %v1109, %v1701
    %v1703 = vpop.f32.mrf.mxu0
    %1704 = vmatprep.mubr.bf16.mxu0 0
    %1705 = vmatmul.mubr.bf16.gmra.mxu0 %v539
    %v1706 = vpop.f32.mrf.mxu0
    %v1707 = vadd.f32 %v1114, %v1706
    %v1708 = vpop.f32.mrf.mxu0
    %v1709 = vpop.f32.mrf.mxu0
    %v1710 = vadd.f32 %v1117, %v1709
    %v1711 = vpop.f32.mrf.mxu0
    %1712 = vmatprep.mubr.bf16.mxu0 0
    %1713 = vmatmul.mubr.bf16.gmra.mxu0 %v540
    %v1714 = vpop.f32.mrf.mxu0
    %v1715 = vadd.f32 %v1122, %v1714
    %v1716 = vpop.f32.mrf.mxu0
    %v1717 = vpop.f32.mrf.mxu0
    %v1718 = vadd.f32 %v1125, %v1717
    %v1719 = vpop.f32.mrf.mxu0
    %1720 = vmatprep.mubr.bf16.mxu0 0
    %1721 = vmatmul.mubr.bf16.gmra.mxu0 %v541
    %v1722 = vpop.f32.mrf.mxu0
    %v1723 = vadd.f32 %v1130, %v1722
    %v1724 = vpop.f32.mrf.mxu0
    %v1725 = vpop.f32.mrf.mxu0
    %v1726 = vadd.f32 %v1133, %v1725
    %v1727 = vpop.f32.mrf.mxu0
    %1728 = vmatprep.mubr.bf16.mxu0 0
    %1729 = vmatmul.mubr.bf16.gmra.mxu0 %v542
    %v1730 = vpop.f32.mrf.mxu0
    %v1731 = vadd.f32 %v1138, %v1730
    %v1732 = vpop.f32.mrf.mxu0
    %v1733 = vpop.f32.mrf.mxu0
    %v1734 = vadd.f32 %v1141, %v1733
    %v1735 = vpop.f32.mrf.mxu0
    %1736 = vmatprep.mubr.bf16.mxu0 0
    %1737 = vmatmul.mubr.bf16.gmra.mxu0 %v543
    %v1738 = vpop.f32.mrf.mxu0
    %v1739 = vadd.f32 %v1146, %v1738
    %v1740 = vpop.f32.mrf.mxu0
    %v1741 = vpop.f32.mrf.mxu0
    %v1742 = vadd.f32 %v1149, %v1741
    %v1743 = vpop.f32.mrf.mxu0
    %1744 = vmatprep.mubr.bf16.mxu0 0
    %1745 = vmatmul.mubr.bf16.gmra.mxu0 %v544
    %v1746 = vpop.f32.mrf.mxu0
    %v1747 = vadd.f32 %v1154, %v1746
    %v1748 = vpop.f32.mrf.mxu0
    %v1749 = vpop.f32.mrf.mxu0
    %v1750 = vadd.f32 %v1157, %v1749
    %v1751 = vpop.f32.mrf.mxu0
    %1752 = vmatprep.mubr.bf16.mxu0 0
    %1753 = vmatmul.mubr.bf16.gmra.mxu0 %v545
    %v1754 = vpop.f32.mrf.mxu0
    %v1755 = vadd.f32 %v1162, %v1754
    %v1756 = vpop.f32.mrf.mxu0
    %v1757 = vpop.f32.mrf.mxu0
    %v1758 = vadd.f32 %v1165, %v1757
    %v1759 = vpop.f32.mrf.mxu0
    %1760 = vmatprep.mubr.bf16.mxu0 0
    %1761 = vmatmul.mubr.bf16.gmra.mxu0 %v546
    %v1762 = vpop.f32.mrf.mxu0
    %v1763 = vadd.f32 %v1170, %v1762
    %v1764 = vpop.f32.mrf.mxu0
    %v1765 = vpop.f32.mrf.mxu0
    %v1766 = vadd.f32 %v1173, %v1765
    %v1767 = vpop.f32.mrf.mxu0
    %1768 = vmatprep.mubr.bf16.mxu0 0
    %1769 = vmatmul.mubr.bf16.gmra.mxu0 %v547
    %v1770 = vpop.f32.mrf.mxu0
    %v1771 = vadd.f32 %v1178, %v1770
    %v1772 = vpop.f32.mrf.mxu0
    %v1773 = vpop.f32.mrf.mxu0
    %v1774 = vadd.f32 %v1181, %v1773
    %v1775 = vpop.f32.mrf.mxu0
    %1776 = vmatprep.mubr.bf16.mxu0 0
    %1777 = vmatmul.mubr.bf16.gmra.mxu0 %v548
    %v1778 = vpop.f32.mrf.mxu0
    %v1779 = vadd.f32 %v1186, %v1778
    %v1780 = vpop.f32.mrf.mxu0
    %v1781 = vpop.f32.mrf.mxu0
    %v1782 = vadd.f32 %v1189, %v1781
    %v1783 = vpop.f32.mrf.mxu0
    %1784 = vmatprep.mubr.bf16.mxu0 0
    %1785 = vmatmul.mubr.bf16.gmra.mxu0 %v549
    %v1786 = vpop.f32.mrf.mxu0
    %v1787 = vadd.f32 %v1194, %v1786
    %v1788 = vpop.f32.mrf.mxu0
    %v1789 = vpop.f32.mrf.mxu0
    %v1790 = vadd.f32 %v1197, %v1789
    %v1791 = vpop.f32.mrf.mxu0
    %1792 = vmatprep.mubr.bf16.mxu0 0
    %1793 = vmatmul.mubr.bf16.gmra.mxu0 %v550
    %v1794 = vpop.f32.mrf.mxu0
    %v1795 = vadd.f32 %v1202, %v1794
    %v1796 = vpop.f32.mrf.mxu0
    %v1797 = vpop.f32.mrf.mxu0
    %v1798 = vadd.f32 %v1205, %v1797
    %v1799 = vpop.f32.mrf.mxu0
    %1800 = vdwg.mxu0
    %v1801 = vunpack.c.l.bf16 %v71
    %v1802 = vunpack.c.l.bf16 %v72
    %v1803 = vunpack.c.l.bf16 %v73
    %v1804 = vunpack.c.l.bf16 %v74
    %v1805 = vunpack.c.l.bf16 %v75
    %v1806 = vunpack.c.l.bf16 %v76
    %v1807 = vunpack.c.l.bf16 %v77
    %v1808 = vunpack.c.l.bf16 %v78
    %v1809 = vunpack.c.l.bf16 %v79
    %v1810 = vunpack.c.l.bf16 %v80
    %v1811 = vunpack.c.l.bf16 %v81
    %v1812 = vunpack.c.l.bf16 %v82
    %v1813 = vunpack.c.l.bf16 %v83
    %v1814 = vunpack.c.l.bf16 %v84
    %v1815 = vunpack.c.l.bf16 %v85
    %v1816 = vunpack.c.l.bf16 %v86
    %v1817 = vunpack.c.l.bf16 %v87
    %v1818 = vunpack.c.l.bf16 %v88
    %v1819 = vunpack.c.l.bf16 %v89
    %v1820 = vunpack.c.l.bf16 %v90
    %v1821 = vunpack.c.l.bf16 %v91
    %v1822 = vunpack.c.l.bf16 %v92
    %v1823 = vunpack.c.l.bf16 %v93
    %v1824 = vunpack.c.l.bf16 %v94
    %v1825 = vunpack.c.l.bf16 %v95
    %v1826 = vunpack.c.l.bf16 %v96
    %v1827 = vunpack.c.l.bf16 %v97
    %v1828 = vunpack.c.l.bf16 %v98
    %v1829 = vunpack.c.l.bf16 %v99
    %v1830 = vunpack.c.l.bf16 %v100
    %v1831 = vunpack.c.l.bf16 %v101
    %v1832 = vunpack.c.l.bf16 %v102
    %v1833 = vunpack.c.l.bf16 %v103
    %v1834 = vunpack.c.l.bf16 %v104
    %v1835 = vunpack.c.l.bf16 %v105
    %v1836 = vunpack.c.l.bf16 %v106
    %v1837 = vunpack.c.l.bf16 %v107
    %v1838 = vunpack.c.l.bf16 %v108
    %v1839 = vunpack.c.l.bf16 %v109
    %v1840 = vunpack.c.l.bf16 %v110
    %v1841 = vunpack.c.l.bf16 %v111
    %v1842 = vunpack.c.l.bf16 %v112
    %v1843 = vunpack.c.l.bf16 %v113
    %v1844 = vunpack.c.l.bf16 %v114
    %v1845 = vunpack.c.l.bf16 %v115
    %v1846 = vunpack.c.l.bf16 %v116
    %v1847 = vunpack.c.l.bf16 %v117
    %v1848 = vunpack.c.l.bf16 %v118
    %v1849 = vunpack.c.l.bf16 %v119
    %v1850 = vunpack.c.l.bf16 %v120
    %v1851 = vunpack.c.l.bf16 %v121
    %v1852 = vunpack.c.l.bf16 %v122
    %v1853 = vunpack.c.l.bf16 %v123
    %v1854 = vunpack.c.l.bf16 %v124
    %v1855 = vunpack.c.l.bf16 %v125
    %v1856 = vunpack.c.l.bf16 %v126
    %v1857 = vunpack.c.l.bf16 %v127
    %v1858 = vunpack.c.l.bf16 %v128
    %v1859 = vunpack.c.l.bf16 %v129
    %v1860 = vunpack.c.l.bf16 %v130
    %v1861 = vunpack.c.l.bf16 %v131
    %v1862 = vunpack.c.l.bf16 %v132
    %v1863 = vunpack.c.l.bf16 %v133
    %v1864 = vunpack.c.l.bf16 %v134
    %v1865 = vunpack.c.l.bf16 %v135
    %v1866 = vunpack.c.l.bf16 %v136
    %v1867 = vunpack.c.l.bf16 %v137
    %v1868 = vunpack.c.l.bf16 %v138
    %v1869 = vunpack.c.l.bf16 %v139
    %v1870 = vunpack.c.l.bf16 %v140
    %v1871 = vunpack.c.l.bf16 %v141
    %v1872 = vunpack.c.l.bf16 %v142
    %v1873 = vunpack.c.l.bf16 %v143
    %v1874 = vunpack.c.l.bf16 %v144
    %v1875 = vunpack.c.l.bf16 %v145
    %v1876 = vunpack.c.l.bf16 %v146
    %v1877 = vunpack.c.l.bf16 %v147
    %v1878 = vunpack.c.l.bf16 %v148
    %v1879 = vunpack.c.l.bf16 %v149
    %v1880 = vunpack.c.l.bf16 %v150
    %v1881 = vunpack.c.l.bf16 %v151
    %v1882 = vunpack.c.l.bf16 %v152
    %v1883 = vunpack.c.l.bf16 %v153
    %v1884 = vunpack.c.l.bf16 %v154
    %v1885 = vunpack.c.l.bf16 %v155
    %v1886 = vunpack.c.l.bf16 %v156
    %v1887 = vunpack.c.l.bf16 %v157
    %v1888 = vunpack.c.l.bf16 %v158
    %v1889 = vunpack.c.l.bf16 %v159
    %v1890 = vunpack.c.l.bf16 %v160
    %v1891 = vunpack.c.l.bf16 %v161
    %v1892 = vunpack.c.l.bf16 %v162
    %v1893 = vunpack.c.l.bf16 %v163
    %v1894 = vunpack.c.l.bf16 %v164
    %v1895 = vunpack.c.l.bf16 %v165
    %v1896 = vunpack.c.l.bf16 %v166
    %v1897 = vunpack.c.l.bf16 %v167
    %v1898 = vunpack.c.l.bf16 %v168
    %v1899 = vunpack.c.l.bf16 %v169
    %v1900 = vunpack.c.l.bf16 %v170
    %v1901 = vunpack.c.l.bf16 %v171
    %v1902 = vunpack.c.l.bf16 %v172
    %v1903 = vunpack.c.l.bf16 %v173
    %v1904 = vunpack.c.l.bf16 %v174
    %v1905 = vunpack.c.l.bf16 %v175
    %v1906 = vunpack.c.l.bf16 %v176
    %v1907 = vunpack.c.l.bf16 %v177
    %v1908 = vunpack.c.l.bf16 %v178
    %v1909 = vunpack.c.l.bf16 %v179
    %v1910 = vunpack.c.l.bf16 %v180
    %v1911 = vunpack.c.l.bf16 %v181
    %v1912 = vunpack.c.l.bf16 %v182
    %v1913 = vunpack.c.l.bf16 %v183
    %v1914 = vunpack.c.l.bf16 %v184
    %v1915 = vunpack.c.l.bf16 %v185
    %v1916 = vunpack.c.l.bf16 %v186
    %v1917 = vunpack.c.l.bf16 %v187
    %v1918 = vunpack.c.l.bf16 %v188
    %v1919 = vunpack.c.l.bf16 %v189
    %v1920 = vunpack.c.l.bf16 %v190
    %v1921 = vunpack.c.l.bf16 %v191
    %v1922 = vunpack.c.l.bf16 %v192
    %v1923 = vunpack.c.l.bf16 %v193
    %v1924 = vunpack.c.l.bf16 %v194
    %v1925 = vunpack.c.l.bf16 %v195
    %v1926 = vunpack.c.l.bf16 %v196
    %v1927 = vunpack.c.l.bf16 %v197
    %v1928 = vunpack.c.l.bf16 %v198
    %v1929 = vld [vmem:[%s1] sm:$0x1]
    %v1931 = vlaneseq
    %v1932 = vshrl.u32 %v1931, 7
    %v1933 = vsub.s32 0, %v1932
    %v1934 = vrot.slane %v1929, %v1933
    %v1936 = vadd.f32 %v1934, %v1291
    %v1937 = vadd.f32 %v1934, %v1294
    %v1938 = vadd.f32 %v1934, %v1299
    %v1939 = vadd.f32 %v1934, %v1302
    %v1940 = vadd.f32 %v1934, %v1307
    %v1941 = vadd.f32 %v1934, %v1310
    %v1942 = vadd.f32 %v1934, %v1315
    %v1943 = vadd.f32 %v1934, %v1318
    %v1944 = vadd.f32 %v1934, %v1323
    %v1945 = vadd.f32 %v1934, %v1326
    %v1946 = vadd.f32 %v1934, %v1331
    %v1947 = vadd.f32 %v1934, %v1334
    %v1948 = vadd.f32 %v1934, %v1339
    %v1949 = vadd.f32 %v1934, %v1342
    %v1950 = vadd.f32 %v1934, %v1347
    %v1951 = vadd.f32 %v1934, %v1350
    %v1952 = vadd.f32 %v1934, %v1355
    %v1953 = vadd.f32 %v1934, %v1358
    %v1954 = vadd.f32 %v1934, %v1363
    %v1955 = vadd.f32 %v1934, %v1366
    %v1956 = vadd.f32 %v1934, %v1371
    %v1957 = vadd.f32 %v1934, %v1374
    %v1958 = vadd.f32 %v1934, %v1379
    %v1959 = vadd.f32 %v1934, %v1382
    %v1960 = vadd.f32 %v1934, %v1387
    %v1961 = vadd.f32 %v1934, %v1390
    %v1962 = vadd.f32 %v1934, %v1395
    %v1963 = vadd.f32 %v1934, %v1398
    %v1964 = vadd.f32 %v1934, %v1403
    %v1965 = vadd.f32 %v1934, %v1406
    %v1966 = vadd.f32 %v1934, %v1411
    %v1967 = vadd.f32 %v1934, %v1414
    %v1968 = vadd.f32 %v1934, %v1419
    %v1969 = vadd.f32 %v1934, %v1422
    %v1970 = vadd.f32 %v1934, %v1427
    %v1971 = vadd.f32 %v1934, %v1430
    %v1972 = vadd.f32 %v1934, %v1435
    %v1973 = vadd.f32 %v1934, %v1438
    %v1974 = vadd.f32 %v1934, %v1443
    %v1975 = vadd.f32 %v1934, %v1446
    %v1976 = vadd.f32 %v1934, %v1451
    %v1977 = vadd.f32 %v1934, %v1454
    %v1978 = vadd.f32 %v1934, %v1459
    %v1979 = vadd.f32 %v1934, %v1462
    %v1980 = vadd.f32 %v1934, %v1467
    %v1981 = vadd.f32 %v1934, %v1470
    %v1982 = vadd.f32 %v1934, %v1475
    %v1983 = vadd.f32 %v1934, %v1478
    %v1984 = vadd.f32 %v1934, %v1483
    %v1985 = vadd.f32 %v1934, %v1486
    %v1986 = vadd.f32 %v1934, %v1491
    %v1987 = vadd.f32 %v1934, %v1494
    %v1988 = vadd.f32 %v1934, %v1499
    %v1989 = vadd.f32 %v1934, %v1502
    %v1990 = vadd.f32 %v1934, %v1507
    %v1991 = vadd.f32 %v1934, %v1510
    %v1992 = vadd.f32 %v1934, %v1515
    %v1993 = vadd.f32 %v1934, %v1518
    %v1994 = vadd.f32 %v1934, %v1523
    %v1995 = vadd.f32 %v1934, %v1526
    %v1996 = vadd.f32 %v1934, %v1531
    %v1997 = vadd.f32 %v1934, %v1534
    %v1998 = vadd.f32 %v1934, %v1539
    %v1999 = vadd.f32 %v1934, %v1542
    %v2000 = vadd.f32 %v1934, %v1547
    %v2001 = vadd.f32 %v1934, %v1550
    %v2002 = vadd.f32 %v1934, %v1555
    %v2003 = vadd.f32 %v1934, %v1558
    %v2004 = vadd.f32 %v1934, %v1563
    %v2005 = vadd.f32 %v1934, %v1566
    %v2006 = vadd.f32 %v1934, %v1571
    %v2007 = vadd.f32 %v1934, %v1574
    %v2008 = vadd.f32 %v1934, %v1579
    %v2009 = vadd.f32 %v1934, %v1582
    %v2010 = vadd.f32 %v1934, %v1587
    %v2011 = vadd.f32 %v1934, %v1590
    %v2012 = vadd.f32 %v1934, %v1595
    %v2013 = vadd.f32 %v1934, %v1598
    %v2014 = vadd.f32 %v1934, %v1603
    %v2015 = vadd.f32 %v1934, %v1606
    %v2016 = vadd.f32 %v1934, %v1611
    %v2017 = vadd.f32 %v1934, %v1614
    %v2018 = vadd.f32 %v1934, %v1619
    %v2019 = vadd.f32 %v1934, %v1622
    %v2020 = vadd.f32 %v1934, %v1627
    %v2021 = vadd.f32 %v1934, %v1630
    %v2022 = vadd.f32 %v1934, %v1635
    %v2023 = vadd.f32 %v1934, %v1638
    %v2024 = vadd.f32 %v1934, %v1643
    %v2025 = vadd.f32 %v1934, %v1646
    %v2026 = vadd.f32 %v1934, %v1651
    %v2027 = vadd.f32 %v1934, %v1654
    %v2028 = vadd.f32 %v1934, %v1659
    %v2029 = vadd.f32 %v1934, %v1662
    %v2030 = vadd.f32 %v1934, %v1667
    %v2031 = vadd.f32 %v1934, %v1670
    %v2032 = vadd.f32 %v1934, %v1675
    %v2033 = vadd.f32 %v1934, %v1678
    %v2034 = vadd.f32 %v1934, %v1683
    %v2035 = vadd.f32 %v1934, %v1686
    %v2036 = vadd.f32 %v1934, %v1691
    %v2037 = vadd.f32 %v1934, %v1694
    %v2038 = vadd.f32 %v1934, %v1699
    %v2039 = vadd.f32 %v1934, %v1702
    %v2040 = vadd.f32 %v1934, %v1707
    %v2041 = vadd.f32 %v1934, %v1710
    %v2042 = vadd.f32 %v1934, %v1715
    %v2043 = vadd.f32 %v1934, %v1718
    %v2044 = vadd.f32 %v1934, %v1723
    %v2045 = vadd.f32 %v1934, %v1726
    %v2046 = vadd.f32 %v1934, %v1731
    %v2047 = vadd.f32 %v1934, %v1734
    %v2048 = vadd.f32 %v1934, %v1739
    %v2049 = vadd.f32 %v1934, %v1742
    %v2050 = vadd.f32 %v1934, %v1747
    %v2051 = vadd.f32 %v1934, %v1750
    %v2052 = vadd.f32 %v1934, %v1755
    %v2053 = vadd.f32 %v1934, %v1758
    %v2054 = vadd.f32 %v1934, %v1763
    %v2055 = vadd.f32 %v1934, %v1766
    %v2056 = vadd.f32 %v1934, %v1771
    %v2057 = vadd.f32 %v1934, %v1774
    %v2058 = vadd.f32 %v1934, %v1779
    %v2059 = vadd.f32 %v1934, %v1782
    %v2060 = vadd.f32 %v1934, %v1787
    %v2061 = vadd.f32 %v1934, %v1790
    %v2062 = vadd.f32 %v1934, %v1795
    %v2063 = vadd.f32 %v1934, %v1798
    %v2064 = vmul.f32 %v1801, %v1936
    %v2065 = vmul.f32 %v1802, %v1937
    %v2066 = vmul.f32 %v1803, %v1938
    %v2067 = vmul.f32 %v1804, %v1939
    %v2068 = vmul.f32 %v1805, %v1940
    %v2069 = vmul.f32 %v1806, %v1941
    %v2070 = vmul.f32 %v1807, %v1942
    %v2071 = vmul.f32 %v1808, %v1943
    %v2072 = vmul.f32 %v1809, %v1944
    %v2073 = vmul.f32 %v1810, %v1945
    %v2074 = vmul.f32 %v1811, %v1946
    %v2075 = vmul.f32 %v1812, %v1947
    %v2076 = vmul.f32 %v1813, %v1948
    %v2077 = vmul.f32 %v1814, %v1949
    %v2078 = vmul.f32 %v1815, %v1950
    %v2079 = vmul.f32 %v1816, %v1951
    %v2080 = vmul.f32 %v1817, %v1952
    %v2081 = vmul.f32 %v1818, %v1953
    %v2082 = vmul.f32 %v1819, %v1954
    %v2083 = vmul.f32 %v1820, %v1955
    %v2084 = vmul.f32 %v1821, %v1956
    %v2085 = vmul.f32 %v1822, %v1957
    %v2086 = vmul.f32 %v1823, %v1958
    %v2087 = vmul.f32 %v1824, %v1959
    %v2088 = vmul.f32 %v1825, %v1960
    %v2089 = vmul.f32 %v1826, %v1961
    %v2090 = vmul.f32 %v1827, %v1962
    %v2091 = vmul.f32 %v1828, %v1963
    %v2092 = vmul.f32 %v1829, %v1964
    %v2093 = vmul.f32 %v1830, %v1965
    %v2094 = vmul.f32 %v1831, %v1966
    %v2095 = vmul.f32 %v1832, %v1967
    %v2096 = vmul.f32 %v1833, %v1968
    %v2097 = vmul.f32 %v1834, %v1969
    %v2098 = vmul.f32 %v1835, %v1970
    %v2099 = vmul.f32 %v1836, %v1971
    %v2100 = vmul.f32 %v1837, %v1972
    %v2101 = vmul.f32 %v1838, %v1973
    %v2102 = vmul.f32 %v1839, %v1974
    %v2103 = vmul.f32 %v1840, %v1975
    %v2104 = vmul.f32 %v1841, %v1976
    %v2105 = vmul.f32 %v1842, %v1977
    %v2106 = vmul.f32 %v1843, %v1978
    %v2107 = vmul.f32 %v1844, %v1979
    %v2108 = vmul.f32 %v1845, %v1980
    %v2109 = vmul.f32 %v1846, %v1981
    %v2110 = vmul.f32 %v1847, %v1982
    %v2111 = vmul.f32 %v1848, %v1983
    %v2112 = vmul.f32 %v1849, %v1984
    %v2113 = vmul.f32 %v1850, %v1985
    %v2114 = vmul.f32 %v1851, %v1986
    %v2115 = vmul.f32 %v1852, %v1987
    %v2116 = vmul.f32 %v1853, %v1988
    %v2117 = vmul.f32 %v1854, %v1989
    %v2118 = vmul.f32 %v1855, %v1990
    %v2119 = vmul.f32 %v1856, %v1991
    %v2120 = vmul.f32 %v1857, %v1992
    %v2121 = vmul.f32 %v1858, %v1993
    %v2122 = vmul.f32 %v1859, %v1994
    %v2123 = vmul.f32 %v1860, %v1995
    %v2124 = vmul.f32 %v1861, %v1996
    %v2125 = vmul.f32 %v1862, %v1997
    %v2126 = vmul.f32 %v1863, %v1998
    %v2127 = vmul.f32 %v1864, %v1999
    %v2128 = vmul.f32 %v1865, %v2000
    %v2129 = vmul.f32 %v1866, %v2001
    %v2130 = vmul.f32 %v1867, %v2002
    %v2131 = vmul.f32 %v1868, %v2003
    %v2132 = vmul.f32 %v1869, %v2004
    %v2133 = vmul.f32 %v1870, %v2005
    %v2134 = vmul.f32 %v1871, %v2006
    %v2135 = vmul.f32 %v1872, %v2007
    %v2136 = vmul.f32 %v1873, %v2008
    %v2137 = vmul.f32 %v1874, %v2009
    %v2138 = vmul.f32 %v1875, %v2010
    %v2139 = vmul.f32 %v1876, %v2011
    %v2140 = vmul.f32 %v1877, %v2012
    %v2141 = vmul.f32 %v1878, %v2013
    %v2142 = vmul.f32 %v1879, %v2014
    %v2143 = vmul.f32 %v1880, %v2015
    %v2144 = vmul.f32 %v1881, %v2016
    %v2145 = vmul.f32 %v1882, %v2017
    %v2146 = vmul.f32 %v1883, %v2018
    %v2147 = vmul.f32 %v1884, %v2019
    %v2148 = vmul.f32 %v1885, %v2020
    %v2149 = vmul.f32 %v1886, %v2021
    %v2150 = vmul.f32 %v1887, %v2022
    %v2151 = vmul.f32 %v1888, %v2023
    %v2152 = vmul.f32 %v1889, %v2024
    %v2153 = vmul.f32 %v1890, %v2025
    %v2154 = vmul.f32 %v1891, %v2026
    %v2155 = vmul.f32 %v1892, %v2027
    %v2156 = vmul.f32 %v1893, %v2028
    %v2157 = vmul.f32 %v1894, %v2029
    %v2158 = vmul.f32 %v1895, %v2030
    %v2159 = vmul.f32 %v1896, %v2031
    %v2160 = vmul.f32 %v1897, %v2032
    %v2161 = vmul.f32 %v1898, %v2033
    %v2162 = vmul.f32 %v1899, %v2034
    %v2163 = vmul.f32 %v1900, %v2035
    %v2164 = vmul.f32 %v1901, %v2036
    %v2165 = vmul.f32 %v1902, %v2037
    %v2166 = vmul.f32 %v1903, %v2038
    %v2167 = vmul.f32 %v1904, %v2039
    %v2168 = vmul.f32 %v1905, %v2040
    %v2169 = vmul.f32 %v1906, %v2041
    %v2170 = vmul.f32 %v1907, %v2042
    %v2171 = vmul.f32 %v1908, %v2043
    %v2172 = vmul.f32 %v1909, %v2044
    %v2173 = vmul.f32 %v1910, %v2045
    %v2174 = vmul.f32 %v1911, %v2046
    %v2175 = vmul.f32 %v1912, %v2047
    %v2176 = vmul.f32 %v1913, %v2048
    %v2177 = vmul.f32 %v1914, %v2049
    %v2178 = vmul.f32 %v1915, %v2050
    %v2179 = vmul.f32 %v1916, %v2051
    %v2180 = vmul.f32 %v1917, %v2052
    %v2181 = vmul.f32 %v1918, %v2053
    %v2182 = vmul.f32 %v1919, %v2054
    %v2183 = vmul.f32 %v1920, %v2055
    %v2184 = vmul.f32 %v1921, %v2056
    %v2185 = vmul.f32 %v1922, %v2057
    %v2186 = vmul.f32 %v1923, %v2058
    %v2187 = vmul.f32 %v1924, %v2059
    %v2188 = vmul.f32 %v1925, %v2060
    %v2189 = vmul.f32 %v1926, %v2061
    %v2190 = vmul.f32 %v1927, %v2062
    %v2191 = vmul.f32 %v1928, %v2063
    %v2192 = vmin.f32 %v2064, 0.0
    %v2193 = vmin.f32 %v2065, 0.0
    %v2194 = vmin.f32 %v2066, 0.0
    %v2195 = vmin.f32 %v2067, 0.0
    %v2196 = vmin.f32 %v2068, 0.0
    %v2197 = vmin.f32 %v2069, 0.0
    %v2198 = vmin.f32 %v2070, 0.0
    %v2199 = vmin.f32 %v2071, 0.0
    %v2200 = vmin.f32 %v2072, 0.0
    %v2201 = vmin.f32 %v2073, 0.0
    %v2202 = vmin.f32 %v2074, 0.0
    %v2203 = vmin.f32 %v2075, 0.0
    %v2204 = vmin.f32 %v2076, 0.0
    %v2205 = vmin.f32 %v2077, 0.0
    %v2206 = vmin.f32 %v2078, 0.0
    %v2207 = vmin.f32 %v2079, 0.0
    %v2208 = vmin.f32 %v2080, 0.0
    %v2209 = vmin.f32 %v2081, 0.0
    %v2210 = vmin.f32 %v2082, 0.0
    %v2211 = vmin.f32 %v2083, 0.0
    %v2212 = vmin.f32 %v2084, 0.0
    %v2213 = vmin.f32 %v2085, 0.0
    %v2214 = vmin.f32 %v2086, 0.0
    %v2215 = vmin.f32 %v2087, 0.0
    %v2216 = vmin.f32 %v2088, 0.0
    %v2217 = vmin.f32 %v2089, 0.0
    %v2218 = vmin.f32 %v2090, 0.0
    %v2219 = vmin.f32 %v2091, 0.0
    %v2220 = vmin.f32 %v2092, 0.0
    %v2221 = vmin.f32 %v2093, 0.0
    %v2222 = vmin.f32 %v2094, 0.0
    %v2223 = vmin.f32 %v2095, 0.0
    %v2224 = vmin.f32 %v2096, 0.0
    %v2225 = vmin.f32 %v2097, 0.0
    %v2226 = vmin.f32 %v2098, 0.0
    %v2227 = vmin.f32 %v2099, 0.0
    %v2228 = vmin.f32 %v2100, 0.0
    %v2229 = vmin.f32 %v2101, 0.0
    %v2230 = vmin.f32 %v2102, 0.0
    %v2231 = vmin.f32 %v2103, 0.0
    %v2232 = vmin.f32 %v2104, 0.0
    %v2233 = vmin.f32 %v2105, 0.0
    %v2234 = vmin.f32 %v2106, 0.0
    %v2235 = vmin.f32 %v2107, 0.0
    %v2236 = vmin.f32 %v2108, 0.0
    %v2237 = vmin.f32 %v2109, 0.0
    %v2238 = vmin.f32 %v2110, 0.0
    %v2239 = vmin.f32 %v2111, 0.0
    %v2240 = vmin.f32 %v2112, 0.0
    %v2241 = vmin.f32 %v2113, 0.0
    %v2242 = vmin.f32 %v2114, 0.0
    %v2243 = vmin.f32 %v2115, 0.0
    %v2244 = vmin.f32 %v2116, 0.0
    %v2245 = vmin.f32 %v2117, 0.0
    %v2246 = vmin.f32 %v2118, 0.0
    %v2247 = vmin.f32 %v2119, 0.0
    %v2248 = vmin.f32 %v2120, 0.0
    %v2249 = vmin.f32 %v2121, 0.0
    %v2250 = vmin.f32 %v2122, 0.0
    %v2251 = vmin.f32 %v2123, 0.0
    %v2252 = vmin.f32 %v2124, 0.0
    %v2253 = vmin.f32 %v2125, 0.0
    %v2254 = vmin.f32 %v2126, 0.0
    %v2255 = vmin.f32 %v2127, 0.0
    %v2256 = vmin.f32 %v2128, 0.0
    %v2257 = vmin.f32 %v2129, 0.0
    %v2258 = vmin.f32 %v2130, 0.0
    %v2259 = vmin.f32 %v2131, 0.0
    %v2260 = vmin.f32 %v2132, 0.0
    %v2261 = vmin.f32 %v2133, 0.0
    %v2262 = vmin.f32 %v2134, 0.0
    %v2263 = vmin.f32 %v2135, 0.0
    %v2264 = vmin.f32 %v2136, 0.0
    %v2265 = vmin.f32 %v2137, 0.0
    %v2266 = vmin.f32 %v2138, 0.0
    %v2267 = vmin.f32 %v2139, 0.0
    %v2268 = vmin.f32 %v2140, 0.0
    %v2269 = vmin.f32 %v2141, 0.0
    %v2270 = vmin.f32 %v2142, 0.0
    %v2271 = vmin.f32 %v2143, 0.0
    %v2272 = vmin.f32 %v2144, 0.0
    %v2273 = vmin.f32 %v2145, 0.0
    %v2274 = vmin.f32 %v2146, 0.0
    %v2275 = vmin.f32 %v2147, 0.0
    %v2276 = vmin.f32 %v2148, 0.0
    %v2277 = vmin.f32 %v2149, 0.0
    %v2278 = vmin.f32 %v2150, 0.0
    %v2279 = vmin.f32 %v2151, 0.0
    %v2280 = vmin.f32 %v2152, 0.0
    %v2281 = vmin.f32 %v2153, 0.0
    %v2282 = vmin.f32 %v2154, 0.0
    %v2283 = vmin.f32 %v2155, 0.0
    %v2284 = vmin.f32 %v2156, 0.0
    %v2285 = vmin.f32 %v2157, 0.0
    %v2286 = vmin.f32 %v2158, 0.0
    %v2287 = vmin.f32 %v2159, 0.0
    %v2288 = vmin.f32 %v2160, 0.0
    %v2289 = vmin.f32 %v2161, 0.0
    %v2290 = vmin.f32 %v2162, 0.0
    %v2291 = vmin.f32 %v2163, 0.0
    %v2292 = vmin.f32 %v2164, 0.0
    %v2293 = vmin.f32 %v2165, 0.0
    %v2294 = vmin.f32 %v2166, 0.0
    %v2295 = vmin.f32 %v2167, 0.0
    %v2296 = vmin.f32 %v2168, 0.0
    %v2297 = vmin.f32 %v2169, 0.0
    %v2298 = vmin.f32 %v2170, 0.0
    %v2299 = vmin.f32 %v2171, 0.0
    %v2300 = vmin.f32 %v2172, 0.0
    %v2301 = vmin.f32 %v2173, 0.0
    %v2302 = vmin.f32 %v2174, 0.0
    %v2303 = vmin.f32 %v2175, 0.0
    %v2304 = vmin.f32 %v2176, 0.0
    %v2305 = vmin.f32 %v2177, 0.0
    %v2306 = vmin.f32 %v2178, 0.0
    %v2307 = vmin.f32 %v2179, 0.0
    %v2308 = vmin.f32 %v2180, 0.0
    %v2309 = vmin.f32 %v2181, 0.0
    %v2310 = vmin.f32 %v2182, 0.0
    %v2311 = vmin.f32 %v2183, 0.0
    %v2312 = vmin.f32 %v2184, 0.0
    %v2313 = vmin.f32 %v2185, 0.0
    %v2314 = vmin.f32 %v2186, 0.0
    %v2315 = vmin.f32 %v2187, 0.0
    %v2316 = vmin.f32 %v2188, 0.0
    %v2317 = vmin.f32 %v2189, 0.0
    %v2318 = vmin.f32 %v2190, 0.0
    %v2319 = vmin.f32 %v2191, 0.0
    %v2320 = vand.u32 2147483647, %v2064
    %v2321 = vand.u32 2147483647, %v2065
    %v2322 = vand.u32 2147483647, %v2066
    %v2323 = vand.u32 2147483647, %v2067
    %v2324 = vand.u32 2147483647, %v2068
    %v2325 = vand.u32 2147483647, %v2069
    %v2326 = vand.u32 2147483647, %v2070
    %v2327 = vand.u32 2147483647, %v2071
    %v2328 = vand.u32 2147483647, %v2072
    %v2329 = vand.u32 2147483647, %v2073
    %v2330 = vand.u32 2147483647, %v2074
    %v2331 = vand.u32 2147483647, %v2075
    %v2332 = vand.u32 2147483647, %v2076
    %v2333 = vand.u32 2147483647, %v2077
    %v2334 = vand.u32 2147483647, %v2078
    %v2335 = vand.u32 2147483647, %v2079
    %v2336 = vand.u32 2147483647, %v2080
    %v2337 = vand.u32 2147483647, %v2081
    %v2338 = vand.u32 2147483647, %v2082
    %v2339 = vand.u32 2147483647, %v2083
    %v2340 = vand.u32 2147483647, %v2084
    %v2341 = vand.u32 2147483647, %v2085
    %v2342 = vand.u32 2147483647, %v2086
    %v2343 = vand.u32 2147483647, %v2087
    %v2344 = vand.u32 2147483647, %v2088
    %v2345 = vand.u32 2147483647, %v2089
    %v2346 = vand.u32 2147483647, %v2090
    %v2347 = vand.u32 2147483647, %v2091
    %v2348 = vand.u32 2147483647, %v2092
    %v2349 = vand.u32 2147483647, %v2093
    %v2350 = vand.u32 2147483647, %v2094
    %v2351 = vand.u32 2147483647, %v2095
    %v2352 = vand.u32 2147483647, %v2096
    %v2353 = vand.u32 2147483647, %v2097
    %v2354 = vand.u32 2147483647, %v2098
    %v2355 = vand.u32 2147483647, %v2099
    %v2356 = vand.u32 2147483647, %v2100
    %v2357 = vand.u32 2147483647, %v2101
    %v2358 = vand.u32 2147483647, %v2102
    %v2359 = vand.u32 2147483647, %v2103
    %v2360 = vand.u32 2147483647, %v2104
    %v2361 = vand.u32 2147483647, %v2105
    %v2362 = vand.u32 2147483647, %v2106
    %v2363 = vand.u32 2147483647, %v2107
    %v2364 = vand.u32 2147483647, %v2108
    %v2365 = vand.u32 2147483647, %v2109
    %v2366 = vand.u32 2147483647, %v2110
    %v2367 = vand.u32 2147483647, %v2111
    %v2368 = vand.u32 2147483647, %v2112
    %v2369 = vand.u32 2147483647, %v2113
    %v2370 = vand.u32 2147483647, %v2114
    %v2371 = vand.u32 2147483647, %v2115
    %v2372 = vand.u32 2147483647, %v2116
    %v2373 = vand.u32 2147483647, %v2117
    %v2374 = vand.u32 2147483647, %v2118
    %v2375 = vand.u32 2147483647, %v2119
    %v2376 = vand.u32 2147483647, %v2120
    %v2377 = vand.u32 2147483647, %v2121
    %v2378 = vand.u32 2147483647, %v2122
    %v2379 = vand.u32 2147483647, %v2123
    %v2380 = vand.u32 2147483647, %v2124
    %v2381 = vand.u32 2147483647, %v2125
    %v2382 = vand.u32 2147483647, %v2126
    %v2383 = vand.u32 2147483647, %v2127
    %v2384 = vand.u32 2147483647, %v2128
    %v2385 = vand.u32 2147483647, %v2129
    %v2386 = vand.u32 2147483647, %v2130
    %v2387 = vand.u32 2147483647, %v2131
    %v2388 = vand.u32 2147483647, %v2132
    %v2389 = vand.u32 2147483647, %v2133
    %v2390 = vand.u32 2147483647, %v2134
    %v2391 = vand.u32 2147483647, %v2135
    %v2392 = vand.u32 2147483647, %v2136
    %v2393 = vand.u32 2147483647, %v2137
    %v2394 = vand.u32 2147483647, %v2138
    %v2395 = vand.u32 2147483647, %v2139
    %v2396 = vand.u32 2147483647, %v2140
    %v2397 = vand.u32 2147483647, %v2141
    %v2398 = vand.u32 2147483647, %v2142
    %v2399 = vand.u32 2147483647, %v2143
    %v2400 = vand.u32 2147483647, %v2144
    %v2401 = vand.u32 2147483647, %v2145
    %v2402 = vand.u32 2147483647, %v2146
    %v2403 = vand.u32 2147483647, %v2147
    %v2404 = vand.u32 2147483647, %v2148
    %v2405 = vand.u32 2147483647, %v2149
    %v2406 = vand.u32 2147483647, %v2150
    %v2407 = vand.u32 2147483647, %v2151
    %v2408 = vand.u32 2147483647, %v2152
    %v2409 = vand.u32 2147483647, %v2153
    %v2410 = vand.u32 2147483647, %v2154
    %v2411 = vand.u32 2147483647, %v2155
    %v2412 = vand.u32 2147483647, %v2156
    %v2413 = vand.u32 2147483647, %v2157
    %v2414 = vand.u32 2147483647, %v2158
    %v2415 = vand.u32 2147483647, %v2159
    %v2416 = vand.u32 2147483647, %v2160
    %v2417 = vand.u32 2147483647, %v2161
    %v2418 = vand.u32 2147483647, %v2162
    %v2419 = vand.u32 2147483647, %v2163
    %v2420 = vand.u32 2147483647, %v2164
    %v2421 = vand.u32 2147483647, %v2165
    %v2422 = vand.u32 2147483647, %v2166
    %v2423 = vand.u32 2147483647, %v2167
    %v2424 = vand.u32 2147483647, %v2168
    %v2425 = vand.u32 2147483647, %v2169
    %v2426 = vand.u32 2147483647, %v2170
    %v2427 = vand.u32 2147483647, %v2171
    %v2428 = vand.u32 2147483647, %v2172
    %v2429 = vand.u32 2147483647, %v2173
    %v2430 = vand.u32 2147483647, %v2174
    %v2431 = vand.u32 2147483647, %v2175
    %v2432 = vand.u32 2147483647, %v2176
    %v2433 = vand.u32 2147483647, %v2177
    %v2434 = vand.u32 2147483647, %v2178
    %v2435 = vand.u32 2147483647, %v2179
    %v2436 = vand.u32 2147483647, %v2180
    %v2437 = vand.u32 2147483647, %v2181
    %v2438 = vand.u32 2147483647, %v2182
    %v2439 = vand.u32 2147483647, %v2183
    %v2440 = vand.u32 2147483647, %v2184
    %v2441 = vand.u32 2147483647, %v2185
    %v2442 = vand.u32 2147483647, %v2186
    %v2443 = vand.u32 2147483647, %v2187
    %v2444 = vand.u32 2147483647, %v2188
    %v2445 = vand.u32 2147483647, %v2189
    %v2446 = vand.u32 2147483647, %v2190
    %v2447 = vand.u32 2147483647, %v2191
    %v2448 = vsub.f32 0.0, %v2320
    %v2449 = vsub.f32 0.0, %v2321
    %v2450 = vsub.f32 0.0, %v2322
    %v2451 = vsub.f32 0.0, %v2323
    %v2452 = vsub.f32 0.0, %v2324
    %v2453 = vsub.f32 0.0, %v2325
    %v2454 = vsub.f32 0.0, %v2326
    %v2455 = vsub.f32 0.0, %v2327
    %v2456 = vsub.f32 0.0, %v2328
    %v2457 = vsub.f32 0.0, %v2329
    %v2458 = vsub.f32 0.0, %v2330
    %v2459 = vsub.f32 0.0, %v2331
    %v2460 = vsub.f32 0.0, %v2332
    %v2461 = vsub.f32 0.0, %v2333
    %v2462 = vsub.f32 0.0, %v2334
    %v2463 = vsub.f32 0.0, %v2335
    %v2464 = vsub.f32 0.0, %v2336
    %v2465 = vsub.f32 0.0, %v2337
    %v2466 = vsub.f32 0.0, %v2338
    %v2467 = vsub.f32 0.0, %v2339
    %v2468 = vsub.f32 0.0, %v2340
    %v2469 = vsub.f32 0.0, %v2341
    %v2470 = vsub.f32 0.0, %v2342
    %v2471 = vsub.f32 0.0, %v2343
    %v2472 = vsub.f32 0.0, %v2344
    %v2473 = vsub.f32 0.0, %v2345
    %v2474 = vsub.f32 0.0, %v2346
    %v2475 = vsub.f32 0.0, %v2347
    %v2476 = vsub.f32 0.0, %v2348
    %v2477 = vsub.f32 0.0, %v2349
    %v2478 = vsub.f32 0.0, %v2350
    %v2479 = vsub.f32 0.0, %v2351
    %v2480 = vsub.f32 0.0, %v2352
    %v2481 = vsub.f32 0.0, %v2353
    %v2482 = vsub.f32 0.0, %v2354
    %v2483 = vsub.f32 0.0, %v2355
    %v2484 = vsub.f32 0.0, %v2356
    %v2485 = vsub.f32 0.0, %v2357
    %v2486 = vsub.f32 0.0, %v2358
    %v2487 = vsub.f32 0.0, %v2359
    %v2488 = vsub.f32 0.0, %v2360
    %v2489 = vsub.f32 0.0, %v2361
    %v2490 = vsub.f32 0.0, %v2362
    %v2491 = vsub.f32 0.0, %v2363
    %v2492 = vsub.f32 0.0, %v2364
    %v2493 = vsub.f32 0.0, %v2365
    %v2494 = vsub.f32 0.0, %v2366
    %v2495 = vsub.f32 0.0, %v2367
    %v2496 = vsub.f32 0.0, %v2368
    %v2497 = vsub.f32 0.0, %v2369
    %v2498 = vsub.f32 0.0, %v2370
    %v2499 = vsub.f32 0.0, %v2371
    %v2500 = vsub.f32 0.0, %v2372
    %v2501 = vsub.f32 0.0, %v2373
    %v2502 = vsub.f32 0.0, %v2374
    %v2503 = vsub.f32 0.0, %v2375
    %v2504 = vsub.f32 0.0, %v2376
    %v2505 = vsub.f32 0.0, %v2377
    %v2506 = vsub.f32 0.0, %v2378
    %v2507 = vsub.f32 0.0, %v2379
    %v2508 = vsub.f32 0.0, %v2380
    %v2509 = vsub.f32 0.0, %v2381
    %v2510 = vsub.f32 0.0, %v2382
    %v2511 = vsub.f32 0.0, %v2383
    %v2512 = vsub.f32 0.0, %v2384
    %v2513 = vsub.f32 0.0, %v2385
    %v2514 = vsub.f32 0.0, %v2386
    %v2515 = vsub.f32 0.0, %v2387
    %v2516 = vsub.f32 0.0, %v2388
    %v2517 = vsub.f32 0.0, %v2389
    %v2518 = vsub.f32 0.0, %v2390
    %v2519 = vsub.f32 0.0, %v2391
    %v2520 = vsub.f32 0.0, %v2392
    %v2521 = vsub.f32 0.0, %v2393
    %v2522 = vsub.f32 0.0, %v2394
    %v2523 = vsub.f32 0.0, %v2395
    %v2524 = vsub.f32 0.0, %v2396
    %v2525 = vsub.f32 0.0, %v2397
    %v2526 = vsub.f32 0.0, %v2398
    %v2527 = vsub.f32 0.0, %v2399
    %v2528 = vsub.f32 0.0, %v2400
    %v2529 = vsub.f32 0.0, %v2401
    %v2530 = vsub.f32 0.0, %v2402
    %v2531 = vsub.f32 0.0, %v2403
    %v2532 = vsub.f32 0.0, %v2404
    %v2533 = vsub.f32 0.0, %v2405
    %v2534 = vsub.f32 0.0, %v2406
    %v2535 = vsub.f32 0.0, %v2407
    %v2536 = vsub.f32 0.0, %v2408
    %v2537 = vsub.f32 0.0, %v2409
    %v2538 = vsub.f32 0.0, %v2410
    %v2539 = vsub.f32 0.0, %v2411
    %v2540 = vsub.f32 0.0, %v2412
    %v2541 = vsub.f32 0.0, %v2413
    %v2542 = vsub.f32 0.0, %v2414
    %v2543 = vsub.f32 0.0, %v2415
    %v2544 = vsub.f32 0.0, %v2416
    %v2545 = vsub.f32 0.0, %v2417
    %v2546 = vsub.f32 0.0, %v2418
    %v2547 = vsub.f32 0.0, %v2419
    %v2548 = vsub.f32 0.0, %v2420
    %v2549 = vsub.f32 0.0, %v2421
    %v2550 = vsub.f32 0.0, %v2422
    %v2551 = vsub.f32 0.0, %v2423
    %v2552 = vsub.f32 0.0, %v2424
    %v2553 = vsub.f32 0.0, %v2425
    %v2554 = vsub.f32 0.0, %v2426
    %v2555 = vsub.f32 0.0, %v2427
    %v2556 = vsub.f32 0.0, %v2428
    %v2557 = vsub.f32 0.0, %v2429
    %v2558 = vsub.f32 0.0, %v2430
    %v2559 = vsub.f32 0.0, %v2431
    %v2560 = vsub.f32 0.0, %v2432
    %v2561 = vsub.f32 0.0, %v2433
    %v2562 = vsub.f32 0.0, %v2434
    %v2563 = vsub.f32 0.0, %v2435
    %v2564 = vsub.f32 0.0, %v2436
    %v2565 = vsub.f32 0.0, %v2437
    %v2566 = vsub.f32 0.0, %v2438
    %v2567 = vsub.f32 0.0, %v2439
    %v2568 = vsub.f32 0.0, %v2440
    %v2569 = vsub.f32 0.0, %v2441
    %v2570 = vsub.f32 0.0, %v2442
    %v2571 = vsub.f32 0.0, %v2443
    %v2572 = vsub.f32 0.0, %v2444
    %v2573 = vsub.f32 0.0, %v2445
    %v2574 = vsub.f32 0.0, %v2446
    %v2575 = vsub.f32 0.0, %v2447
    %v2576 = vmul.f32 %v2448, 1.442695
    %v2577 = vpow.pop %v2576
    %v2578 = vmul.f32 %v2449, 1.442695
    %v2579 = vpow.pop %v2578
    %v2580 = vmul.f32 %v2450, 1.442695
    %v2581 = vpow.pop %v2580
    %v2582 = vmul.f32 %v2451, 1.442695
    %v2583 = vpow.pop %v2582
    %v2584 = vmul.f32 %v2452, 1.442695
    %v2585 = vpow.pop %v2584
    %v2586 = vmul.f32 %v2453, 1.442695
    %v2587 = vpow.pop %v2586
    %v2588 = vmul.f32 %v2454, 1.442695
    %v2589 = vpow.pop %v2588
    %v2590 = vmul.f32 %v2455, 1.442695
    %v2591 = vpow.pop %v2590
    %v2592 = vmul.f32 %v2456, 1.442695
    %v2593 = vpow.pop %v2592
    %v2594 = vmul.f32 %v2457, 1.442695
    %v2595 = vpow.pop %v2594
    %v2596 = vmul.f32 %v2458, 1.442695
    %v2597 = vpow.pop %v2596
    %v2598 = vmul.f32 %v2459, 1.442695
    %v2599 = vpow.pop %v2598
    %v2600 = vmul.f32 %v2460, 1.442695
    %v2601 = vpow.pop %v2600
    %v2602 = vmul.f32 %v2461, 1.442695
    %v2603 = vpow.pop %v2602
    %v2604 = vmul.f32 %v2462, 1.442695
    %v2605 = vpow.pop %v2604
    %v2606 = vmul.f32 %v2463, 1.442695
    %v2607 = vpow.pop %v2606
    %v2608 = vmul.f32 %v2464, 1.442695
    %v2609 = vpow.pop %v2608
    %v2610 = vmul.f32 %v2465, 1.442695
    %v2611 = vpow.pop %v2610
    %v2612 = vmul.f32 %v2466, 1.442695
    %v2613 = vpow.pop %v2612
    %v2614 = vmul.f32 %v2467, 1.442695
    %v2615 = vpow.pop %v2614
    %v2616 = vmul.f32 %v2468, 1.442695
    %v2617 = vpow.pop %v2616
    %v2618 = vmul.f32 %v2469, 1.442695
    %v2619 = vpow.pop %v2618
    %v2620 = vmul.f32 %v2470, 1.442695
    %v2621 = vpow.pop %v2620
    %v2622 = vmul.f32 %v2471, 1.442695
    %v2623 = vpow.pop %v2622
    %v2624 = vmul.f32 %v2472, 1.442695
    %v2625 = vpow.pop %v2624
    %v2626 = vmul.f32 %v2473, 1.442695
    %v2627 = vpow.pop %v2626
    %v2628 = vmul.f32 %v2474, 1.442695
    %v2629 = vpow.pop %v2628
    %v2630 = vmul.f32 %v2475, 1.442695
    %v2631 = vpow.pop %v2630
    %v2632 = vmul.f32 %v2476, 1.442695
    %v2633 = vpow.pop %v2632
    %v2634 = vmul.f32 %v2477, 1.442695
    %v2635 = vpow.pop %v2634
    %v2636 = vmul.f32 %v2478, 1.442695
    %v2637 = vpow.pop %v2636
    %v2638 = vmul.f32 %v2479, 1.442695
    %v2639 = vpow.pop %v2638
    %v2640 = vmul.f32 %v2480, 1.442695
    %v2641 = vpow.pop %v2640
    %v2642 = vmul.f32 %v2481, 1.442695
    %v2643 = vpow.pop %v2642
    %v2644 = vmul.f32 %v2482, 1.442695
    %v2645 = vpow.pop %v2644
    %v2646 = vmul.f32 %v2483, 1.442695
    %v2647 = vpow.pop %v2646
    %v2648 = vmul.f32 %v2484, 1.442695
    %v2649 = vpow.pop %v2648
    %v2650 = vmul.f32 %v2485, 1.442695
    %v2651 = vpow.pop %v2650
    %v2652 = vmul.f32 %v2486, 1.442695
    %v2653 = vpow.pop %v2652
    %v2654 = vmul.f32 %v2487, 1.442695
    %v2655 = vpow.pop %v2654
    %v2656 = vmul.f32 %v2488, 1.442695
    %v2657 = vpow.pop %v2656
    %v2658 = vmul.f32 %v2489, 1.442695
    %v2659 = vpow.pop %v2658
    %v2660 = vmul.f32 %v2490, 1.442695
    %v2661 = vpow.pop %v2660
    %v2662 = vmul.f32 %v2491, 1.442695
    %v2663 = vpow.pop %v2662
    %v2664 = vmul.f32 %v2492, 1.442695
    %v2665 = vpow.pop %v2664
    %v2666 = vmul.f32 %v2493, 1.442695
    %v2667 = vpow.pop %v2666
    %v2668 = vmul.f32 %v2494, 1.442695
    %v2669 = vpow.pop %v2668
    %v2670 = vmul.f32 %v2495, 1.442695
    %v2671 = vpow.pop %v2670
    %v2672 = vmul.f32 %v2496, 1.442695
    %v2673 = vpow.pop %v2672
    %v2674 = vmul.f32 %v2497, 1.442695
    %v2675 = vpow.pop %v2674
    %v2676 = vmul.f32 %v2498, 1.442695
    %v2677 = vpow.pop %v2676
    %v2678 = vmul.f32 %v2499, 1.442695
    %v2679 = vpow.pop %v2678
    %v2680 = vmul.f32 %v2500, 1.442695
    %v2681 = vpow.pop %v2680
    %v2682 = vmul.f32 %v2501, 1.442695
    %v2683 = vpow.pop %v2682
    %v2684 = vmul.f32 %v2502, 1.442695
    %v2685 = vpow.pop %v2684
    %v2686 = vmul.f32 %v2503, 1.442695
    %v2687 = vpow.pop %v2686
    %v2688 = vmul.f32 %v2504, 1.442695
    %v2689 = vpow.pop %v2688
    %v2690 = vmul.f32 %v2505, 1.442695
    %v2691 = vpow.pop %v2690
    %v2692 = vmul.f32 %v2506, 1.442695
    %v2693 = vpow.pop %v2692
    %v2694 = vmul.f32 %v2507, 1.442695
    %v2695 = vpow.pop %v2694
    %v2696 = vmul.f32 %v2508, 1.442695
    %v2697 = vpow.pop %v2696
    %v2698 = vmul.f32 %v2509, 1.442695
    %v2699 = vpow.pop %v2698
    %v2700 = vmul.f32 %v2510, 1.442695
    %v2701 = vpow.pop %v2700
    %v2702 = vmul.f32 %v2511, 1.442695
    %v2703 = vpow.pop %v2702
    %v2704 = vmul.f32 %v2512, 1.442695
    %v2705 = vpow.pop %v2704
    %v2706 = vmul.f32 %v2513, 1.442695
    %v2707 = vpow.pop %v2706
    %v2708 = vmul.f32 %v2514, 1.442695
    %v2709 = vpow.pop %v2708
    %v2710 = vmul.f32 %v2515, 1.442695
    %v2711 = vpow.pop %v2710
    %v2712 = vmul.f32 %v2516, 1.442695
    %v2713 = vpow.pop %v2712
    %v2714 = vmul.f32 %v2517, 1.442695
    %v2715 = vpow.pop %v2714
    %v2716 = vmul.f32 %v2518, 1.442695
    %v2717 = vpow.pop %v2716
    %v2718 = vmul.f32 %v2519, 1.442695
    %v2719 = vpow.pop %v2718
    %v2720 = vmul.f32 %v2520, 1.442695
    %v2721 = vpow.pop %v2720
    %v2722 = vmul.f32 %v2521, 1.442695
    %v2723 = vpow.pop %v2722
    %v2724 = vmul.f32 %v2522, 1.442695
    %v2725 = vpow.pop %v2724
    %v2726 = vmul.f32 %v2523, 1.442695
    %v2727 = vpow.pop %v2726
    %v2728 = vmul.f32 %v2524, 1.442695
    %v2729 = vpow.pop %v2728
    %v2730 = vmul.f32 %v2525, 1.442695
    %v2731 = vpow.pop %v2730
    %v2732 = vmul.f32 %v2526, 1.442695
    %v2733 = vpow.pop %v2732
    %v2734 = vmul.f32 %v2527, 1.442695
    %v2735 = vpow.pop %v2734
    %v2736 = vmul.f32 %v2528, 1.442695
    %v2737 = vpow.pop %v2736
    %v2738 = vmul.f32 %v2529, 1.442695
    %v2739 = vpow.pop %v2738
    %v2740 = vmul.f32 %v2530, 1.442695
    %v2741 = vpow.pop %v2740
    %v2742 = vmul.f32 %v2531, 1.442695
    %v2743 = vpow.pop %v2742
    %v2744 = vmul.f32 %v2532, 1.442695
    %v2745 = vpow.pop %v2744
    %v2746 = vmul.f32 %v2533, 1.442695
    %v2747 = vpow.pop %v2746
    %v2748 = vmul.f32 %v2534, 1.442695
    %v2749 = vpow.pop %v2748
    %v2750 = vmul.f32 %v2535, 1.442695
    %v2751 = vpow.pop %v2750
    %v2752 = vmul.f32 %v2536, 1.442695
    %v2753 = vpow.pop %v2752
    %v2754 = vmul.f32 %v2537, 1.442695
    %v2755 = vpow.pop %v2754
    %v2756 = vmul.f32 %v2538, 1.442695
    %v2757 = vpow.pop %v2756
    %v2758 = vmul.f32 %v2539, 1.442695
    %v2759 = vpow.pop %v2758
    %v2760 = vmul.f32 %v2540, 1.442695
    %v2761 = vpow.pop %v2760
    %v2762 = vmul.f32 %v2541, 1.442695
    %v2763 = vpow.pop %v2762
    %v2764 = vmul.f32 %v2542, 1.442695
    %v2765 = vpow.pop %v2764
    %v2766 = vmul.f32 %v2543, 1.442695
    %v2767 = vpow.pop %v2766
    %v2768 = vmul.f32 %v2544, 1.442695
    %v2769 = vpow.pop %v2768
    %v2770 = vmul.f32 %v2545, 1.442695
    %v2771 = vpow.pop %v2770
    %v2772 = vmul.f32 %v2546, 1.442695
    %v2773 = vpow.pop %v2772
    %v2774 = vmul.f32 %v2547, 1.442695
    %v2775 = vpow.pop %v2774
    %v2776 = vmul.f32 %v2548, 1.442695
    %v2777 = vpow.pop %v2776
    %v2778 = vmul.f32 %v2549, 1.442695
    %v2779 = vpow.pop %v2778
    %v2780 = vmul.f32 %v2550, 1.442695
    %v2781 = vpow.pop %v2780
    %v2782 = vmul.f32 %v2551, 1.442695
    %v2783 = vpow.pop %v2782
    %v2784 = vmul.f32 %v2552, 1.442695
    %v2785 = vpow.pop %v2784
    %v2786 = vmul.f32 %v2553, 1.442695
    %v2787 = vpow.pop %v2786
    %v2788 = vmul.f32 %v2554, 1.442695
    %v2789 = vpow.pop %v2788
    %v2790 = vmul.f32 %v2555, 1.442695
    %v2791 = vpow.pop %v2790
    %v2792 = vmul.f32 %v2556, 1.442695
    %v2793 = vpow.pop %v2792
    %v2794 = vmul.f32 %v2557, 1.442695
    %v2795 = vpow.pop %v2794
    %v2796 = vmul.f32 %v2558, 1.442695
    %v2797 = vpow.pop %v2796
    %v2798 = vmul.f32 %v2559, 1.442695
    %v2799 = vpow.pop %v2798
    %v2800 = vmul.f32 %v2560, 1.442695
    %v2801 = vpow.pop %v2800
    %v2802 = vmul.f32 %v2561, 1.442695
    %v2803 = vpow.pop %v2802
    %v2804 = vmul.f32 %v2562, 1.442695
    %v2805 = vpow.pop %v2804
    %v2806 = vmul.f32 %v2563, 1.442695
    %v2807 = vpow.pop %v2806
    %v2808 = vmul.f32 %v2564, 1.442695
    %v2809 = vpow.pop %v2808
    %v2810 = vmul.f32 %v2565, 1.442695
    %v2811 = vpow.pop %v2810
    %v2812 = vmul.f32 %v2566, 1.442695
    %v2813 = vpow.pop %v2812
    %v2814 = vmul.f32 %v2567, 1.442695
    %v2815 = vpow.pop %v2814
    %v2816 = vmul.f32 %v2568, 1.442695
    %v2817 = vpow.pop %v2816
    %v2818 = vmul.f32 %v2569, 1.442695
    %v2819 = vpow.pop %v2818
    %v2820 = vmul.f32 %v2570, 1.442695
    %v2821 = vpow.pop %v2820
    %v2822 = vmul.f32 %v2571, 1.442695
    %v2823 = vpow.pop %v2822
    %v2824 = vmul.f32 %v2572, 1.442695
    %v2825 = vpow.pop %v2824
    %v2826 = vmul.f32 %v2573, 1.442695
    %v2827 = vpow.pop %v2826
    %v2828 = vmul.f32 %v2574, 1.442695
    %v2829 = vpow.pop %v2828
    %v2830 = vmul.f32 %v2575, 1.442695
    %v2831 = vpow.pop %v2830
    %v2832 = vadd.f32 %v2577, 1.0
    %v2833 = vlog2.pop %v2832
    %v2834 = vmul.f32 %v2833, 0.6931472
    %v2835 = vmul.f32 -0.5, %v2577
    %v2836 = vadd.f32 %v2835, 1.0
    %v2837 = vmul.f32 %v2836, %v2577
    %v2838 = vand.u32 2147483647, %v2577
    %vm2839 = vcmp.lt.f32.partialorder %v2838, 0.0004427343
    %v2840 = vsel %vm2839, %v2837, %v2834
    %v2841 = vadd.f32 %v2579, 1.0
    %v2842 = vlog2.pop %v2841
    %v2843 = vmul.f32 %v2842, 0.6931472
    %v2844 = vmul.f32 -0.5, %v2579
    %v2845 = vadd.f32 %v2844, 1.0
    %v2846 = vmul.f32 %v2845, %v2579
    %v2847 = vand.u32 2147483647, %v2579
    %vm2848 = vcmp.lt.f32.partialorder %v2847, 0.0004427343
    %v2849 = vsel %vm2848, %v2846, %v2843
    %v2850 = vadd.f32 %v2581, 1.0
    %v2851 = vlog2.pop %v2850
    %v2852 = vmul.f32 %v2851, 0.6931472
    %v2853 = vmul.f32 -0.5, %v2581
    %v2854 = vadd.f32 %v2853, 1.0
    %v2855 = vmul.f32 %v2854, %v2581
    %v2856 = vand.u32 2147483647, %v2581
    %vm2857 = vcmp.lt.f32.partialorder %v2856, 0.0004427343
    %v2858 = vsel %vm2857, %v2855, %v2852
    %v2859 = vadd.f32 %v2583, 1.0
    %v2860 = vlog2.pop %v2859
    %v2861 = vmul.f32 %v2860, 0.6931472
    %v2862 = vmul.f32 -0.5, %v2583
    %v2863 = vadd.f32 %v2862, 1.0
    %v2864 = vmul.f32 %v2863, %v2583
    %v2865 = vand.u32 2147483647, %v2583
    %vm2866 = vcmp.lt.f32.partialorder %v2865, 0.0004427343
    %v2867 = vsel %vm2866, %v2864, %v2861
    %v2868 = vadd.f32 %v2585, 1.0
    %v2869 = vlog2.pop %v2868
    %v2870 = vmul.f32 %v2869, 0.6931472
    %v2871 = vmul.f32 -0.5, %v2585
    %v2872 = vadd.f32 %v2871, 1.0
    %v2873 = vmul.f32 %v2872, %v2585
    %v2874 = vand.u32 2147483647, %v2585
    %vm2875 = vcmp.lt.f32.partialorder %v2874, 0.0004427343
    %v2876 = vsel %vm2875, %v2873, %v2870
    %v2877 = vadd.f32 %v2587, 1.0
    %v2878 = vlog2.pop %v2877
    %v2879 = vmul.f32 %v2878, 0.6931472
    %v2880 = vmul.f32 -0.5, %v2587
    %v2881 = vadd.f32 %v2880, 1.0
    %v2882 = vmul.f32 %v2881, %v2587
    %v2883 = vand.u32 2147483647, %v2587
    %vm2884 = vcmp.lt.f32.partialorder %v2883, 0.0004427343
    %v2885 = vsel %vm2884, %v2882, %v2879
    %v2886 = vadd.f32 %v2589, 1.0
    %v2887 = vlog2.pop %v2886
    %v2888 = vmul.f32 %v2887, 0.6931472
    %v2889 = vmul.f32 -0.5, %v2589
    %v2890 = vadd.f32 %v2889, 1.0
    %v2891 = vmul.f32 %v2890, %v2589
    %v2892 = vand.u32 2147483647, %v2589
    %vm2893 = vcmp.lt.f32.partialorder %v2892, 0.0004427343
    %v2894 = vsel %vm2893, %v2891, %v2888
    %v2895 = vadd.f32 %v2591, 1.0
    %v2896 = vlog2.pop %v2895
    %v2897 = vmul.f32 %v2896, 0.6931472
    %v2898 = vmul.f32 -0.5, %v2591
    %v2899 = vadd.f32 %v2898, 1.0
    %v2900 = vmul.f32 %v2899, %v2591
    %v2901 = vand.u32 2147483647, %v2591
    %vm2902 = vcmp.lt.f32.partialorder %v2901, 0.0004427343
    %v2903 = vsel %vm2902, %v2900, %v2897
    %v2904 = vadd.f32 %v2593, 1.0
    %v2905 = vlog2.pop %v2904
    %v2906 = vmul.f32 %v2905, 0.6931472
    %v2907 = vmul.f32 -0.5, %v2593
    %v2908 = vadd.f32 %v2907, 1.0
    %v2909 = vmul.f32 %v2908, %v2593
    %v2910 = vand.u32 2147483647, %v2593
    %vm2911 = vcmp.lt.f32.partialorder %v2910, 0.0004427343
    %v2912 = vsel %vm2911, %v2909, %v2906
    %v2913 = vadd.f32 %v2595, 1.0
    %v2914 = vlog2.pop %v2913
    %v2915 = vmul.f32 %v2914, 0.6931472
    %v2916 = vmul.f32 -0.5, %v2595
    %v2917 = vadd.f32 %v2916, 1.0
    %v2918 = vmul.f32 %v2917, %v2595
    %v2919 = vand.u32 2147483647, %v2595
    %vm2920 = vcmp.lt.f32.partialorder %v2919, 0.0004427343
    %v2921 = vsel %vm2920, %v2918, %v2915
    %v2922 = vadd.f32 %v2597, 1.0
    %v2923 = vlog2.pop %v2922
    %v2924 = vmul.f32 %v2923, 0.6931472
    %v2925 = vmul.f32 -0.5, %v2597
    %v2926 = vadd.f32 %v2925, 1.0
    %v2927 = vmul.f32 %v2926, %v2597
    %v2928 = vand.u32 2147483647, %v2597
    %vm2929 = vcmp.lt.f32.partialorder %v2928, 0.0004427343
    %v2930 = vsel %vm2929, %v2927, %v2924
    %v2931 = vadd.f32 %v2599, 1.0
    %v2932 = vlog2.pop %v2931
    %v2933 = vmul.f32 %v2932, 0.6931472
    %v2934 = vmul.f32 -0.5, %v2599
    %v2935 = vadd.f32 %v2934, 1.0
    %v2936 = vmul.f32 %v2935, %v2599
    %v2937 = vand.u32 2147483647, %v2599
    %vm2938 = vcmp.lt.f32.partialorder %v2937, 0.0004427343
    %v2939 = vsel %vm2938, %v2936, %v2933
    %v2940 = vadd.f32 %v2601, 1.0
    %v2941 = vlog2.pop %v2940
    %v2942 = vmul.f32 %v2941, 0.6931472
    %v2943 = vmul.f32 -0.5, %v2601
    %v2944 = vadd.f32 %v2943, 1.0
    %v2945 = vmul.f32 %v2944, %v2601
    %v2946 = vand.u32 2147483647, %v2601
    %vm2947 = vcmp.lt.f32.partialorder %v2946, 0.0004427343
    %v2948 = vsel %vm2947, %v2945, %v2942
    %v2949 = vadd.f32 %v2603, 1.0
    %v2950 = vlog2.pop %v2949
    %v2951 = vmul.f32 %v2950, 0.6931472
    %v2952 = vmul.f32 -0.5, %v2603
    %v2953 = vadd.f32 %v2952, 1.0
    %v2954 = vmul.f32 %v2953, %v2603
    %v2955 = vand.u32 2147483647, %v2603
    %vm2956 = vcmp.lt.f32.partialorder %v2955, 0.0004427343
    %v2957 = vsel %vm2956, %v2954, %v2951
    %v2958 = vadd.f32 %v2605, 1.0
    %v2959 = vlog2.pop %v2958
    %v2960 = vmul.f32 %v2959, 0.6931472
    %v2961 = vmul.f32 -0.5, %v2605
    %v2962 = vadd.f32 %v2961, 1.0
    %v2963 = vmul.f32 %v2962, %v2605
    %v2964 = vand.u32 2147483647, %v2605
    %vm2965 = vcmp.lt.f32.partialorder %v2964, 0.0004427343
    %v2966 = vsel %vm2965, %v2963, %v2960
    %v2967 = vadd.f32 %v2607, 1.0
    %v2968 = vlog2.pop %v2967
    %v2969 = vmul.f32 %v2968, 0.6931472
    %v2970 = vmul.f32 -0.5, %v2607
    %v2971 = vadd.f32 %v2970, 1.0
    %v2972 = vmul.f32 %v2971, %v2607
    %v2973 = vand.u32 2147483647, %v2607
    %vm2974 = vcmp.lt.f32.partialorder %v2973, 0.0004427343
    %v2975 = vsel %vm2974, %v2972, %v2969
    %v2976 = vadd.f32 %v2609, 1.0
    %v2977 = vlog2.pop %v2976
    %v2978 = vmul.f32 %v2977, 0.6931472
    %v2979 = vmul.f32 -0.5, %v2609
    %v2980 = vadd.f32 %v2979, 1.0
    %v2981 = vmul.f32 %v2980, %v2609
    %v2982 = vand.u32 2147483647, %v2609
    %vm2983 = vcmp.lt.f32.partialorder %v2982, 0.0004427343
    %v2984 = vsel %vm2983, %v2981, %v2978
    %v2985 = vadd.f32 %v2611, 1.0
    %v2986 = vlog2.pop %v2985
    %v2987 = vmul.f32 %v2986, 0.6931472
    %v2988 = vmul.f32 -0.5, %v2611
    %v2989 = vadd.f32 %v2988, 1.0
    %v2990 = vmul.f32 %v2989, %v2611
    %v2991 = vand.u32 2147483647, %v2611
    %vm2992 = vcmp.lt.f32.partialorder %v2991, 0.0004427343
    %v2993 = vsel %vm2992, %v2990, %v2987
    %v2994 = vadd.f32 %v2613, 1.0
    %v2995 = vlog2.pop %v2994
    %v2996 = vmul.f32 %v2995, 0.6931472
    %v2997 = vmul.f32 -0.5, %v2613
    %v2998 = vadd.f32 %v2997, 1.0
    %v2999 = vmul.f32 %v2998, %v2613
    %v3000 = vand.u32 2147483647, %v2613
    %vm3001 = vcmp.lt.f32.partialorder %v3000, 0.0004427343
    %v3002 = vsel %vm3001, %v2999, %v2996
    %v3003 = vadd.f32 %v2615, 1.0
    %v3004 = vlog2.pop %v3003
    %v3005 = vmul.f32 %v3004, 0.6931472
    %v3006 = vmul.f32 -0.5, %v2615
    %v3007 = vadd.f32 %v3006, 1.0
    %v3008 = vmul.f32 %v3007, %v2615
    %v3009 = vand.u32 2147483647, %v2615
    %vm3010 = vcmp.lt.f32.partialorder %v3009, 0.0004427343
    %v3011 = vsel %vm3010, %v3008, %v3005
    %v3012 = vadd.f32 %v2617, 1.0
    %v3013 = vlog2.pop %v3012
    %v3014 = vmul.f32 %v3013, 0.6931472
    %v3015 = vmul.f32 -0.5, %v2617
    %v3016 = vadd.f32 %v3015, 1.0
    %v3017 = vmul.f32 %v3016, %v2617
    %v3018 = vand.u32 2147483647, %v2617
    %vm3019 = vcmp.lt.f32.partialorder %v3018, 0.0004427343
    %v3020 = vsel %vm3019, %v3017, %v3014
    %v3021 = vadd.f32 %v2619, 1.0
    %v3022 = vlog2.pop %v3021
    %v3023 = vmul.f32 %v3022, 0.6931472
    %v3024 = vmul.f32 -0.5, %v2619
    %v3025 = vadd.f32 %v3024, 1.0
    %v3026 = vmul.f32 %v3025, %v2619
    %v3027 = vand.u32 2147483647, %v2619
    %vm3028 = vcmp.lt.f32.partialorder %v3027, 0.0004427343
    %v3029 = vsel %vm3028, %v3026, %v3023
    %v3030 = vadd.f32 %v2621, 1.0
    %v3031 = vlog2.pop %v3030
    %v3032 = vmul.f32 %v3031, 0.6931472
    %v3033 = vmul.f32 -0.5, %v2621
    %v3034 = vadd.f32 %v3033, 1.0
    %v3035 = vmul.f32 %v3034, %v2621
    %v3036 = vand.u32 2147483647, %v2621
    %vm3037 = vcmp.lt.f32.partialorder %v3036, 0.0004427343
    %v3038 = vsel %vm3037, %v3035, %v3032
    %v3039 = vadd.f32 %v2623, 1.0
    %v3040 = vlog2.pop %v3039
    %v3041 = vmul.f32 %v3040, 0.6931472
    %v3042 = vmul.f32 -0.5, %v2623
    %v3043 = vadd.f32 %v3042, 1.0
    %v3044 = vmul.f32 %v3043, %v2623
    %v3045 = vand.u32 2147483647, %v2623
    %vm3046 = vcmp.lt.f32.partialorder %v3045, 0.0004427343
    %v3047 = vsel %vm3046, %v3044, %v3041
    %v3048 = vadd.f32 %v2625, 1.0
    %v3049 = vlog2.pop %v3048
    %v3050 = vmul.f32 %v3049, 0.6931472
    %v3051 = vmul.f32 -0.5, %v2625
    %v3052 = vadd.f32 %v3051, 1.0
    %v3053 = vmul.f32 %v3052, %v2625
    %v3054 = vand.u32 2147483647, %v2625
    %vm3055 = vcmp.lt.f32.partialorder %v3054, 0.0004427343
    %v3056 = vsel %vm3055, %v3053, %v3050
    %v3057 = vadd.f32 %v2627, 1.0
    %v3058 = vlog2.pop %v3057
    %v3059 = vmul.f32 %v3058, 0.6931472
    %v3060 = vmul.f32 -0.5, %v2627
    %v3061 = vadd.f32 %v3060, 1.0
    %v3062 = vmul.f32 %v3061, %v2627
    %v3063 = vand.u32 2147483647, %v2627
    %vm3064 = vcmp.lt.f32.partialorder %v3063, 0.0004427343
    %v3065 = vsel %vm3064, %v3062, %v3059
    %v3066 = vadd.f32 %v2629, 1.0
    %v3067 = vlog2.pop %v3066
    %v3068 = vmul.f32 %v3067, 0.6931472
    %v3069 = vmul.f32 -0.5, %v2629
    %v3070 = vadd.f32 %v3069, 1.0
    %v3071 = vmul.f32 %v3070, %v2629
    %v3072 = vand.u32 2147483647, %v2629
    %vm3073 = vcmp.lt.f32.partialorder %v3072, 0.0004427343
    %v3074 = vsel %vm3073, %v3071, %v3068
    %v3075 = vadd.f32 %v2631, 1.0
    %v3076 = vlog2.pop %v3075
    %v3077 = vmul.f32 %v3076, 0.6931472
    %v3078 = vmul.f32 -0.5, %v2631
    %v3079 = vadd.f32 %v3078, 1.0
    %v3080 = vmul.f32 %v3079, %v2631
    %v3081 = vand.u32 2147483647, %v2631
    %vm3082 = vcmp.lt.f32.partialorder %v3081, 0.0004427343
    %v3083 = vsel %vm3082, %v3080, %v3077
    %v3084 = vadd.f32 %v2633, 1.0
    %v3085 = vlog2.pop %v3084
    %v3086 = vmul.f32 %v3085, 0.6931472
    %v3087 = vmul.f32 -0.5, %v2633
    %v3088 = vadd.f32 %v3087, 1.0
    %v3089 = vmul.f32 %v3088, %v2633
    %v3090 = vand.u32 2147483647, %v2633
    %vm3091 = vcmp.lt.f32.partialorder %v3090, 0.0004427343
    %v3092 = vsel %vm3091, %v3089, %v3086
    %v3093 = vadd.f32 %v2635, 1.0
    %v3094 = vlog2.pop %v3093
    %v3095 = vmul.f32 %v3094, 0.6931472
    %v3096 = vmul.f32 -0.5, %v2635
    %v3097 = vadd.f32 %v3096, 1.0
    %v3098 = vmul.f32 %v3097, %v2635
    %v3099 = vand.u32 2147483647, %v2635
    %vm3100 = vcmp.lt.f32.partialorder %v3099, 0.0004427343
    %v3101 = vsel %vm3100, %v3098, %v3095
    %v3102 = vadd.f32 %v2637, 1.0
    %v3103 = vlog2.pop %v3102
    %v3104 = vmul.f32 %v3103, 0.6931472
    %v3105 = vmul.f32 -0.5, %v2637
    %v3106 = vadd.f32 %v3105, 1.0
    %v3107 = vmul.f32 %v3106, %v2637
    %v3108 = vand.u32 2147483647, %v2637
    %vm3109 = vcmp.lt.f32.partialorder %v3108, 0.0004427343
    %v3110 = vsel %vm3109, %v3107, %v3104
    %v3111 = vadd.f32 %v2639, 1.0
    %v3112 = vlog2.pop %v3111
    %v3113 = vmul.f32 %v3112, 0.6931472
    %v3114 = vmul.f32 -0.5, %v2639
    %v3115 = vadd.f32 %v3114, 1.0
    %v3116 = vmul.f32 %v3115, %v2639
    %v3117 = vand.u32 2147483647, %v2639
    %vm3118 = vcmp.lt.f32.partialorder %v3117, 0.0004427343
    %v3119 = vsel %vm3118, %v3116, %v3113
    %v3120 = vadd.f32 %v2641, 1.0
    %v3121 = vlog2.pop %v3120
    %v3122 = vmul.f32 %v3121, 0.6931472
    %v3123 = vmul.f32 -0.5, %v2641
    %v3124 = vadd.f32 %v3123, 1.0
    %v3125 = vmul.f32 %v3124, %v2641
    %v3126 = vand.u32 2147483647, %v2641
    %vm3127 = vcmp.lt.f32.partialorder %v3126, 0.0004427343
    %v3128 = vsel %vm3127, %v3125, %v3122
    %v3129 = vadd.f32 %v2643, 1.0
    %v3130 = vlog2.pop %v3129
    %v3131 = vmul.f32 %v3130, 0.6931472
    %v3132 = vmul.f32 -0.5, %v2643
    %v3133 = vadd.f32 %v3132, 1.0
    %v3134 = vmul.f32 %v3133, %v2643
    %v3135 = vand.u32 2147483647, %v2643
    %vm3136 = vcmp.lt.f32.partialorder %v3135, 0.0004427343
    %v3137 = vsel %vm3136, %v3134, %v3131
    %v3138 = vadd.f32 %v2645, 1.0
    %v3139 = vlog2.pop %v3138
    %v3140 = vmul.f32 %v3139, 0.6931472
    %v3141 = vmul.f32 -0.5, %v2645
    %v3142 = vadd.f32 %v3141, 1.0
    %v3143 = vmul.f32 %v3142, %v2645
    %v3144 = vand.u32 2147483647, %v2645
    %vm3145 = vcmp.lt.f32.partialorder %v3144, 0.0004427343
    %v3146 = vsel %vm3145, %v3143, %v3140
    %v3147 = vadd.f32 %v2647, 1.0
    %v3148 = vlog2.pop %v3147
    %v3149 = vmul.f32 %v3148, 0.6931472
    %v3150 = vmul.f32 -0.5, %v2647
    %v3151 = vadd.f32 %v3150, 1.0
    %v3152 = vmul.f32 %v3151, %v2647
    %v3153 = vand.u32 2147483647, %v2647
    %vm3154 = vcmp.lt.f32.partialorder %v3153, 0.0004427343
    %v3155 = vsel %vm3154, %v3152, %v3149
    %v3156 = vadd.f32 %v2649, 1.0
    %v3157 = vlog2.pop %v3156
    %v3158 = vmul.f32 %v3157, 0.6931472
    %v3159 = vmul.f32 -0.5, %v2649
    %v3160 = vadd.f32 %v3159, 1.0
    %v3161 = vmul.f32 %v3160, %v2649
    %v3162 = vand.u32 2147483647, %v2649
    %vm3163 = vcmp.lt.f32.partialorder %v3162, 0.0004427343
    %v3164 = vsel %vm3163, %v3161, %v3158
    %v3165 = vadd.f32 %v2651, 1.0
    %v3166 = vlog2.pop %v3165
    %v3167 = vmul.f32 %v3166, 0.6931472
    %v3168 = vmul.f32 -0.5, %v2651
    %v3169 = vadd.f32 %v3168, 1.0
    %v3170 = vmul.f32 %v3169, %v2651
    %v3171 = vand.u32 2147483647, %v2651
    %vm3172 = vcmp.lt.f32.partialorder %v3171, 0.0004427343
    %v3173 = vsel %vm3172, %v3170, %v3167
    %v3174 = vadd.f32 %v2653, 1.0
    %v3175 = vlog2.pop %v3174
    %v3176 = vmul.f32 %v3175, 0.6931472
    %v3177 = vmul.f32 -0.5, %v2653
    %v3178 = vadd.f32 %v3177, 1.0
    %v3179 = vmul.f32 %v3178, %v2653
    %v3180 = vand.u32 2147483647, %v2653
    %vm3181 = vcmp.lt.f32.partialorder %v3180, 0.0004427343
    %v3182 = vsel %vm3181, %v3179, %v3176
    %v3183 = vadd.f32 %v2655, 1.0
    %v3184 = vlog2.pop %v3183
    %v3185 = vmul.f32 %v3184, 0.6931472
    %v3186 = vmul.f32 -0.5, %v2655
    %v3187 = vadd.f32 %v3186, 1.0
    %v3188 = vmul.f32 %v3187, %v2655
    %v3189 = vand.u32 2147483647, %v2655
    %vm3190 = vcmp.lt.f32.partialorder %v3189, 0.0004427343
    %v3191 = vsel %vm3190, %v3188, %v3185
    %v3192 = vadd.f32 %v2657, 1.0
    %v3193 = vlog2.pop %v3192
    %v3194 = vmul.f32 %v3193, 0.6931472
    %v3195 = vmul.f32 -0.5, %v2657
    %v3196 = vadd.f32 %v3195, 1.0
    %v3197 = vmul.f32 %v3196, %v2657
    %v3198 = vand.u32 2147483647, %v2657
    %vm3199 = vcmp.lt.f32.partialorder %v3198, 0.0004427343
    %v3200 = vsel %vm3199, %v3197, %v3194
    %v3201 = vadd.f32 %v2659, 1.0
    %v3202 = vlog2.pop %v3201
    %v3203 = vmul.f32 %v3202, 0.6931472
    %v3204 = vmul.f32 -0.5, %v2659
    %v3205 = vadd.f32 %v3204, 1.0
    %v3206 = vmul.f32 %v3205, %v2659
    %v3207 = vand.u32 2147483647, %v2659
    %vm3208 = vcmp.lt.f32.partialorder %v3207, 0.0004427343
    %v3209 = vsel %vm3208, %v3206, %v3203
    %v3210 = vadd.f32 %v2661, 1.0
    %v3211 = vlog2.pop %v3210
    %v3212 = vmul.f32 %v3211, 0.6931472
    %v3213 = vmul.f32 -0.5, %v2661
    %v3214 = vadd.f32 %v3213, 1.0
    %v3215 = vmul.f32 %v3214, %v2661
    %v3216 = vand.u32 2147483647, %v2661
    %vm3217 = vcmp.lt.f32.partialorder %v3216, 0.0004427343
    %v3218 = vsel %vm3217, %v3215, %v3212
    %v3219 = vadd.f32 %v2663, 1.0
    %v3220 = vlog2.pop %v3219
    %v3221 = vmul.f32 %v3220, 0.6931472
    %v3222 = vmul.f32 -0.5, %v2663
    %v3223 = vadd.f32 %v3222, 1.0
    %v3224 = vmul.f32 %v3223, %v2663
    %v3225 = vand.u32 2147483647, %v2663
    %vm3226 = vcmp.lt.f32.partialorder %v3225, 0.0004427343
    %v3227 = vsel %vm3226, %v3224, %v3221
    %v3228 = vadd.f32 %v2665, 1.0
    %v3229 = vlog2.pop %v3228
    %v3230 = vmul.f32 %v3229, 0.6931472
    %v3231 = vmul.f32 -0.5, %v2665
    %v3232 = vadd.f32 %v3231, 1.0
    %v3233 = vmul.f32 %v3232, %v2665
    %v3234 = vand.u32 2147483647, %v2665
    %vm3235 = vcmp.lt.f32.partialorder %v3234, 0.0004427343
    %v3236 = vsel %vm3235, %v3233, %v3230
    %v3237 = vadd.f32 %v2667, 1.0
    %v3238 = vlog2.pop %v3237
    %v3239 = vmul.f32 %v3238, 0.6931472
    %v3240 = vmul.f32 -0.5, %v2667
    %v3241 = vadd.f32 %v3240, 1.0
    %v3242 = vmul.f32 %v3241, %v2667
    %v3243 = vand.u32 2147483647, %v2667
    %vm3244 = vcmp.lt.f32.partialorder %v3243, 0.0004427343
    %v3245 = vsel %vm3244, %v3242, %v3239
    %v3246 = vadd.f32 %v2669, 1.0
    %v3247 = vlog2.pop %v3246
    %v3248 = vmul.f32 %v3247, 0.6931472
    %v3249 = vmul.f32 -0.5, %v2669
    %v3250 = vadd.f32 %v3249, 1.0
    %v3251 = vmul.f32 %v3250, %v2669
    %v3252 = vand.u32 2147483647, %v2669
    %vm3253 = vcmp.lt.f32.partialorder %v3252, 0.0004427343
    %v3254 = vsel %vm3253, %v3251, %v3248
    %v3255 = vadd.f32 %v2671, 1.0
    %v3256 = vlog2.pop %v3255
    %v3257 = vmul.f32 %v3256, 0.6931472
    %v3258 = vmul.f32 -0.5, %v2671
    %v3259 = vadd.f32 %v3258, 1.0
    %v3260 = vmul.f32 %v3259, %v2671
    %v3261 = vand.u32 2147483647, %v2671
    %vm3262 = vcmp.lt.f32.partialorder %v3261, 0.0004427343
    %v3263 = vsel %vm3262, %v3260, %v3257
    %v3264 = vadd.f32 %v2673, 1.0
    %v3265 = vlog2.pop %v3264
    %v3266 = vmul.f32 %v3265, 0.6931472
    %v3267 = vmul.f32 -0.5, %v2673
    %v3268 = vadd.f32 %v3267, 1.0
    %v3269 = vmul.f32 %v3268, %v2673
    %v3270 = vand.u32 2147483647, %v2673
    %vm3271 = vcmp.lt.f32.partialorder %v3270, 0.0004427343
    %v3272 = vsel %vm3271, %v3269, %v3266
    %v3273 = vadd.f32 %v2675, 1.0
    %v3274 = vlog2.pop %v3273
    %v3275 = vmul.f32 %v3274, 0.6931472
    %v3276 = vmul.f32 -0.5, %v2675
    %v3277 = vadd.f32 %v3276, 1.0
    %v3278 = vmul.f32 %v3277, %v2675
    %v3279 = vand.u32 2147483647, %v2675
    %vm3280 = vcmp.lt.f32.partialorder %v3279, 0.0004427343
    %v3281 = vsel %vm3280, %v3278, %v3275
    %v3282 = vadd.f32 %v2677, 1.0
    %v3283 = vlog2.pop %v3282
    %v3284 = vmul.f32 %v3283, 0.6931472
    %v3285 = vmul.f32 -0.5, %v2677
    %v3286 = vadd.f32 %v3285, 1.0
    %v3287 = vmul.f32 %v3286, %v2677
    %v3288 = vand.u32 2147483647, %v2677
    %vm3289 = vcmp.lt.f32.partialorder %v3288, 0.0004427343
    %v3290 = vsel %vm3289, %v3287, %v3284
    %v3291 = vadd.f32 %v2679, 1.0
    %v3292 = vlog2.pop %v3291
    %v3293 = vmul.f32 %v3292, 0.6931472
    %v3294 = vmul.f32 -0.5, %v2679
    %v3295 = vadd.f32 %v3294, 1.0
    %v3296 = vmul.f32 %v3295, %v2679
    %v3297 = vand.u32 2147483647, %v2679
    %vm3298 = vcmp.lt.f32.partialorder %v3297, 0.0004427343
    %v3299 = vsel %vm3298, %v3296, %v3293
    %v3300 = vadd.f32 %v2681, 1.0
    %v3301 = vlog2.pop %v3300
    %v3302 = vmul.f32 %v3301, 0.6931472
    %v3303 = vmul.f32 -0.5, %v2681
    %v3304 = vadd.f32 %v3303, 1.0
    %v3305 = vmul.f32 %v3304, %v2681
    %v3306 = vand.u32 2147483647, %v2681
    %vm3307 = vcmp.lt.f32.partialorder %v3306, 0.0004427343
    %v3308 = vsel %vm3307, %v3305, %v3302
    %v3309 = vadd.f32 %v2683, 1.0
    %v3310 = vlog2.pop %v3309
    %v3311 = vmul.f32 %v3310, 0.6931472
    %v3312 = vmul.f32 -0.5, %v2683
    %v3313 = vadd.f32 %v3312, 1.0
    %v3314 = vmul.f32 %v3313, %v2683
    %v3315 = vand.u32 2147483647, %v2683
    %vm3316 = vcmp.lt.f32.partialorder %v3315, 0.0004427343
    %v3317 = vsel %vm3316, %v3314, %v3311
    %v3318 = vadd.f32 %v2685, 1.0
    %v3319 = vlog2.pop %v3318
    %v3320 = vmul.f32 %v3319, 0.6931472
    %v3321 = vmul.f32 -0.5, %v2685
    %v3322 = vadd.f32 %v3321, 1.0
    %v3323 = vmul.f32 %v3322, %v2685
    %v3324 = vand.u32 2147483647, %v2685
    %vm3325 = vcmp.lt.f32.partialorder %v3324, 0.0004427343
    %v3326 = vsel %vm3325, %v3323, %v3320
    %v3327 = vadd.f32 %v2687, 1.0
    %v3328 = vlog2.pop %v3327
    %v3329 = vmul.f32 %v3328, 0.6931472
    %v3330 = vmul.f32 -0.5, %v2687
    %v3331 = vadd.f32 %v3330, 1.0
    %v3332 = vmul.f32 %v3331, %v2687
    %v3333 = vand.u32 2147483647, %v2687
    %vm3334 = vcmp.lt.f32.partialorder %v3333, 0.0004427343
    %v3335 = vsel %vm3334, %v3332, %v3329
    %v3336 = vadd.f32 %v2689, 1.0
    %v3337 = vlog2.pop %v3336
    %v3338 = vmul.f32 %v3337, 0.6931472
    %v3339 = vmul.f32 -0.5, %v2689
    %v3340 = vadd.f32 %v3339, 1.0
    %v3341 = vmul.f32 %v3340, %v2689
    %v3342 = vand.u32 2147483647, %v2689
    %vm3343 = vcmp.lt.f32.partialorder %v3342, 0.0004427343
    %v3344 = vsel %vm3343, %v3341, %v3338
    %v3345 = vadd.f32 %v2691, 1.0
    %v3346 = vlog2.pop %v3345
    %v3347 = vmul.f32 %v3346, 0.6931472
    %v3348 = vmul.f32 -0.5, %v2691
    %v3349 = vadd.f32 %v3348, 1.0
    %v3350 = vmul.f32 %v3349, %v2691
    %v3351 = vand.u32 2147483647, %v2691
    %vm3352 = vcmp.lt.f32.partialorder %v3351, 0.0004427343
    %v3353 = vsel %vm3352, %v3350, %v3347
    %v3354 = vadd.f32 %v2693, 1.0
    %v3355 = vlog2.pop %v3354
    %v3356 = vmul.f32 %v3355, 0.6931472
    %v3357 = vmul.f32 -0.5, %v2693
    %v3358 = vadd.f32 %v3357, 1.0
    %v3359 = vmul.f32 %v3358, %v2693
    %v3360 = vand.u32 2147483647, %v2693
    %vm3361 = vcmp.lt.f32.partialorder %v3360, 0.0004427343
    %v3362 = vsel %vm3361, %v3359, %v3356
    %v3363 = vadd.f32 %v2695, 1.0
    %v3364 = vlog2.pop %v3363
    %v3365 = vmul.f32 %v3364, 0.6931472
    %v3366 = vmul.f32 -0.5, %v2695
    %v3367 = vadd.f32 %v3366, 1.0
    %v3368 = vmul.f32 %v3367, %v2695
    %v3369 = vand.u32 2147483647, %v2695
    %vm3370 = vcmp.lt.f32.partialorder %v3369, 0.0004427343
    %v3371 = vsel %vm3370, %v3368, %v3365
    %v3372 = vadd.f32 %v2697, 1.0
    %v3373 = vlog2.pop %v3372
    %v3374 = vmul.f32 %v3373, 0.6931472
    %v3375 = vmul.f32 -0.5, %v2697
    %v3376 = vadd.f32 %v3375, 1.0
    %v3377 = vmul.f32 %v3376, %v2697
    %v3378 = vand.u32 2147483647, %v2697
    %vm3379 = vcmp.lt.f32.partialorder %v3378, 0.0004427343
    %v3380 = vsel %vm3379, %v3377, %v3374
    %v3381 = vadd.f32 %v2699, 1.0
    %v3382 = vlog2.pop %v3381
    %v3383 = vmul.f32 %v3382, 0.6931472
    %v3384 = vmul.f32 -0.5, %v2699
    %v3385 = vadd.f32 %v3384, 1.0
    %v3386 = vmul.f32 %v3385, %v2699
    %v3387 = vand.u32 2147483647, %v2699
    %vm3388 = vcmp.lt.f32.partialorder %v3387, 0.0004427343
    %v3389 = vsel %vm3388, %v3386, %v3383
    %v3390 = vadd.f32 %v2701, 1.0
    %v3391 = vlog2.pop %v3390
    %v3392 = vmul.f32 %v3391, 0.6931472
    %v3393 = vmul.f32 -0.5, %v2701
    %v3394 = vadd.f32 %v3393, 1.0
    %v3395 = vmul.f32 %v3394, %v2701
    %v3396 = vand.u32 2147483647, %v2701
    %vm3397 = vcmp.lt.f32.partialorder %v3396, 0.0004427343
    %v3398 = vsel %vm3397, %v3395, %v3392
    %v3399 = vadd.f32 %v2703, 1.0
    %v3400 = vlog2.pop %v3399
    %v3401 = vmul.f32 %v3400, 0.6931472
    %v3402 = vmul.f32 -0.5, %v2703
    %v3403 = vadd.f32 %v3402, 1.0
    %v3404 = vmul.f32 %v3403, %v2703
    %v3405 = vand.u32 2147483647, %v2703
    %vm3406 = vcmp.lt.f32.partialorder %v3405, 0.0004427343
    %v3407 = vsel %vm3406, %v3404, %v3401
    %v3408 = vadd.f32 %v2705, 1.0
    %v3409 = vlog2.pop %v3408
    %v3410 = vmul.f32 %v3409, 0.6931472
    %v3411 = vmul.f32 -0.5, %v2705
    %v3412 = vadd.f32 %v3411, 1.0
    %v3413 = vmul.f32 %v3412, %v2705
    %v3414 = vand.u32 2147483647, %v2705
    %vm3415 = vcmp.lt.f32.partialorder %v3414, 0.0004427343
    %v3416 = vsel %vm3415, %v3413, %v3410
    %v3417 = vadd.f32 %v2707, 1.0
    %v3418 = vlog2.pop %v3417
    %v3419 = vmul.f32 %v3418, 0.6931472
    %v3420 = vmul.f32 -0.5, %v2707
    %v3421 = vadd.f32 %v3420, 1.0
    %v3422 = vmul.f32 %v3421, %v2707
    %v3423 = vand.u32 2147483647, %v2707
    %vm3424 = vcmp.lt.f32.partialorder %v3423, 0.0004427343
    %v3425 = vsel %vm3424, %v3422, %v3419
    %v3426 = vadd.f32 %v2709, 1.0
    %v3427 = vlog2.pop %v3426
    %v3428 = vmul.f32 %v3427, 0.6931472
    %v3429 = vmul.f32 -0.5, %v2709
    %v3430 = vadd.f32 %v3429, 1.0
    %v3431 = vmul.f32 %v3430, %v2709
    %v3432 = vand.u32 2147483647, %v2709
    %vm3433 = vcmp.lt.f32.partialorder %v3432, 0.0004427343
    %v3434 = vsel %vm3433, %v3431, %v3428
    %v3435 = vadd.f32 %v2711, 1.0
    %v3436 = vlog2.pop %v3435
    %v3437 = vmul.f32 %v3436, 0.6931472
    %v3438 = vmul.f32 -0.5, %v2711
    %v3439 = vadd.f32 %v3438, 1.0
    %v3440 = vmul.f32 %v3439, %v2711
    %v3441 = vand.u32 2147483647, %v2711
    %vm3442 = vcmp.lt.f32.partialorder %v3441, 0.0004427343
    %v3443 = vsel %vm3442, %v3440, %v3437
    %v3444 = vadd.f32 %v2713, 1.0
    %v3445 = vlog2.pop %v3444
    %v3446 = vmul.f32 %v3445, 0.6931472
    %v3447 = vmul.f32 -0.5, %v2713
    %v3448 = vadd.f32 %v3447, 1.0
    %v3449 = vmul.f32 %v3448, %v2713
    %v3450 = vand.u32 2147483647, %v2713
    %vm3451 = vcmp.lt.f32.partialorder %v3450, 0.0004427343
    %v3452 = vsel %vm3451, %v3449, %v3446
    %v3453 = vadd.f32 %v2715, 1.0
    %v3454 = vlog2.pop %v3453
    %v3455 = vmul.f32 %v3454, 0.6931472
    %v3456 = vmul.f32 -0.5, %v2715
    %v3457 = vadd.f32 %v3456, 1.0
    %v3458 = vmul.f32 %v3457, %v2715
    %v3459 = vand.u32 2147483647, %v2715
    %vm3460 = vcmp.lt.f32.partialorder %v3459, 0.0004427343
    %v3461 = vsel %vm3460, %v3458, %v3455
    %v3462 = vadd.f32 %v2717, 1.0
    %v3463 = vlog2.pop %v3462
    %v3464 = vmul.f32 %v3463, 0.6931472
    %v3465 = vmul.f32 -0.5, %v2717
    %v3466 = vadd.f32 %v3465, 1.0
    %v3467 = vmul.f32 %v3466, %v2717
    %v3468 = vand.u32 2147483647, %v2717
    %vm3469 = vcmp.lt.f32.partialorder %v3468, 0.0004427343
    %v3470 = vsel %vm3469, %v3467, %v3464
    %v3471 = vadd.f32 %v2719, 1.0
    %v3472 = vlog2.pop %v3471
    %v3473 = vmul.f32 %v3472, 0.6931472
    %v3474 = vmul.f32 -0.5, %v2719
    %v3475 = vadd.f32 %v3474, 1.0
    %v3476 = vmul.f32 %v3475, %v2719
    %v3477 = vand.u32 2147483647, %v2719
    %vm3478 = vcmp.lt.f32.partialorder %v3477, 0.0004427343
    %v3479 = vsel %vm3478, %v3476, %v3473
    %v3480 = vadd.f32 %v2721, 1.0
    %v3481 = vlog2.pop %v3480
    %v3482 = vmul.f32 %v3481, 0.6931472
    %v3483 = vmul.f32 -0.5, %v2721
    %v3484 = vadd.f32 %v3483, 1.0
    %v3485 = vmul.f32 %v3484, %v2721
    %v3486 = vand.u32 2147483647, %v2721
    %vm3487 = vcmp.lt.f32.partialorder %v3486, 0.0004427343
    %v3488 = vsel %vm3487, %v3485, %v3482
    %v3489 = vadd.f32 %v2723, 1.0
    %v3490 = vlog2.pop %v3489
    %v3491 = vmul.f32 %v3490, 0.6931472
    %v3492 = vmul.f32 -0.5, %v2723
    %v3493 = vadd.f32 %v3492, 1.0
    %v3494 = vmul.f32 %v3493, %v2723
    %v3495 = vand.u32 2147483647, %v2723
    %vm3496 = vcmp.lt.f32.partialorder %v3495, 0.0004427343
    %v3497 = vsel %vm3496, %v3494, %v3491
    %v3498 = vadd.f32 %v2725, 1.0
    %v3499 = vlog2.pop %v3498
    %v3500 = vmul.f32 %v3499, 0.6931472
    %v3501 = vmul.f32 -0.5, %v2725
    %v3502 = vadd.f32 %v3501, 1.0
    %v3503 = vmul.f32 %v3502, %v2725
    %v3504 = vand.u32 2147483647, %v2725
    %vm3505 = vcmp.lt.f32.partialorder %v3504, 0.0004427343
    %v3506 = vsel %vm3505, %v3503, %v3500
    %v3507 = vadd.f32 %v2727, 1.0
    %v3508 = vlog2.pop %v3507
    %v3509 = vmul.f32 %v3508, 0.6931472
    %v3510 = vmul.f32 -0.5, %v2727
    %v3511 = vadd.f32 %v3510, 1.0
    %v3512 = vmul.f32 %v3511, %v2727
    %v3513 = vand.u32 2147483647, %v2727
    %vm3514 = vcmp.lt.f32.partialorder %v3513, 0.0004427343
    %v3515 = vsel %vm3514, %v3512, %v3509
    %v3516 = vadd.f32 %v2729, 1.0
    %v3517 = vlog2.pop %v3516
    %v3518 = vmul.f32 %v3517, 0.6931472
    %v3519 = vmul.f32 -0.5, %v2729
    %v3520 = vadd.f32 %v3519, 1.0
    %v3521 = vmul.f32 %v3520, %v2729
    %v3522 = vand.u32 2147483647, %v2729
    %vm3523 = vcmp.lt.f32.partialorder %v3522, 0.0004427343
    %v3524 = vsel %vm3523, %v3521, %v3518
    %v3525 = vadd.f32 %v2731, 1.0
    %v3526 = vlog2.pop %v3525
    %v3527 = vmul.f32 %v3526, 0.6931472
    %v3528 = vmul.f32 -0.5, %v2731
    %v3529 = vadd.f32 %v3528, 1.0
    %v3530 = vmul.f32 %v3529, %v2731
    %v3531 = vand.u32 2147483647, %v2731
    %vm3532 = vcmp.lt.f32.partialorder %v3531, 0.0004427343
    %v3533 = vsel %vm3532, %v3530, %v3527
    %v3534 = vadd.f32 %v2733, 1.0
    %v3535 = vlog2.pop %v3534
    %v3536 = vmul.f32 %v3535, 0.6931472
    %v3537 = vmul.f32 -0.5, %v2733
    %v3538 = vadd.f32 %v3537, 1.0
    %v3539 = vmul.f32 %v3538, %v2733
    %v3540 = vand.u32 2147483647, %v2733
    %vm3541 = vcmp.lt.f32.partialorder %v3540, 0.0004427343
    %v3542 = vsel %vm3541, %v3539, %v3536
    %v3543 = vadd.f32 %v2735, 1.0
    %v3544 = vlog2.pop %v3543
    %v3545 = vmul.f32 %v3544, 0.6931472
    %v3546 = vmul.f32 -0.5, %v2735
    %v3547 = vadd.f32 %v3546, 1.0
    %v3548 = vmul.f32 %v3547, %v2735
    %v3549 = vand.u32 2147483647, %v2735
    %vm3550 = vcmp.lt.f32.partialorder %v3549, 0.0004427343
    %v3551 = vsel %vm3550, %v3548, %v3545
    %v3552 = vadd.f32 %v2737, 1.0
    %v3553 = vlog2.pop %v3552
    %v3554 = vmul.f32 %v3553, 0.6931472
    %v3555 = vmul.f32 -0.5, %v2737
    %v3556 = vadd.f32 %v3555, 1.0
    %v3557 = vmul.f32 %v3556, %v2737
    %v3558 = vand.u32 2147483647, %v2737
    %vm3559 = vcmp.lt.f32.partialorder %v3558, 0.0004427343
    %v3560 = vsel %vm3559, %v3557, %v3554
    %v3561 = vadd.f32 %v2739, 1.0
    %v3562 = vlog2.pop %v3561
    %v3563 = vmul.f32 %v3562, 0.6931472
    %v3564 = vmul.f32 -0.5, %v2739
    %v3565 = vadd.f32 %v3564, 1.0
    %v3566 = vmul.f32 %v3565, %v2739
    %v3567 = vand.u32 2147483647, %v2739
    %vm3568 = vcmp.lt.f32.partialorder %v3567, 0.0004427343
    %v3569 = vsel %vm3568, %v3566, %v3563
    %v3570 = vadd.f32 %v2741, 1.0
    %v3571 = vlog2.pop %v3570
    %v3572 = vmul.f32 %v3571, 0.6931472
    %v3573 = vmul.f32 -0.5, %v2741
    %v3574 = vadd.f32 %v3573, 1.0
    %v3575 = vmul.f32 %v3574, %v2741
    %v3576 = vand.u32 2147483647, %v2741
    %vm3577 = vcmp.lt.f32.partialorder %v3576, 0.0004427343
    %v3578 = vsel %vm3577, %v3575, %v3572
    %v3579 = vadd.f32 %v2743, 1.0
    %v3580 = vlog2.pop %v3579
    %v3581 = vmul.f32 %v3580, 0.6931472
    %v3582 = vmul.f32 -0.5, %v2743
    %v3583 = vadd.f32 %v3582, 1.0
    %v3584 = vmul.f32 %v3583, %v2743
    %v3585 = vand.u32 2147483647, %v2743
    %vm3586 = vcmp.lt.f32.partialorder %v3585, 0.0004427343
    %v3587 = vsel %vm3586, %v3584, %v3581
    %v3588 = vadd.f32 %v2745, 1.0
    %v3589 = vlog2.pop %v3588
    %v3590 = vmul.f32 %v3589, 0.6931472
    %v3591 = vmul.f32 -0.5, %v2745
    %v3592 = vadd.f32 %v3591, 1.0
    %v3593 = vmul.f32 %v3592, %v2745
    %v3594 = vand.u32 2147483647, %v2745
    %vm3595 = vcmp.lt.f32.partialorder %v3594, 0.0004427343
    %v3596 = vsel %vm3595, %v3593, %v3590
    %v3597 = vadd.f32 %v2747, 1.0
    %v3598 = vlog2.pop %v3597
    %v3599 = vmul.f32 %v3598, 0.6931472
    %v3600 = vmul.f32 -0.5, %v2747
    %v3601 = vadd.f32 %v3600, 1.0
    %v3602 = vmul.f32 %v3601, %v2747
    %v3603 = vand.u32 2147483647, %v2747
    %vm3604 = vcmp.lt.f32.partialorder %v3603, 0.0004427343
    %v3605 = vsel %vm3604, %v3602, %v3599
    %v3606 = vadd.f32 %v2749, 1.0
    %v3607 = vlog2.pop %v3606
    %v3608 = vmul.f32 %v3607, 0.6931472
    %v3609 = vmul.f32 -0.5, %v2749
    %v3610 = vadd.f32 %v3609, 1.0
    %v3611 = vmul.f32 %v3610, %v2749
    %v3612 = vand.u32 2147483647, %v2749
    %vm3613 = vcmp.lt.f32.partialorder %v3612, 0.0004427343
    %v3614 = vsel %vm3613, %v3611, %v3608
    %v3615 = vadd.f32 %v2751, 1.0
    %v3616 = vlog2.pop %v3615
    %v3617 = vmul.f32 %v3616, 0.6931472
    %v3618 = vmul.f32 -0.5, %v2751
    %v3619 = vadd.f32 %v3618, 1.0
    %v3620 = vmul.f32 %v3619, %v2751
    %v3621 = vand.u32 2147483647, %v2751
    %vm3622 = vcmp.lt.f32.partialorder %v3621, 0.0004427343
    %v3623 = vsel %vm3622, %v3620, %v3617
    %v3624 = vadd.f32 %v2753, 1.0
    %v3625 = vlog2.pop %v3624
    %v3626 = vmul.f32 %v3625, 0.6931472
    %v3627 = vmul.f32 -0.5, %v2753
    %v3628 = vadd.f32 %v3627, 1.0
    %v3629 = vmul.f32 %v3628, %v2753
    %v3630 = vand.u32 2147483647, %v2753
    %vm3631 = vcmp.lt.f32.partialorder %v3630, 0.0004427343
    %v3632 = vsel %vm3631, %v3629, %v3626
    %v3633 = vadd.f32 %v2755, 1.0
    %v3634 = vlog2.pop %v3633
    %v3635 = vmul.f32 %v3634, 0.6931472
    %v3636 = vmul.f32 -0.5, %v2755
    %v3637 = vadd.f32 %v3636, 1.0
    %v3638 = vmul.f32 %v3637, %v2755
    %v3639 = vand.u32 2147483647, %v2755
    %vm3640 = vcmp.lt.f32.partialorder %v3639, 0.0004427343
    %v3641 = vsel %vm3640, %v3638, %v3635
    %v3642 = vadd.f32 %v2757, 1.0
    %v3643 = vlog2.pop %v3642
    %v3644 = vmul.f32 %v3643, 0.6931472
    %v3645 = vmul.f32 -0.5, %v2757
    %v3646 = vadd.f32 %v3645, 1.0
    %v3647 = vmul.f32 %v3646, %v2757
    %v3648 = vand.u32 2147483647, %v2757
    %vm3649 = vcmp.lt.f32.partialorder %v3648, 0.0004427343
    %v3650 = vsel %vm3649, %v3647, %v3644
    %v3651 = vadd.f32 %v2759, 1.0
    %v3652 = vlog2.pop %v3651
    %v3653 = vmul.f32 %v3652, 0.6931472
    %v3654 = vmul.f32 -0.5, %v2759
    %v3655 = vadd.f32 %v3654, 1.0
    %v3656 = vmul.f32 %v3655, %v2759
    %v3657 = vand.u32 2147483647, %v2759
    %vm3658 = vcmp.lt.f32.partialorder %v3657, 0.0004427343
    %v3659 = vsel %vm3658, %v3656, %v3653
    %v3660 = vadd.f32 %v2761, 1.0
    %v3661 = vlog2.pop %v3660
    %v3662 = vmul.f32 %v3661, 0.6931472
    %v3663 = vmul.f32 -0.5, %v2761
    %v3664 = vadd.f32 %v3663, 1.0
    %v3665 = vmul.f32 %v3664, %v2761
    %v3666 = vand.u32 2147483647, %v2761
    %vm3667 = vcmp.lt.f32.partialorder %v3666, 0.0004427343
    %v3668 = vsel %vm3667, %v3665, %v3662
    %v3669 = vadd.f32 %v2763, 1.0
    %v3670 = vlog2.pop %v3669
    %v3671 = vmul.f32 %v3670, 0.6931472
    %v3672 = vmul.f32 -0.5, %v2763
    %v3673 = vadd.f32 %v3672, 1.0
    %v3674 = vmul.f32 %v3673, %v2763
    %v3675 = vand.u32 2147483647, %v2763
    %vm3676 = vcmp.lt.f32.partialorder %v3675, 0.0004427343
    %v3677 = vsel %vm3676, %v3674, %v3671
    %v3678 = vadd.f32 %v2765, 1.0
    %v3679 = vlog2.pop %v3678
    %v3680 = vmul.f32 %v3679, 0.6931472
    %v3681 = vmul.f32 -0.5, %v2765
    %v3682 = vadd.f32 %v3681, 1.0
    %v3683 = vmul.f32 %v3682, %v2765
    %v3684 = vand.u32 2147483647, %v2765
    %vm3685 = vcmp.lt.f32.partialorder %v3684, 0.0004427343
    %v3686 = vsel %vm3685, %v3683, %v3680
    %v3687 = vadd.f32 %v2767, 1.0
    %v3688 = vlog2.pop %v3687
    %v3689 = vmul.f32 %v3688, 0.6931472
    %v3690 = vmul.f32 -0.5, %v2767
    %v3691 = vadd.f32 %v3690, 1.0
    %v3692 = vmul.f32 %v3691, %v2767
    %v3693 = vand.u32 2147483647, %v2767
    %vm3694 = vcmp.lt.f32.partialorder %v3693, 0.0004427343
    %v3695 = vsel %vm3694, %v3692, %v3689
    %v3696 = vadd.f32 %v2769, 1.0
    %v3697 = vlog2.pop %v3696
    %v3698 = vmul.f32 %v3697, 0.6931472
    %v3699 = vmul.f32 -0.5, %v2769
    %v3700 = vadd.f32 %v3699, 1.0
    %v3701 = vmul.f32 %v3700, %v2769
    %v3702 = vand.u32 2147483647, %v2769
    %vm3703 = vcmp.lt.f32.partialorder %v3702, 0.0004427343
    %v3704 = vsel %vm3703, %v3701, %v3698
    %v3705 = vadd.f32 %v2771, 1.0
    %v3706 = vlog2.pop %v3705
    %v3707 = vmul.f32 %v3706, 0.6931472
    %v3708 = vmul.f32 -0.5, %v2771
    %v3709 = vadd.f32 %v3708, 1.0
    %v3710 = vmul.f32 %v3709, %v2771
    %v3711 = vand.u32 2147483647, %v2771
    %vm3712 = vcmp.lt.f32.partialorder %v3711, 0.0004427343
    %v3713 = vsel %vm3712, %v3710, %v3707
    %v3714 = vadd.f32 %v2773, 1.0
    %v3715 = vlog2.pop %v3714
    %v3716 = vmul.f32 %v3715, 0.6931472
    %v3717 = vmul.f32 -0.5, %v2773
    %v3718 = vadd.f32 %v3717, 1.0
    %v3719 = vmul.f32 %v3718, %v2773
    %v3720 = vand.u32 2147483647, %v2773
    %vm3721 = vcmp.lt.f32.partialorder %v3720, 0.0004427343
    %v3722 = vsel %vm3721, %v3719, %v3716
    %v3723 = vadd.f32 %v2775, 1.0
    %v3724 = vlog2.pop %v3723
    %v3725 = vmul.f32 %v3724, 0.6931472
    %v3726 = vmul.f32 -0.5, %v2775
    %v3727 = vadd.f32 %v3726, 1.0
    %v3728 = vmul.f32 %v3727, %v2775
    %v3729 = vand.u32 2147483647, %v2775
    %vm3730 = vcmp.lt.f32.partialorder %v3729, 0.0004427343
    %v3731 = vsel %vm3730, %v3728, %v3725
    %v3732 = vadd.f32 %v2777, 1.0
    %v3733 = vlog2.pop %v3732
    %v3734 = vmul.f32 %v3733, 0.6931472
    %v3735 = vmul.f32 -0.5, %v2777
    %v3736 = vadd.f32 %v3735, 1.0
    %v3737 = vmul.f32 %v3736, %v2777
    %v3738 = vand.u32 2147483647, %v2777
    %vm3739 = vcmp.lt.f32.partialorder %v3738, 0.0004427343
    %v3740 = vsel %vm3739, %v3737, %v3734
    %v3741 = vadd.f32 %v2779, 1.0
    %v3742 = vlog2.pop %v3741
    %v3743 = vmul.f32 %v3742, 0.6931472
    %v3744 = vmul.f32 -0.5, %v2779
    %v3745 = vadd.f32 %v3744, 1.0
    %v3746 = vmul.f32 %v3745, %v2779
    %v3747 = vand.u32 2147483647, %v2779
    %vm3748 = vcmp.lt.f32.partialorder %v3747, 0.0004427343
    %v3749 = vsel %vm3748, %v3746, %v3743
    %v3750 = vadd.f32 %v2781, 1.0
    %v3751 = vlog2.pop %v3750
    %v3752 = vmul.f32 %v3751, 0.6931472
    %v3753 = vmul.f32 -0.5, %v2781
    %v3754 = vadd.f32 %v3753, 1.0
    %v3755 = vmul.f32 %v3754, %v2781
    %v3756 = vand.u32 2147483647, %v2781
    %vm3757 = vcmp.lt.f32.partialorder %v3756, 0.0004427343
    %v3758 = vsel %vm3757, %v3755, %v3752
    %v3759 = vadd.f32 %v2783, 1.0
    %v3760 = vlog2.pop %v3759
    %v3761 = vmul.f32 %v3760, 0.6931472
    %v3762 = vmul.f32 -0.5, %v2783
    %v3763 = vadd.f32 %v3762, 1.0
    %v3764 = vmul.f32 %v3763, %v2783
    %v3765 = vand.u32 2147483647, %v2783
    %vm3766 = vcmp.lt.f32.partialorder %v3765, 0.0004427343
    %v3767 = vsel %vm3766, %v3764, %v3761
    %v3768 = vadd.f32 %v2785, 1.0
    %v3769 = vlog2.pop %v3768
    %v3770 = vmul.f32 %v3769, 0.6931472
    %v3771 = vmul.f32 -0.5, %v2785
    %v3772 = vadd.f32 %v3771, 1.0
    %v3773 = vmul.f32 %v3772, %v2785
    %v3774 = vand.u32 2147483647, %v2785
    %vm3775 = vcmp.lt.f32.partialorder %v3774, 0.0004427343
    %v3776 = vsel %vm3775, %v3773, %v3770
    %v3777 = vadd.f32 %v2787, 1.0
    %v3778 = vlog2.pop %v3777
    %v3779 = vmul.f32 %v3778, 0.6931472
    %v3780 = vmul.f32 -0.5, %v2787
    %v3781 = vadd.f32 %v3780, 1.0
    %v3782 = vmul.f32 %v3781, %v2787
    %v3783 = vand.u32 2147483647, %v2787
    %vm3784 = vcmp.lt.f32.partialorder %v3783, 0.0004427343
    %v3785 = vsel %vm3784, %v3782, %v3779
    %v3786 = vadd.f32 %v2789, 1.0
    %v3787 = vlog2.pop %v3786
    %v3788 = vmul.f32 %v3787, 0.6931472
    %v3789 = vmul.f32 -0.5, %v2789
    %v3790 = vadd.f32 %v3789, 1.0
    %v3791 = vmul.f32 %v3790, %v2789
    %v3792 = vand.u32 2147483647, %v2789
    %vm3793 = vcmp.lt.f32.partialorder %v3792, 0.0004427343
    %v3794 = vsel %vm3793, %v3791, %v3788
    %v3795 = vadd.f32 %v2791, 1.0
    %v3796 = vlog2.pop %v3795
    %v3797 = vmul.f32 %v3796, 0.6931472
    %v3798 = vmul.f32 -0.5, %v2791
    %v3799 = vadd.f32 %v3798, 1.0
    %v3800 = vmul.f32 %v3799, %v2791
    %v3801 = vand.u32 2147483647, %v2791
    %vm3802 = vcmp.lt.f32.partialorder %v3801, 0.0004427343
    %v3803 = vsel %vm3802, %v3800, %v3797
    %v3804 = vadd.f32 %v2793, 1.0
    %v3805 = vlog2.pop %v3804
    %v3806 = vmul.f32 %v3805, 0.6931472
    %v3807 = vmul.f32 -0.5, %v2793
    %v3808 = vadd.f32 %v3807, 1.0
    %v3809 = vmul.f32 %v3808, %v2793
    %v3810 = vand.u32 2147483647, %v2793
    %vm3811 = vcmp.lt.f32.partialorder %v3810, 0.0004427343
    %v3812 = vsel %vm3811, %v3809, %v3806
    %v3813 = vadd.f32 %v2795, 1.0
    %v3814 = vlog2.pop %v3813
    %v3815 = vmul.f32 %v3814, 0.6931472
    %v3816 = vmul.f32 -0.5, %v2795
    %v3817 = vadd.f32 %v3816, 1.0
    %v3818 = vmul.f32 %v3817, %v2795
    %v3819 = vand.u32 2147483647, %v2795
    %vm3820 = vcmp.lt.f32.partialorder %v3819, 0.0004427343
    %v3821 = vsel %vm3820, %v3818, %v3815
    %v3822 = vadd.f32 %v2797, 1.0
    %v3823 = vlog2.pop %v3822
    %v3824 = vmul.f32 %v3823, 0.6931472
    %v3825 = vmul.f32 -0.5, %v2797
    %v3826 = vadd.f32 %v3825, 1.0
    %v3827 = vmul.f32 %v3826, %v2797
    %v3828 = vand.u32 2147483647, %v2797
    %vm3829 = vcmp.lt.f32.partialorder %v3828, 0.0004427343
    %v3830 = vsel %vm3829, %v3827, %v3824
    %v3831 = vadd.f32 %v2799, 1.0
    %v3832 = vlog2.pop %v3831
    %v3833 = vmul.f32 %v3832, 0.6931472
    %v3834 = vmul.f32 -0.5, %v2799
    %v3835 = vadd.f32 %v3834, 1.0
    %v3836 = vmul.f32 %v3835, %v2799
    %v3837 = vand.u32 2147483647, %v2799
    %vm3838 = vcmp.lt.f32.partialorder %v3837, 0.0004427343
    %v3839 = vsel %vm3838, %v3836, %v3833
    %v3840 = vadd.f32 %v2801, 1.0
    %v3841 = vlog2.pop %v3840
    %v3842 = vmul.f32 %v3841, 0.6931472
    %v3843 = vmul.f32 -0.5, %v2801
    %v3844 = vadd.f32 %v3843, 1.0
    %v3845 = vmul.f32 %v3844, %v2801
    %v3846 = vand.u32 2147483647, %v2801
    %vm3847 = vcmp.lt.f32.partialorder %v3846, 0.0004427343
    %v3848 = vsel %vm3847, %v3845, %v3842
    %v3849 = vadd.f32 %v2803, 1.0
    %v3850 = vlog2.pop %v3849
    %v3851 = vmul.f32 %v3850, 0.6931472
    %v3852 = vmul.f32 -0.5, %v2803
    %v3853 = vadd.f32 %v3852, 1.0
    %v3854 = vmul.f32 %v3853, %v2803
    %v3855 = vand.u32 2147483647, %v2803
    %vm3856 = vcmp.lt.f32.partialorder %v3855, 0.0004427343
    %v3857 = vsel %vm3856, %v3854, %v3851
    %v3858 = vadd.f32 %v2805, 1.0
    %v3859 = vlog2.pop %v3858
    %v3860 = vmul.f32 %v3859, 0.6931472
    %v3861 = vmul.f32 -0.5, %v2805
    %v3862 = vadd.f32 %v3861, 1.0
    %v3863 = vmul.f32 %v3862, %v2805
    %v3864 = vand.u32 2147483647, %v2805
    %vm3865 = vcmp.lt.f32.partialorder %v3864, 0.0004427343
    %v3866 = vsel %vm3865, %v3863, %v3860
    %v3867 = vadd.f32 %v2807, 1.0
    %v3868 = vlog2.pop %v3867
    %v3869 = vmul.f32 %v3868, 0.6931472
    %v3870 = vmul.f32 -0.5, %v2807
    %v3871 = vadd.f32 %v3870, 1.0
    %v3872 = vmul.f32 %v3871, %v2807
    %v3873 = vand.u32 2147483647, %v2807
    %vm3874 = vcmp.lt.f32.partialorder %v3873, 0.0004427343
    %v3875 = vsel %vm3874, %v3872, %v3869
    %v3876 = vadd.f32 %v2809, 1.0
    %v3877 = vlog2.pop %v3876
    %v3878 = vmul.f32 %v3877, 0.6931472
    %v3879 = vmul.f32 -0.5, %v2809
    %v3880 = vadd.f32 %v3879, 1.0
    %v3881 = vmul.f32 %v3880, %v2809
    %v3882 = vand.u32 2147483647, %v2809
    %vm3883 = vcmp.lt.f32.partialorder %v3882, 0.0004427343
    %v3884 = vsel %vm3883, %v3881, %v3878
    %v3885 = vadd.f32 %v2811, 1.0
    %v3886 = vlog2.pop %v3885
    %v3887 = vmul.f32 %v3886, 0.6931472
    %v3888 = vmul.f32 -0.5, %v2811
    %v3889 = vadd.f32 %v3888, 1.0
    %v3890 = vmul.f32 %v3889, %v2811
    %v3891 = vand.u32 2147483647, %v2811
    %vm3892 = vcmp.lt.f32.partialorder %v3891, 0.0004427343
    %v3893 = vsel %vm3892, %v3890, %v3887
    %v3894 = vadd.f32 %v2813, 1.0
    %v3895 = vlog2.pop %v3894
    %v3896 = vmul.f32 %v3895, 0.6931472
    %v3897 = vmul.f32 -0.5, %v2813
    %v3898 = vadd.f32 %v3897, 1.0
    %v3899 = vmul.f32 %v3898, %v2813
    %v3900 = vand.u32 2147483647, %v2813
    %vm3901 = vcmp.lt.f32.partialorder %v3900, 0.0004427343
    %v3902 = vsel %vm3901, %v3899, %v3896
    %v3903 = vadd.f32 %v2815, 1.0
    %v3904 = vlog2.pop %v3903
    %v3905 = vmul.f32 %v3904, 0.6931472
    %v3906 = vmul.f32 -0.5, %v2815
    %v3907 = vadd.f32 %v3906, 1.0
    %v3908 = vmul.f32 %v3907, %v2815
    %v3909 = vand.u32 2147483647, %v2815
    %vm3910 = vcmp.lt.f32.partialorder %v3909, 0.0004427343
    %v3911 = vsel %vm3910, %v3908, %v3905
    %v3912 = vadd.f32 %v2817, 1.0
    %v3913 = vlog2.pop %v3912
    %v3914 = vmul.f32 %v3913, 0.6931472
    %v3915 = vmul.f32 -0.5, %v2817
    %v3916 = vadd.f32 %v3915, 1.0
    %v3917 = vmul.f32 %v3916, %v2817
    %v3918 = vand.u32 2147483647, %v2817
    %vm3919 = vcmp.lt.f32.partialorder %v3918, 0.0004427343
    %v3920 = vsel %vm3919, %v3917, %v3914
    %v3921 = vadd.f32 %v2819, 1.0
    %v3922 = vlog2.pop %v3921
    %v3923 = vmul.f32 %v3922, 0.6931472
    %v3924 = vmul.f32 -0.5, %v2819
    %v3925 = vadd.f32 %v3924, 1.0
    %v3926 = vmul.f32 %v3925, %v2819
    %v3927 = vand.u32 2147483647, %v2819
    %vm3928 = vcmp.lt.f32.partialorder %v3927, 0.0004427343
    %v3929 = vsel %vm3928, %v3926, %v3923
    %v3930 = vadd.f32 %v2821, 1.0
    %v3931 = vlog2.pop %v3930
    %v3932 = vmul.f32 %v3931, 0.6931472
    %v3933 = vmul.f32 -0.5, %v2821
    %v3934 = vadd.f32 %v3933, 1.0
    %v3935 = vmul.f32 %v3934, %v2821
    %v3936 = vand.u32 2147483647, %v2821
    %vm3937 = vcmp.lt.f32.partialorder %v3936, 0.0004427343
    %v3938 = vsel %vm3937, %v3935, %v3932
    %v3939 = vadd.f32 %v2823, 1.0
    %v3940 = vlog2.pop %v3939
    %v3941 = vmul.f32 %v3940, 0.6931472
    %v3942 = vmul.f32 -0.5, %v2823
    %v3943 = vadd.f32 %v3942, 1.0
    %v3944 = vmul.f32 %v3943, %v2823
    %v3945 = vand.u32 2147483647, %v2823
    %vm3946 = vcmp.lt.f32.partialorder %v3945, 0.0004427343
    %v3947 = vsel %vm3946, %v3944, %v3941
    %v3948 = vadd.f32 %v2825, 1.0
    %v3949 = vlog2.pop %v3948
    %v3950 = vmul.f32 %v3949, 0.6931472
    %v3951 = vmul.f32 -0.5, %v2825
    %v3952 = vadd.f32 %v3951, 1.0
    %v3953 = vmul.f32 %v3952, %v2825
    %v3954 = vand.u32 2147483647, %v2825
    %vm3955 = vcmp.lt.f32.partialorder %v3954, 0.0004427343
    %v3956 = vsel %vm3955, %v3953, %v3950
    %v3957 = vadd.f32 %v2827, 1.0
    %v3958 = vlog2.pop %v3957
    %v3959 = vmul.f32 %v3958, 0.6931472
    %v3960 = vmul.f32 -0.5, %v2827
    %v3961 = vadd.f32 %v3960, 1.0
    %v3962 = vmul.f32 %v3961, %v2827
    %v3963 = vand.u32 2147483647, %v2827
    %vm3964 = vcmp.lt.f32.partialorder %v3963, 0.0004427343
    %v3965 = vsel %vm3964, %v3962, %v3959
    %v3966 = vadd.f32 %v2829, 1.0
    %v3967 = vlog2.pop %v3966
    %v3968 = vmul.f32 %v3967, 0.6931472
    %v3969 = vmul.f32 -0.5, %v2829
    %v3970 = vadd.f32 %v3969, 1.0
    %v3971 = vmul.f32 %v3970, %v2829
    %v3972 = vand.u32 2147483647, %v2829
    %vm3973 = vcmp.lt.f32.partialorder %v3972, 0.0004427343
    %v3974 = vsel %vm3973, %v3971, %v3968
    %v3975 = vadd.f32 %v2831, 1.0
    %v3976 = vlog2.pop %v3975
    %v3977 = vmul.f32 %v3976, 0.6931472
    %v3978 = vmul.f32 -0.5, %v2831
    %v3979 = vadd.f32 %v3978, 1.0
    %v3980 = vmul.f32 %v3979, %v2831
    %v3981 = vand.u32 2147483647, %v2831
    %vm3982 = vcmp.lt.f32.partialorder %v3981, 0.0004427343
    %v3983 = vsel %vm3982, %v3980, %v3977
    %v3984 = vsub.f32 %v2192, %v2840
    %v3985 = vsub.f32 %v2193, %v2849
    %v3986 = vsub.f32 %v2194, %v2858
    %v3987 = vsub.f32 %v2195, %v2867
    %v3988 = vsub.f32 %v2196, %v2876
    %v3989 = vsub.f32 %v2197, %v2885
    %v3990 = vsub.f32 %v2198, %v2894
    %v3991 = vsub.f32 %v2199, %v2903
    %v3992 = vsub.f32 %v2200, %v2912
    %v3993 = vsub.f32 %v2201, %v2921
    %v3994 = vsub.f32 %v2202, %v2930
    %v3995 = vsub.f32 %v2203, %v2939
    %v3996 = vsub.f32 %v2204, %v2948
    %v3997 = vsub.f32 %v2205, %v2957
    %v3998 = vsub.f32 %v2206, %v2966
    %v3999 = vsub.f32 %v2207, %v2975
    %v4000 = vsub.f32 %v2208, %v2984
    %v4001 = vsub.f32 %v2209, %v2993
    %v4002 = vsub.f32 %v2210, %v3002
    %v4003 = vsub.f32 %v2211, %v3011
    %v4004 = vsub.f32 %v2212, %v3020
    %v4005 = vsub.f32 %v2213, %v3029
    %v4006 = vsub.f32 %v2214, %v3038
    %v4007 = vsub.f32 %v2215, %v3047
    %v4008 = vsub.f32 %v2216, %v3056
    %v4009 = vsub.f32 %v2217, %v3065
    %v4010 = vsub.f32 %v2218, %v3074
    %v4011 = vsub.f32 %v2219, %v3083
    %v4012 = vsub.f32 %v2220, %v3092
    %v4013 = vsub.f32 %v2221, %v3101
    %v4014 = vsub.f32 %v2222, %v3110
    %v4015 = vsub.f32 %v2223, %v3119
    %v4016 = vsub.f32 %v2224, %v3128
    %v4017 = vsub.f32 %v2225, %v3137
    %v4018 = vsub.f32 %v2226, %v3146
    %v4019 = vsub.f32 %v2227, %v3155
    %v4020 = vsub.f32 %v2228, %v3164
    %v4021 = vsub.f32 %v2229, %v3173
    %v4022 = vsub.f32 %v2230, %v3182
    %v4023 = vsub.f32 %v2231, %v3191
    %v4024 = vsub.f32 %v2232, %v3200
    %v4025 = vsub.f32 %v2233, %v3209
    %v4026 = vsub.f32 %v2234, %v3218
    %v4027 = vsub.f32 %v2235, %v3227
    %v4028 = vsub.f32 %v2236, %v3236
    %v4029 = vsub.f32 %v2237, %v3245
    %v4030 = vsub.f32 %v2238, %v3254
    %v4031 = vsub.f32 %v2239, %v3263
    %v4032 = vsub.f32 %v2240, %v3272
    %v4033 = vsub.f32 %v2241, %v3281
    %v4034 = vsub.f32 %v2242, %v3290
    %v4035 = vsub.f32 %v2243, %v3299
    %v4036 = vsub.f32 %v2244, %v3308
    %v4037 = vsub.f32 %v2245, %v3317
    %v4038 = vsub.f32 %v2246, %v3326
    %v4039 = vsub.f32 %v2247, %v3335
    %v4040 = vsub.f32 %v2248, %v3344
    %v4041 = vsub.f32 %v2249, %v3353
    %v4042 = vsub.f32 %v2250, %v3362
    %v4043 = vsub.f32 %v2251, %v3371
    %v4044 = vsub.f32 %v2252, %v3380
    %v4045 = vsub.f32 %v2253, %v3389
    %v4046 = vsub.f32 %v2254, %v3398
    %v4047 = vsub.f32 %v2255, %v3407
    %v4048 = vsub.f32 %v2256, %v3416
    %v4049 = vsub.f32 %v2257, %v3425
    %v4050 = vsub.f32 %v2258, %v3434
    %v4051 = vsub.f32 %v2259, %v3443
    %v4052 = vsub.f32 %v2260, %v3452
    %v4053 = vsub.f32 %v2261, %v3461
    %v4054 = vsub.f32 %v2262, %v3470
    %v4055 = vsub.f32 %v2263, %v3479
    %v4056 = vsub.f32 %v2264, %v3488
    %v4057 = vsub.f32 %v2265, %v3497
    %v4058 = vsub.f32 %v2266, %v3506
    %v4059 = vsub.f32 %v2267, %v3515
    %v4060 = vsub.f32 %v2268, %v3524
    %v4061 = vsub.f32 %v2269, %v3533
    %v4062 = vsub.f32 %v2270, %v3542
    %v4063 = vsub.f32 %v2271, %v3551
    %v4064 = vsub.f32 %v2272, %v3560
    %v4065 = vsub.f32 %v2273, %v3569
    %v4066 = vsub.f32 %v2274, %v3578
    %v4067 = vsub.f32 %v2275, %v3587
    %v4068 = vsub.f32 %v2276, %v3596
    %v4069 = vsub.f32 %v2277, %v3605
    %v4070 = vsub.f32 %v2278, %v3614
    %v4071 = vsub.f32 %v2279, %v3623
    %v4072 = vsub.f32 %v2280, %v3632
    %v4073 = vsub.f32 %v2281, %v3641
    %v4074 = vsub.f32 %v2282, %v3650
    %v4075 = vsub.f32 %v2283, %v3659
    %v4076 = vsub.f32 %v2284, %v3668
    %v4077 = vsub.f32 %v2285, %v3677
    %v4078 = vsub.f32 %v2286, %v3686
    %v4079 = vsub.f32 %v2287, %v3695
    %v4080 = vsub.f32 %v2288, %v3704
    %v4081 = vsub.f32 %v2289, %v3713
    %v4082 = vsub.f32 %v2290, %v3722
    %v4083 = vsub.f32 %v2291, %v3731
    %v4084 = vsub.f32 %v2292, %v3740
    %v4085 = vsub.f32 %v2293, %v3749
    %v4086 = vsub.f32 %v2294, %v3758
    %v4087 = vsub.f32 %v2295, %v3767
    %v4088 = vsub.f32 %v2296, %v3776
    %v4089 = vsub.f32 %v2297, %v3785
    %v4090 = vsub.f32 %v2298, %v3794
    %v4091 = vsub.f32 %v2299, %v3803
    %v4092 = vsub.f32 %v2300, %v3812
    %v4093 = vsub.f32 %v2301, %v3821
    %v4094 = vsub.f32 %v2302, %v3830
    %v4095 = vsub.f32 %v2303, %v3839
    %v4096 = vsub.f32 %v2304, %v3848
    %v4097 = vsub.f32 %v2305, %v3857
    %v4098 = vsub.f32 %v2306, %v3866
    %v4099 = vsub.f32 %v2307, %v3875
    %v4100 = vsub.f32 %v2308, %v3884
    %v4101 = vsub.f32 %v2309, %v3893
    %v4102 = vsub.f32 %v2310, %v3902
    %v4103 = vsub.f32 %v2311, %v3911
    %v4104 = vsub.f32 %v2312, %v3920
    %v4105 = vsub.f32 %v2313, %v3929
    %v4106 = vsub.f32 %v2314, %v3938
    %v4107 = vsub.f32 %v2315, %v3947
    %v4108 = vsub.f32 %v2316, %v3956
    %v4109 = vsub.f32 %v2317, %v3965
    %v4110 = vsub.f32 %v2318, %v3974
    %v4111 = vsub.f32 %v2319, %v3983
    %v4112 = vld [vmem:[#allocation8] sm:$0xff]
    %v4113 = vadd.f32 %v3984, %v3985
    %v4114 = vadd.f32 %v4113, %v3986
    %v4115 = vadd.f32 %v4114, %v3987
    %v4116 = vadd.f32 %v4115, %v3988
    %v4117 = vadd.f32 %v4116, %v3989
    %v4118 = vadd.f32 %v4117, %v3990
    %v4119 = vadd.f32 %v4118, %v3991
    %v4120 = vadd.f32 %v4119, %v3992
    %v4121 = vadd.f32 %v4120, %v3993
    %v4122 = vadd.f32 %v4121, %v3994
    %v4123 = vadd.f32 %v4122, %v3995
    %v4124 = vadd.f32 %v4123, %v3996
    %v4125 = vadd.f32 %v4124, %v3997
    %v4126 = vadd.f32 %v4125, %v3998
    %v4127 = vadd.f32 %v4126, %v3999
    %v4128 = vadd.f32 %v4127, %v4000
    %v4129 = vadd.f32 %v4128, %v4001
    %v4130 = vadd.f32 %v4129, %v4002
    %v4131 = vadd.f32 %v4130, %v4003
    %v4132 = vadd.f32 %v4131, %v4004
    %v4133 = vadd.f32 %v4132, %v4005
    %v4134 = vadd.f32 %v4133, %v4006
    %v4135 = vadd.f32 %v4134, %v4007
    %v4136 = vadd.f32 %v4135, %v4008
    %v4137 = vadd.f32 %v4136, %v4009
    %v4138 = vadd.f32 %v4137, %v4010
    %v4139 = vadd.f32 %v4138, %v4011
    %v4140 = vadd.f32 %v4139, %v4012
    %v4141 = vadd.f32 %v4140, %v4013
    %v4142 = vadd.f32 %v4141, %v4014
    %v4143 = vadd.f32 %v4142, %v4015
    %v4144 = vadd.f32 %v4143, %v4016
    %v4145 = vadd.f32 %v4144, %v4017
    %v4146 = vadd.f32 %v4145, %v4018
    %v4147 = vadd.f32 %v4146, %v4019
    %v4148 = vadd.f32 %v4147, %v4020
    %v4149 = vadd.f32 %v4148, %v4021
    %v4150 = vadd.f32 %v4149, %v4022
    %v4151 = vadd.f32 %v4150, %v4023
    %v4152 = vadd.f32 %v4151, %v4024
    %v4153 = vadd.f32 %v4152, %v4025
    %v4154 = vadd.f32 %v4153, %v4026
    %v4155 = vadd.f32 %v4154, %v4027
    %v4156 = vadd.f32 %v4155, %v4028
    %v4157 = vadd.f32 %v4156, %v4029
    %v4158 = vadd.f32 %v4157, %v4030
    %v4159 = vadd.f32 %v4158, %v4031
    %v4160 = vadd.f32 %v4159, %v4032
    %v4161 = vadd.f32 %v4160, %v4033
    %v4162 = vadd.f32 %v4161, %v4034
    %v4163 = vadd.f32 %v4162, %v4035
    %v4164 = vadd.f32 %v4163, %v4036
    %v4165 = vadd.f32 %v4164, %v4037
    %v4166 = vadd.f32 %v4165, %v4038
    %v4167 = vadd.f32 %v4166, %v4039
    %v4168 = vadd.f32 %v4167, %v4040
    %v4169 = vadd.f32 %v4168, %v4041
    %v4170 = vadd.f32 %v4169, %v4042
    %v4171 = vadd.f32 %v4170, %v4043
    %v4172 = vadd.f32 %v4171, %v4044
    %v4173 = vadd.f32 %v4172, %v4045
    %v4174 = vadd.f32 %v4173, %v4046
    %v4175 = vadd.f32 %v4174, %v4047
    %v4176 = vadd.f32 %v4175, %v4048
    %v4177 = vadd.f32 %v4176, %v4049
    %v4178 = vadd.f32 %v4177, %v4050
    %v4179 = vadd.f32 %v4178, %v4051
    %v4180 = vadd.f32 %v4179, %v4052
    %v4181 = vadd.f32 %v4180, %v4053
    %v4182 = vadd.f32 %v4181, %v4054
    %v4183 = vadd.f32 %v4182, %v4055
    %v4184 = vadd.f32 %v4183, %v4056
    %v4185 = vadd.f32 %v4184, %v4057
    %v4186 = vadd.f32 %v4185, %v4058
    %v4187 = vadd.f32 %v4186, %v4059
    %v4188 = vadd.f32 %v4187, %v4060
    %v4189 = vadd.f32 %v4188, %v4061
    %v4190 = vadd.f32 %v4189, %v4062
    %v4191 = vadd.f32 %v4190, %v4063
    %v4192 = vadd.f32 %v4191, %v4064
    %v4193 = vadd.f32 %v4192, %v4065
    %v4194 = vadd.f32 %v4193, %v4066
    %v4195 = vadd.f32 %v4194, %v4067
    %v4196 = vadd.f32 %v4195, %v4068
    %v4197 = vadd.f32 %v4196, %v4069
    %v4198 = vadd.f32 %v4197, %v4070
    %v4199 = vadd.f32 %v4198, %v4071
    %v4200 = vadd.f32 %v4199, %v4072
    %v4201 = vadd.f32 %v4200, %v4073
    %v4202 = vadd.f32 %v4201, %v4074
    %v4203 = vadd.f32 %v4202, %v4075
    %v4204 = vadd.f32 %v4203, %v4076
    %v4205 = vadd.f32 %v4204, %v4077
    %v4206 = vadd.f32 %v4205, %v4078
    %v4207 = vadd.f32 %v4206, %v4079
    %v4208 = vadd.f32 %v4207, %v4080
    %v4209 = vadd.f32 %v4208, %v4081
    %v4210 = vadd.f32 %v4209, %v4082
    %v4211 = vadd.f32 %v4210, %v4083
    %v4212 = vadd.f32 %v4211, %v4084
    %v4213 = vadd.f32 %v4212, %v4085
    %v4214 = vadd.f32 %v4213, %v4086
    %v4215 = vadd.f32 %v4214, %v4087
    %v4216 = vadd.f32 %v4215, %v4088
    %v4217 = vadd.f32 %v4216, %v4089
    %v4218 = vadd.f32 %v4217, %v4090
    %v4219 = vadd.f32 %v4218, %v4091
    %v4220 = vadd.f32 %v4219, %v4092
    %v4221 = vadd.f32 %v4220, %v4093
    %v4222 = vadd.f32 %v4221, %v4094
    %v4223 = vadd.f32 %v4222, %v4095
    %v4224 = vadd.f32 %v4223, %v4096
    %v4225 = vadd.f32 %v4224, %v4097
    %v4226 = vadd.f32 %v4225, %v4098
    %v4227 = vadd.f32 %v4226, %v4099
    %v4228 = vadd.f32 %v4227, %v4100
    %v4229 = vadd.f32 %v4228, %v4101
    %v4230 = vadd.f32 %v4229, %v4102
    %v4231 = vadd.f32 %v4230, %v4103
    %v4232 = vadd.f32 %v4231, %v4104
    %v4233 = vadd.f32 %v4232, %v4105
    %v4234 = vadd.f32 %v4233, %v4106
    %v4235 = vadd.f32 %v4234, %v4107
    %v4236 = vadd.f32 %v4235, %v4108
    %v4237 = vadd.f32 %v4236, %v4109
    %v4238 = vadd.f32 %v4237, %v4110
    %v4239 = vadd.f32 %v4238, %v4111
    %v4240 = vadd.f32 %v4112, %v4239
    %4241 = vst [vmem:[#allocation8] sm:$0xff] %v4240
    // Predicated region
    $region34: #{tpu_custom_call.1} parent=1 // pred_check
      _
    $region35: #{tpu_custom_call.1} parent=1 // pred_check_branch
      %4243 = sbr.rel (0) target = $region37
    $region36: #{tpu_custom_call.1} parent=1 // pred_region
      %s4245 = ssub.s32 128, 128
      %4246 = vsyncadd [#allocation4], %s4245
      %s4248 = sshll.u32 [#allocation8], 4
      %s4249 = int_to_ptr.vmem [resolvable:$true] %s4248
      %4251 = dma.vmem_to_hbm [thread:$0]  %s4249, 128, %s4, [#allocation4]
    $region37: #{tpu_custom_call.1} parent=1 // pred_fallthru
      _
    // Predicated region
    $region38: #{tpu_custom_call.1} parent=1 // pred_check
      _
    $region39: #{tpu_custom_call.1} parent=1 // pred_check_branch
      %4253 = sbr.rel (0) target = $region41
    $region40: #{tpu_custom_call.1} parent=1 // pred_region
      %4254 = dma.done [#allocation4], 128
    $region41: #{tpu_custom_call.1} parent=1 // pred_fallthru
      _
    %4255 = vsyncpa [#allocation3], 1
    %4256 = vsyncpa [#allocation6], 1
    %4257 = vsyncpa [#allocation4], 1

</llo_original>
